<compile_context>
chip_gen: v7x
topology: tpu7x:2x2x1
jax: 0.10.0
libtpu: 0.0.40
codegen_flags: <defaults>
</compile_context>

<pallas_src>
import functools

import jax
import jax.numpy as jnp
from jax.experimental import pallas as pl
from jax.experimental.pallas import tpu as pltpu

BN_EPS = 1e-5
LANES = 128


def _round_up(n, m):
    return (n + m - 1) // m * m


def _pad_to(a, axis, target):
    pad = target - a.shape[axis]
    if pad == 0:
        return a
    widths = [(0, 0)] * a.ndim
    widths[axis] = (0, pad)
    return jnp.pad(a, widths)


def encoder_kernel(dilations, kernel_size, num_conv_blocks, B, T, H, Hp,
                   lane_pack, compute_dtype,
                   lengths_ref, x_ref,
                   pre_w_ref, pre_b_ref,
                   res_w_ref, res_b_ref, res_g_ref, res_bt_ref,
                   post_w1_ref, post_b1_ref, post_g_ref, post_bt_ref,
                   post_w2_ref, post_b2_ref,
                   o_ref):
    x16 = x_ref[...]                       # (B*T, Hp) compute_dtype, ch-padded
    BT = x16.shape[0]
    K = kernel_size
    cdt = compute_dtype

    # ---- in-kernel mask / time bookkeeping (no (BT,1) HBM inputs) -----------
    # Row r belongs to sequence b = r // T at time t = r - b*T; both are built
    # with compares/selects over a small static loop (no vector integer div).
    row = jax.lax.broadcasted_iota(jnp.int32, (BT, 1), 0)
    t_idx = row
    len_row = jnp.zeros((BT, 1), jnp.int32)
    for b in range(B):                     # B is small and static
        in_b = row >= b * T
        len_row = jnp.where(in_b, lengths_ref[b], len_row)
        if b:
            t_idx = jnp.where(in_b, row - b * T, t_idx)
    mask = (t_idx < len_row).astype(jnp.float32)           # (BT, 1), 0/1

    def mm(a_cdt, w, b_f32):
        # 1x1 conv: compute_dtype operands on the MXU, f32 accumulation/bias.
        return jnp.dot(a_cdt, w, preferred_element_type=jnp.float32) + b_f32

    def bn_affine(v, gamma, beta):
        # Training-mode batch stats over all (batch*time) rows, fused: one mean
        # pass, then the centered tensor feeds both variance and normalize.
        mean = jnp.mean(v, axis=0, keepdims=True)
        xc = v - mean
        var = jnp.mean(xc * xc, axis=0, keepdims=True)
        return xc * (gamma * jax.lax.rsqrt(var + BN_EPS)) + beta

    # ---- prenet: Conv1d(Cin, H, 1) -> ReLU, * mask --------------------------
    o = jnp.maximum(mm(x16, pre_w_ref[...], pre_b_ref[...]), 0.0) * mask
    # (reference multiplies by the mask again at the top of the residual block;
    #  the mask is 0/1 so the second multiply is dropped.)

    # ---- ResidualConv1dBNBlock ----------------------------------------------
    layer = 0
    for dil in dilations:
        pad_total = dil * (K - 1)
        pad_s = pad_total // 2
        pad_e = pad_total - pad_s
        # Rows produced by the valid conv occupy [pad_s, T - pad_e); the rest
        # are exactly zero (ZeroPad2d on the conv OUTPUT) before the BN, so
        # roll wrap-around / cross-sequence reads never leak into the result.
        border = jnp.logical_and(t_idx >= pad_s,
                                 t_idx < (T - pad_e)).astype(jnp.float32)
        res = o
        for _ in range(num_conv_blocks):
            if lane_pack:
                # All K taps lane-packed into one Hp-wide operand: tap j is
                # time-rolled (XLU, axis 0) then lane-rolled to [j*H,(j+1)*H)
                # (XLU, axis 1).  Lanes [H, Hp) of `o` are exactly zero, so the
                # packed taps occupy disjoint lanes and the adds are exact.
                packed = None
                for j in range(K):
                    sh = (pad_s - j * dil) % BT
                    tap = o if sh == 0 else pltpu.roll(o, sh, 0)
                    if j:
                        tap = pltpu.roll(tap, j * H, 1)
                    packed = tap if packed is None else packed + tap
                acc = jnp.dot(packed.astype(cdt), res_w_ref[layer],
                              preferred_element_type=jnp.float32)
                acc = acc + res_b_ref[layer]
            else:
                # General fallback (K*H > Hp): K accumulating dots, no concat.
                acc = res_b_ref[layer]
                for j in range(K):
                    sh = (pad_s - j * dil) % BT
                    tap = o if sh == 0 else pltpu.roll(o, sh, 0)
                    acc = acc + jnp.dot(tap.astype(cdt), res_w_ref[layer, j],
                                        preferred_element_type=jnp.float32)
            conv_out = acc * border
            # Fused BN (batch stats include the zero borders, as in the
            # reference) + affine + ReLU.
            o = jnp.maximum(
                bn_affine(conv_out, res_g_ref[layer], res_bt_ref[layer]), 0.0)
            layer += 1
        o = (o + res) * mask

    # ---- postnet on (o + x): 1x1 conv -> ReLU -> BN -> 1x1 conv -------------
    p = o + x16.astype(jnp.float32)
    p = jnp.maximum(mm(p.astype(cdt), post_w1_ref[...], post_b1_ref[...]), 0.0)
    p = bn_affine(p, post_g_ref[...], post_bt_ref[...])
    p = mm(p.astype(cdt), post_w2_ref[...], post_b2_ref[...])
    # reference applies the final mask twice; it is 0/1 so apply once.
    o_ref[...] = (p * mask).astype(o_ref.dtype)


def _vmem_limit_bytes():
    # Per-generation limit: physical VMEM minus headroom for compiler scratch
    # (v5e/v6e: 128 MiB -> ~112 MiB; v7x: 64 MiB -> 48 MiB).
    try:
        phys = int(pltpu.get_tpu_info().vmem_capacity_bytes)
    except Exception:          # conservative default = v7x physical size
        phys = 64 * 1024 * 1024
    return max(32 * 1024 * 1024, phys - 16 * 1024 * 1024)


def residual_conv1d_bn_encoder(x_ncl, mask_n1l, params, *, dilations,
                               kernel_size, num_conv_blocks,
                               compute_dtype=jnp.bfloat16):
    """x_ncl: (B, C_in, T) torch layout; mask_n1l: (B, 1, T) 0/1 prefix length
    mask (or None).  Returns (B, C_out, T).

    compute_dtype controls the matmul-operand / input-activation precision
    (bf16 by default for 2x MXU throughput and half the input DMA; pass
    jnp.float32 for exact f32 matmuls).  Expect ~1e-2-level divergence from a
    float32 PyTorch forward with the default bf16 setting.
    """
    B, C_in, T = x_ncl.shape
    H = params["pre_w"].shape[1]
    C_out = params["post_w2"].shape[1]
    K = kernel_size
    assert C_in == H, "in_channels must equal hidden_channels for the (o + x) residual"
    for d in dilations:
        assert d * (K - 1) < T, "dilation*(kernel_size-1) must be < T (degenerate valid conv)"

    Hp = _round_up(H, LANES)
    Cout_p = _round_up(C_out, LANES)
    L = len(dilations) * num_conv_blocks
    assert params["res_w"].shape[:2] == (L, K)
    lane_pack = K * H <= Hp        # all K taps fit in one lane-dense operand

    # --- lane-dense, channels-last activation in compute_dtype ---------------
    x_btc = jnp.transpose(x_ncl, (0, 2, 1))
    x2 = _pad_to(x_btc.reshape(B * T, C_in), 1, Hp).astype(compute_dtype)
    # --- (B,) int32 sequence lengths (SMEM) instead of a (B*T,1) mask column -
    # NOTE: assumes the usual prefix length-mask (contiguous ones from t=0).
    if mask_n1l is None:
        lengths = jnp.full((B,), T, jnp.int32)
    else:
        lengths = jnp.sum(mask_n1l.reshape(B, T), axis=-1).astype(jnp.int32)

    # --- zero-pad params to lane width; matmul weights in compute_dtype ------
    wdt = compute_dtype
    pre_w = _pad_to(_pad_to(params["pre_w"], 0, Hp), 1, Hp).astype(wdt)
    pre_b = _pad_to(params["pre_b"].reshape(1, H), 1, Hp).astype(jnp.float32)
    res_w_f = params["res_w"].astype(jnp.float32)                  # (L,K,H,H)
    if lane_pack:
        # Fold all K taps into one (Hp, Hp) matrix per layer: rows
        # [j*H,(j+1)*H) hold tap j's (H, H) weight; everything else is zero.
        res_w_k = jnp.zeros((L, Hp, Hp), jnp.float32)
        for j in range(K):
            res_w_k = res_w_k.at[:, j * H:(j + 1) * H, :H].set(res_w_f[:, j])
        res_w_k = res_w_k.astype(wdt)
    else:
        res_w_k = _pad_to(_pad_to(res_w_f, 2, Hp), 3, Hp).astype(wdt)  # (L,K,Hp,Hp)
    res_b = _pad_to(params["res_b"].reshape(L, 1, H), 2, Hp).astype(jnp.float32)
    # BN gamma/beta padded with ZEROS so padded channels stay exactly zero
    # (required for the lane-packing of the next layer's taps).
    res_g = _pad_to(params["res_g"].reshape(L, 1, H), 2, Hp).astype(jnp.float32)
    res_bt = _pad_to(params["res_bt"].reshape(L, 1, H), 2, Hp).astype(jnp.float32)
    post_w1 = _pad_to(_pad_to(params["post_w1"], 0, Hp), 1, Hp).astype(wdt)
    post_b1 = _pad_to(params["post_b1"].reshape(1, H), 1, Hp).astype(jnp.float32)
    post_g = _pad_to(params["post_g"].reshape(1, H), 1, Hp).astype(jnp.float32)
    post_bt = _pad_to(params["post_bt"].reshape(1, H), 1, Hp).astype(jnp.float32)
    post_w2 = _pad_to(_pad_to(params["post_w2"], 0, Hp), 1, Cout_p).astype(wdt)
    post_b2 = _pad_to(params["post_b2"].reshape(1, C_out), 1, Cout_p).astype(jnp.float32)

    kernel = functools.partial(encoder_kernel, tuple(dilations), K,
                               num_conv_blocks, B, T, H, Hp, lane_pack,
                               compute_dtype)
    args = (lengths, x2,
            pre_w, pre_b,
            res_w_k, res_b, res_g, res_bt,
            post_w1, post_b1, post_g, post_bt, post_w2, post_b2)

    # Advisory cost so XLA schedules correctly around this fused custom call.
    bt = B * T
    contract = Hp if lane_pack else K * Hp
    flops = 2 * bt * Hp * Hp                              # prenet
    flops += 2 * bt * contract * Hp * L                   # residual conv stack
    flops += 2 * bt * Hp * Hp + 2 * bt * Hp * Cout_p      # postnet
    flops += 12 * bt * Hp * (L + 1)                       # BN / ReLU / mask
    transcendentals = (L + 1) * Hp                        # rsqrt per BN channel
    bytes_accessed = int(sum(int(a.size) * a.dtype.itemsize for a in args)
                         + bt * Cout_p * 4)

    smem_spec = pl.BlockSpec(memory_space=pltpu.MemorySpace.SMEM)
    vmem = lambda: pl.BlockSpec(memory_space=pltpu.MemorySpace.VMEM)
    out2 = pl.pallas_call(
        kernel,
        out_shape=jax.ShapeDtypeStruct((B * T, Cout_p), jnp.float32),
        in_specs=[smem_spec] + [vmem() for _ in args[1:]],
        out_specs=vmem(),
        compiler_params=pltpu.CompilerParams(
            vmem_limit_bytes=_vmem_limit_bytes()),
        cost_estimate=pl.CostEstimate(flops=int(flops),
                                      transcendentals=int(transcendentals),
                                      bytes_accessed=bytes_accessed),
    )(*args)
    out_btc = out2.reshape(B, T, Cout_p)[:, :, :C_out]
    return jnp.transpose(out_btc, (0, 2, 1))


def _torch_like_reference(x_btc, mask_bt1, params, *, dilations, kernel_size,
                          num_conv_blocks, compute_dtype=jnp.bfloat16):
    """Pure-JAX port of the PyTorch forward.  Mirrors the kernel's precision
    (matmul operands and the stored input activation in compute_dtype)."""
    K = kernel_size
    cdt = compute_dtype
    x_btc = x_btc.astype(cdt).astype(jnp.float32)   # kernel holds x in cdt

    def conv1x1(a, w, b):
        return jnp.einsum("btc,cd->btd", a.astype(cdt), w.astype(cdt),
                          preferred_element_type=jnp.float32) + b

    def bn(v, g, bt):
        mean = jnp.mean(v, axis=(0, 1), keepdims=True)
        var = jnp.mean(jnp.square(v - mean), axis=(0, 1), keepdims=True)
        return (v - mean) * jax.lax.rsqrt(var + BN_EPS) * g + bt

    B, T, _ = x_btc.shape
    o = jnp.maximum(conv1x1(x_btc, params["pre_w"], params["pre_b"]), 0.0) * mask_bt1
    o = o * mask_bt1
    t = jnp.arange(T)[None, :, None]
    layer = 0
    for dil in dilations:
        pad_total = dil * (K - 1)
        pad_s = pad_total // 2
        pad_e = pad_total - pad_s
        res = o
        for _ in range(num_conv_blocks):
            o_ext = jnp.pad(o, ((0, 0), (pad_s, pad_e), (0, 0)))
            acc = sum(
                jnp.einsum("btc,cd->btd",
                           o_ext[:, j * dil:j * dil + T, :].astype(cdt),
                           params["res_w"][layer, j].astype(cdt),
                           preferred_element_type=jnp.float32)
                for j in range(K)) + params["res_b"][layer]
            conv_out = jnp.where((t >= pad_s) & (t < T - pad_e), acc, 0.0)
            o = jnp.maximum(
                bn(conv_out, params["res_g"][layer], params["res_bt"][layer]), 0.0)
            layer += 1
        o = (o + res) * mask_bt1
    p = o + x_btc
    p = jnp.maximum(conv1x1(p, params["post_w1"], params["post_b1"]), 0.0)
    p = bn(p, params["post_g"], params["post_bt"])
    p = conv1x1(p, params["post_w2"], params["post_b2"])
    return p * mask_bt1 * mask_bt1


if __name__ == "__main__":
    B, T = 2, 16
    C_IN = 32          # must equal HIDDEN because the encoder computes postnet(o + x)
    HIDDEN = 32
    C_OUT = 32
    K = 3
    DILATIONS = (1, 2, 4, 1)
    NUM_CONV_BLOCKS = 2
    L = len(DILATIONS) * NUM_CONV_BLOCKS   # total Conv1dBN layers in the res block

    root = jax.random.PRNGKey(0)
    ks = jax.random.split(root, 14)
    s = 0.1

    x = jax.random.normal(ks[0], (B, C_IN, T), jnp.float32)          # torch NCL layout
    lengths = jnp.array([T, 12], jnp.int32)
    x_mask = (jnp.arange(T)[None, :] < lengths[:, None]
              ).astype(jnp.float32)[:, None, :]                      # (B, 1, T)

    # Deterministic synthetic parameters (conv weights pre-transposed to
    # (Cin, Cout) per tap for channels-last).
    params = dict(
        pre_w=s * jax.random.normal(ks[1], (C_IN, HIDDEN), jnp.float32),
        pre_b=s * jax.random.normal(ks[2], (1, 1, HIDDEN), jnp.float32),
        res_w=s * jax.random.normal(ks[3], (L, K, HIDDEN, HIDDEN), jnp.float32),
        res_b=s * jax.random.normal(ks[4], (L, 1, HIDDEN), jnp.float32),
        res_g=1.0 + s * jax.random.normal(ks[5], (L, 1, HIDDEN), jnp.float32),
        res_bt=s * jax.random.normal(ks[6], (L, 1, HIDDEN), jnp.float32),
        post_w1=s * jax.random.normal(ks[7], (HIDDEN, HIDDEN), jnp.float32),
        post_b1=s * jax.random.normal(ks[8], (1, 1, HIDDEN), jnp.float32),
        post_g=1.0 + s * jax.random.normal(ks[9], (1, 1, HIDDEN), jnp.float32),
        post_bt=s * jax.random.normal(ks[10], (1, 1, HIDDEN), jnp.float32),
        post_w2=s * jax.random.normal(ks[11], (HIDDEN, C_OUT), jnp.float32),
        post_b2=s * jax.random.normal(ks[12], (1, 1, C_OUT), jnp.float32),
    )

    out = residual_conv1d_bn_encoder(
        x, x_mask, params,
        dilations=DILATIONS, kernel_size=K, num_conv_blocks=NUM_CONV_BLOCKS)
    out = jax.block_until_ready(out)
    assert out.shape == (B, C_OUT, T), out.shape
    assert bool(jnp.all(jnp.isfinite(out)))

    # Correctness check against a pure-JAX port of the PyTorch forward.
    ref_btc = _torch_like_reference(
        jnp.transpose(x, (0, 2, 1)), jnp.transpose(x_mask, (0, 2, 1)), params,
        dilations=DILATIONS, kernel_size=K, num_conv_blocks=NUM_CONV_BLOCKS)
    ref = jnp.transpose(ref_btc, (0, 2, 1))
    assert bool(jnp.allclose(out, ref, atol=1e-2, rtol=1e-2)), \
        float(jnp.max(jnp.abs(out - ref)))
    print("KERNEL_OK")
</pallas_src>

<mosaic_0001>
module attributes {stable_mosaic.version = 11 : i64} {
  func.func @encoder_kernel(%arg0: memref<2xi32, #tpu.memory_space<smem>>, %arg1: memref<32x128xbf16, #tpu.memory_space<vmem>>, %arg2: memref<128x128xbf16, #tpu.memory_space<vmem>>, %arg3: memref<1x128xf32, #tpu.memory_space<vmem>>, %arg4: memref<8x128x128xbf16, #tpu.memory_space<vmem>>, %arg5: memref<8x1x128xf32, #tpu.memory_space<vmem>>, %arg6: memref<8x1x128xf32, #tpu.memory_space<vmem>>, %arg7: memref<8x1x128xf32, #tpu.memory_space<vmem>>, %arg8: memref<128x128xbf16, #tpu.memory_space<vmem>>, %arg9: memref<1x128xf32, #tpu.memory_space<vmem>>, %arg10: memref<1x128xf32, #tpu.memory_space<vmem>>, %arg11: memref<1x128xf32, #tpu.memory_space<vmem>>, %arg12: memref<128x128xbf16, #tpu.memory_space<vmem>>, %arg13: memref<1x128xf32, #tpu.memory_space<vmem>>, %arg14: memref<32x128xf32, #tpu.memory_space<vmem>>) attributes {dimension_semantics = [], scalar_prefetch = 0 : i64, scratch_operands = 0 : i64, tpu.core_type = #tpu.core_type<tc>} {
    %c0 = arith.constant 0 : index
    %c0_0 = arith.constant 0 : index
    %0 = vector.load %arg1[%c0, %c0_0] : memref<32x128xbf16, #tpu.memory_space<vmem>>, vector<32x128xbf16>
    %1 = tpu.iota {dimensions = array<i32: 0>} : vector<32x1xi32>
    %c0_i32 = arith.constant 0 : i32
    %2 = vector.broadcast %c0_i32 : i32 to vector<32x1xi32>
    %c0_i32_1 = arith.constant 0 : i32
    %3 = vector.broadcast %c0_i32_1 : i32 to vector<32x1xi32>
    %4 = arith.cmpi sge, %1, %3 : vector<32x1xi32>
    %c0_2 = arith.constant 0 : index
    %5 = memref.load %arg0[%c0_2] : memref<2xi32, #tpu.memory_space<smem>>
    %6 = vector.broadcast %5 : i32 to vector<32x1xi32>
    %7 = arith.select %4, %6, %2 : vector<32x1xi1>, vector<32x1xi32>
    %c16_i32 = arith.constant 16 : i32
    %8 = vector.broadcast %c16_i32 : i32 to vector<32x1xi32>
    %9 = arith.cmpi sge, %1, %8 : vector<32x1xi32>
    %c1 = arith.constant 1 : index
    %10 = memref.load %arg0[%c1] : memref<2xi32, #tpu.memory_space<smem>>
    %11 = vector.broadcast %10 : i32 to vector<32x1xi32>
    %12 = arith.select %9, %11, %7 : vector<32x1xi1>, vector<32x1xi32>
    %c16_i32_3 = arith.constant 16 : i32
    %13 = vector.broadcast %c16_i32_3 : i32 to vector<32x1xi32>
    %14 = arith.subi %1, %13 : vector<32x1xi32>
    %15 = arith.select %9, %14, %1 : vector<32x1xi1>, vector<32x1xi32>
    %16 = arith.cmpi slt, %15, %12 : vector<32x1xi32>
    %17 = arith.extui %16 : vector<32x1xi1> to vector<32x1xi32>
    %18 = arith.sitofp %17 : vector<32x1xi32> to vector<32x1xf32>
    %c0_4 = arith.constant 0 : index
    %c0_5 = arith.constant 0 : index
    %19 = vector.load %arg2[%c0_4, %c0_5] : memref<128x128xbf16, #tpu.memory_space<vmem>>, vector<128x128xbf16>
    %c0_6 = arith.constant 0 : index
    %c0_7 = arith.constant 0 : index
    %20 = vector.load %arg3[%c0_6, %c0_7] : memref<1x128xf32, #tpu.memory_space<vmem>>, vector<1x128xf32>
    %cst = arith.constant dense<0.000000e+00> : vector<32x128xf32>
    %21 = tpu.matmul %0, %19, %cst {dimension_numbers = #tpu.dot_dimension_numbers<[1], [0], [0], [1], [0, 0, 1, 1], [], []>} : vector<32x128xbf16>, vector<128x128xbf16>, vector<32x128xf32> -> vector<32x128xf32>
    %22 = vector.broadcast %20 : vector<1x128xf32> to vector<32x128xf32>
    %23 = arith.addf %21, %22 : vector<32x128xf32>
    %cst_8 = arith.constant 0.000000e+00 : f32
    %24 = vector.broadcast %cst_8 : f32 to vector<32x128xf32>
    %25 = arith.maximumf %23, %24 : vector<32x128xf32>
    %26 = vector.broadcast %18 : vector<32x1xf32> to vector<32x128xf32>
    %27 = arith.mulf %25, %26 : vector<32x128xf32>
    %c1_i32 = arith.constant 1 : i32
    %28 = vector.broadcast %c1_i32 : i32 to vector<32x1xi32>
    %29 = arith.cmpi sge, %15, %28 : vector<32x1xi32>
    %c15_i32 = arith.constant 15 : i32
    %30 = vector.broadcast %c15_i32 : i32 to vector<32x1xi32>
    %31 = arith.cmpi slt, %15, %30 : vector<32x1xi32>
    %32 = arith.andi %29, %31 : vector<32x1xi1>
    %33 = arith.extui %32 : vector<32x1xi1> to vector<32x1xi32>
    %34 = arith.sitofp %33 : vector<32x1xi32> to vector<32x1xf32>
    %c1_i32_9 = arith.constant 1 : i32
    %35 = tpu.dynamic_rotate %27 by %c1_i32_9 dim 0 : vector<32x128xf32>, i32 -> vector<32x128xf32>
    %c32_i32 = arith.constant 32 : i32
    %36 = tpu.dynamic_rotate %27 by %c32_i32 dim 1 : vector<32x128xf32>, i32 -> vector<32x128xf32>
    %37 = arith.addf %35, %36 : vector<32x128xf32>
    %c31_i32 = arith.constant 31 : i32
    %38 = tpu.dynamic_rotate %27 by %c31_i32 dim 0 : vector<32x128xf32>, i32 -> vector<32x128xf32>
    %c64_i32 = arith.constant 64 : i32
    %39 = tpu.dynamic_rotate %38 by %c64_i32 dim 1 : vector<32x128xf32>, i32 -> vector<32x128xf32>
    %40 = arith.addf %37, %39 : vector<32x128xf32>
    %41 = arith.truncf %40 : vector<32x128xf32> to vector<32x128xbf16>
    %c0_10 = arith.constant 0 : index
    %c0_11 = arith.constant 0 : index
    %c0_12 = arith.constant 0 : index
    %42 = vector.load %arg4[%c0_10, %c0_11, %c0_12] : memref<8x128x128xbf16, #tpu.memory_space<vmem>>, vector<1x128x128xbf16>
    %43 = vector.shape_cast %42 : vector<1x128x128xbf16> to vector<128x128xbf16>
    %cst_13 = arith.constant dense<0.000000e+00> : vector<32x128xf32>
    %44 = tpu.matmul %41, %43, %cst_13 {dimension_numbers = #tpu.dot_dimension_numbers<[1], [0], [0], [1], [0, 0, 1, 1], [], []>} : vector<32x128xbf16>, vector<128x128xbf16>, vector<32x128xf32> -> vector<32x128xf32>
    %c0_14 = arith.constant 0 : index
    %c0_15 = arith.constant 0 : index
    %c0_16 = arith.constant 0 : index
    %45 = vector.load %arg5[%c0_14, %c0_15, %c0_16] : memref<8x1x128xf32, #tpu.memory_space<vmem>>, vector<1x1x128xf32>
    %46 = vector.shape_cast %45 : vector<1x1x128xf32> to vector<1x128xf32>
    %47 = vector.broadcast %46 : vector<1x128xf32> to vector<32x128xf32>
    %48 = arith.addf %44, %47 : vector<32x128xf32>
    %49 = vector.broadcast %34 : vector<32x1xf32> to vector<32x128xf32>
    %50 = arith.mulf %48, %49 : vector<32x128xf32>
    %c0_17 = arith.constant 0 : index
    %c0_18 = arith.constant 0 : index
    %c0_19 = arith.constant 0 : index
    %51 = vector.load %arg6[%c0_17, %c0_18, %c0_19] : memref<8x1x128xf32, #tpu.memory_space<vmem>>, vector<1x1x128xf32>
    %52 = vector.shape_cast %51 : vector<1x1x128xf32> to vector<1x128xf32>
    %c0_20 = arith.constant 0 : index
    %c0_21 = arith.constant 0 : index
    %c0_22 = arith.constant 0 : index
    %53 = vector.load %arg7[%c0_20, %c0_21, %c0_22] : memref<8x1x128xf32, #tpu.memory_space<vmem>>, vector<1x1x128xf32>
    %54 = vector.shape_cast %53 : vector<1x1x128xf32> to vector<1x128xf32>
    %cst_23 = arith.constant dense<0.000000e+00> : vector<128xf32>
    %55 = vector.multi_reduction <add>, %50, %cst_23 [0] : vector<32x128xf32> to vector<128xf32>
    %56 = vector.shape_cast %55 : vector<128xf32> to vector<1x128xf32>
    %cst_24 = arith.constant 3.200000e+01 : f32
    %57 = vector.broadcast %cst_24 : f32 to vector<1x128xf32>
    %58 = arith.divf %56, %57 : vector<1x128xf32>
    %59 = vector.broadcast %58 : vector<1x128xf32> to vector<32x128xf32>
    %60 = arith.subf %50, %59 : vector<32x128xf32>
    %61 = arith.mulf %60, %60 : vector<32x128xf32>
    %cst_25 = arith.constant dense<0.000000e+00> : vector<128xf32>
    %62 = vector.multi_reduction <add>, %61, %cst_25 [0] : vector<32x128xf32> to vector<128xf32>
    %63 = vector.shape_cast %62 : vector<128xf32> to vector<1x128xf32>
    %cst_26 = arith.constant 3.200000e+01 : f32
    %64 = vector.broadcast %cst_26 : f32 to vector<1x128xf32>
    %65 = arith.divf %63, %64 : vector<1x128xf32>
    %cst_27 = arith.constant 9.99999974E-6 : f32
    %66 = vector.broadcast %cst_27 : f32 to vector<1x128xf32>
    %67 = arith.addf %65, %66 : vector<1x128xf32>
    %68 = math.rsqrt %67 : vector<1x128xf32>
    %69 = arith.mulf %52, %68 : vector<1x128xf32>
    %70 = vector.broadcast %69 : vector<1x128xf32> to vector<32x128xf32>
    %71 = arith.mulf %60, %70 : vector<32x128xf32>
    %72 = vector.broadcast %54 : vector<1x128xf32> to vector<32x128xf32>
    %73 = arith.addf %71, %72 : vector<32x128xf32>
    %cst_28 = arith.constant 0.000000e+00 : f32
    %74 = vector.broadcast %cst_28 : f32 to vector<32x128xf32>
    %75 = arith.maximumf %73, %74 : vector<32x128xf32>
    %c1_i32_29 = arith.constant 1 : i32
    %76 = tpu.dynamic_rotate %75 by %c1_i32_29 dim 0 : vector<32x128xf32>, i32 -> vector<32x128xf32>
    %c32_i32_30 = arith.constant 32 : i32
    %77 = tpu.dynamic_rotate %75 by %c32_i32_30 dim 1 : vector<32x128xf32>, i32 -> vector<32x128xf32>
    %78 = arith.addf %76, %77 : vector<32x128xf32>
    %c31_i32_31 = arith.constant 31 : i32
    %79 = tpu.dynamic_rotate %75 by %c31_i32_31 dim 0 : vector<32x128xf32>, i32 -> vector<32x128xf32>
    %c64_i32_32 = arith.constant 64 : i32
    %80 = tpu.dynamic_rotate %79 by %c64_i32_32 dim 1 : vector<32x128xf32>, i32 -> vector<32x128xf32>
    %81 = arith.addf %78, %80 : vector<32x128xf32>
    %82 = arith.truncf %81 : vector<32x128xf32> to vector<32x128xbf16>
    %c1_33 = arith.constant 1 : index
    %c0_34 = arith.constant 0 : index
    %c0_35 = arith.constant 0 : index
    %83 = vector.load %arg4[%c1_33, %c0_34, %c0_35] : memref<8x128x128xbf16, #tpu.memory_space<vmem>>, vector<1x128x128xbf16>
    %84 = vector.shape_cast %83 : vector<1x128x128xbf16> to vector<128x128xbf16>
    %cst_36 = arith.constant dense<0.000000e+00> : vector<32x128xf32>
    %85 = tpu.matmul %82, %84, %cst_36 {dimension_numbers = #tpu.dot_dimension_numbers<[1], [0], [0], [1], [0, 0, 1, 1], [], []>} : vector<32x128xbf16>, vector<128x128xbf16>, vector<32x128xf32> -> vector<32x128xf32>
    %c1_37 = arith.constant 1 : index
    %c0_38 = arith.constant 0 : index
    %c0_39 = arith.constant 0 : index
    %86 = vector.load %arg5[%c1_37, %c0_38, %c0_39] : memref<8x1x128xf32, #tpu.memory_space<vmem>>, vector<1x1x128xf32>
    %87 = vector.shape_cast %86 : vector<1x1x128xf32> to vector<1x128xf32>
    %88 = vector.broadcast %87 : vector<1x128xf32> to vector<32x128xf32>
    %89 = arith.addf %85, %88 : vector<32x128xf32>
    %90 = vector.broadcast %34 : vector<32x1xf32> to vector<32x128xf32>
    %91 = arith.mulf %89, %90 : vector<32x128xf32>
    %c1_40 = arith.constant 1 : index
    %c0_41 = arith.constant 0 : index
    %c0_42 = arith.constant 0 : index
    %92 = vector.load %arg6[%c1_40, %c0_41, %c0_42] : memref<8x1x128xf32, #tpu.memory_space<vmem>>, vector<1x1x128xf32>
    %93 = vector.shape_cast %92 : vector<1x1x128xf32> to vector<1x128xf32>
    %c1_43 = arith.constant 1 : index
    %c0_44 = arith.constant 0 : index
    %c0_45 = arith.constant 0 : index
    %94 = vector.load %arg7[%c1_43, %c0_44, %c0_45] : memref<8x1x128xf32, #tpu.memory_space<vmem>>, vector<1x1x128xf32>
    %95 = vector.shape_cast %94 : vector<1x1x128xf32> to vector<1x128xf32>
    %cst_46 = arith.constant dense<0.000000e+00> : vector<128xf32>
    %96 = vector.multi_reduction <add>, %91, %cst_46 [0] : vector<32x128xf32> to vector<128xf32>
    %97 = vector.shape_cast %96 : vector<128xf32> to vector<1x128xf32>
    %cst_47 = arith.constant 3.200000e+01 : f32
    %98 = vector.broadcast %cst_47 : f32 to vector<1x128xf32>
    %99 = arith.divf %97, %98 : vector<1x128xf32>
    %100 = vector.broadcast %99 : vector<1x128xf32> to vector<32x128xf32>
    %101 = arith.subf %91, %100 : vector<32x128xf32>
    %102 = arith.mulf %101, %101 : vector<32x128xf32>
    %cst_48 = arith.constant dense<0.000000e+00> : vector<128xf32>
    %103 = vector.multi_reduction <add>, %102, %cst_48 [0] : vector<32x128xf32> to vector<128xf32>
    %104 = vector.shape_cast %103 : vector<128xf32> to vector<1x128xf32>
    %cst_49 = arith.constant 3.200000e+01 : f32
    %105 = vector.broadcast %cst_49 : f32 to vector<1x128xf32>
    %106 = arith.divf %104, %105 : vector<1x128xf32>
    %cst_50 = arith.constant 9.99999974E-6 : f32
    %107 = vector.broadcast %cst_50 : f32 to vector<1x128xf32>
    %108 = arith.addf %106, %107 : vector<1x128xf32>
    %109 = math.rsqrt %108 : vector<1x128xf32>
    %110 = arith.mulf %93, %109 : vector<1x128xf32>
    %111 = vector.broadcast %110 : vector<1x128xf32> to vector<32x128xf32>
    %112 = arith.mulf %101, %111 : vector<32x128xf32>
    %113 = vector.broadcast %95 : vector<1x128xf32> to vector<32x128xf32>
    %114 = arith.addf %112, %113 : vector<32x128xf32>
    %cst_51 = arith.constant 0.000000e+00 : f32
    %115 = vector.broadcast %cst_51 : f32 to vector<32x128xf32>
    %116 = arith.maximumf %114, %115 : vector<32x128xf32>
    %117 = arith.addf %116, %27 : vector<32x128xf32>
    %118 = vector.broadcast %18 : vector<32x1xf32> to vector<32x128xf32>
    %119 = arith.mulf %117, %118 : vector<32x128xf32>
    %c2_i32 = arith.constant 2 : i32
    %120 = vector.broadcast %c2_i32 : i32 to vector<32x1xi32>
    %121 = arith.cmpi sge, %15, %120 : vector<32x1xi32>
    %c14_i32 = arith.constant 14 : i32
    %122 = vector.broadcast %c14_i32 : i32 to vector<32x1xi32>
    %123 = arith.cmpi slt, %15, %122 : vector<32x1xi32>
    %124 = arith.andi %121, %123 : vector<32x1xi1>
    %125 = arith.extui %124 : vector<32x1xi1> to vector<32x1xi32>
    %126 = arith.sitofp %125 : vector<32x1xi32> to vector<32x1xf32>
    %c2_i32_52 = arith.constant 2 : i32
    %127 = tpu.dynamic_rotate %119 by %c2_i32_52 dim 0 : vector<32x128xf32>, i32 -> vector<32x128xf32>
    %c32_i32_53 = arith.constant 32 : i32
    %128 = tpu.dynamic_rotate %119 by %c32_i32_53 dim 1 : vector<32x128xf32>, i32 -> vector<32x128xf32>
    %129 = arith.addf %127, %128 : vector<32x128xf32>
    %c30_i32 = arith.constant 30 : i32
    %130 = tpu.dynamic_rotate %119 by %c30_i32 dim 0 : vector<32x128xf32>, i32 -> vector<32x128xf32>
    %c64_i32_54 = arith.constant 64 : i32
    %131 = tpu.dynamic_rotate %130 by %c64_i32_54 dim 1 : vector<32x128xf32>, i32 -> vector<32x128xf32>
    %132 = arith.addf %129, %131 : vector<32x128xf32>
    %133 = arith.truncf %132 : vector<32x128xf32> to vector<32x128xbf16>
    %c2 = arith.constant 2 : index
    %c0_55 = arith.constant 0 : index
    %c0_56 = arith.constant 0 : index
    %134 = vector.load %arg4[%c2, %c0_55, %c0_56] : memref<8x128x128xbf16, #tpu.memory_space<vmem>>, vector<1x128x128xbf16>
    %135 = vector.shape_cast %134 : vector<1x128x128xbf16> to vector<128x128xbf16>
    %cst_57 = arith.constant dense<0.000000e+00> : vector<32x128xf32>
    %136 = tpu.matmul %133, %135, %cst_57 {dimension_numbers = #tpu.dot_dimension_numbers<[1], [0], [0], [1], [0, 0, 1, 1], [], []>} : vector<32x128xbf16>, vector<128x128xbf16>, vector<32x128xf32> -> vector<32x128xf32>
    %c2_58 = arith.constant 2 : index
    %c0_59 = arith.constant 0 : index
    %c0_60 = arith.constant 0 : index
    %137 = vector.load %arg5[%c2_58, %c0_59, %c0_60] : memref<8x1x128xf32, #tpu.memory_space<vmem>>, vector<1x1x128xf32>
    %138 = vector.shape_cast %137 : vector<1x1x128xf32> to vector<1x128xf32>
    %139 = vector.broadcast %138 : vector<1x128xf32> to vector<32x128xf32>
    %140 = arith.addf %136, %139 : vector<32x128xf32>
    %141 = vector.broadcast %126 : vector<32x1xf32> to vector<32x128xf32>
    %142 = arith.mulf %140, %141 : vector<32x128xf32>
    %c2_61 = arith.constant 2 : index
    %c0_62 = arith.constant 0 : index
    %c0_63 = arith.constant 0 : index
    %143 = vector.load %arg6[%c2_61, %c0_62, %c0_63] : memref<8x1x128xf32, #tpu.memory_space<vmem>>, vector<1x1x128xf32>
    %144 = vector.shape_cast %143 : vector<1x1x128xf32> to vector<1x128xf32>
    %c2_64 = arith.constant 2 : index
    %c0_65 = arith.constant 0 : index
    %c0_66 = arith.constant 0 : index
    %145 = vector.load %arg7[%c2_64, %c0_65, %c0_66] : memref<8x1x128xf32, #tpu.memory_space<vmem>>, vector<1x1x128xf32>
    %146 = vector.shape_cast %145 : vector<1x1x128xf32> to vector<1x128xf32>
    %cst_67 = arith.constant dense<0.000000e+00> : vector<128xf32>
    %147 = vector.multi_reduction <add>, %142, %cst_67 [0] : vector<32x128xf32> to vector<128xf32>
    %148 = vector.shape_cast %147 : vector<128xf32> to vector<1x128xf32>
    %cst_68 = arith.constant 3.200000e+01 : f32
    %149 = vector.broadcast %cst_68 : f32 to vector<1x128xf32>
    %150 = arith.divf %148, %149 : vector<1x128xf32>
    %151 = vector.broadcast %150 : vector<1x128xf32> to vector<32x128xf32>
    %152 = arith.subf %142, %151 : vector<32x128xf32>
    %153 = arith.mulf %152, %152 : vector<32x128xf32>
    %cst_69 = arith.constant dense<0.000000e+00> : vector<128xf32>
    %154 = vector.multi_reduction <add>, %153, %cst_69 [0] : vector<32x128xf32> to vector<128xf32>
    %155 = vector.shape_cast %154 : vector<128xf32> to vector<1x128xf32>
    %cst_70 = arith.constant 3.200000e+01 : f32
    %156 = vector.broadcast %cst_70 : f32 to vector<1x128xf32>
    %157 = arith.divf %155, %156 : vector<1x128xf32>
    %cst_71 = arith.constant 9.99999974E-6 : f32
    %158 = vector.broadcast %cst_71 : f32 to vector<1x128xf32>
    %159 = arith.addf %157, %158 : vector<1x128xf32>
    %160 = math.rsqrt %159 : vector<1x128xf32>
    %161 = arith.mulf %144, %160 : vector<1x128xf32>
    %162 = vector.broadcast %161 : vector<1x128xf32> to vector<32x128xf32>
    %163 = arith.mulf %152, %162 : vector<32x128xf32>
    %164 = vector.broadcast %146 : vector<1x128xf32> to vector<32x128xf32>
    %165 = arith.addf %163, %164 : vector<32x128xf32>
    %cst_72 = arith.constant 0.000000e+00 : f32
    %166 = vector.broadcast %cst_72 : f32 to vector<32x128xf32>
    %167 = arith.maximumf %165, %166 : vector<32x128xf32>
    %c2_i32_73 = arith.constant 2 : i32
    %168 = tpu.dynamic_rotate %167 by %c2_i32_73 dim 0 : vector<32x128xf32>, i32 -> vector<32x128xf32>
    %c32_i32_74 = arith.constant 32 : i32
    %169 = tpu.dynamic_rotate %167 by %c32_i32_74 dim 1 : vector<32x128xf32>, i32 -> vector<32x128xf32>
    %170 = arith.addf %168, %169 : vector<32x128xf32>
    %c30_i32_75 = arith.constant 30 : i32
    %171 = tpu.dynamic_rotate %167 by %c30_i32_75 dim 0 : vector<32x128xf32>, i32 -> vector<32x128xf32>
    %c64_i32_76 = arith.constant 64 : i32
    %172 = tpu.dynamic_rotate %171 by %c64_i32_76 dim 1 : vector<32x128xf32>, i32 -> vector<32x128xf32>
    %173 = arith.addf %170, %172 : vector<32x128xf32>
    %174 = arith.truncf %173 : vector<32x128xf32> to vector<32x128xbf16>
    %c3 = arith.constant 3 : index
    %c0_77 = arith.constant 0 : index
    %c0_78 = arith.constant 0 : index
    %175 = vector.load %arg4[%c3, %c0_77, %c0_78] : memref<8x128x128xbf16, #tpu.memory_space<vmem>>, vector<1x128x128xbf16>
    %176 = vector.shape_cast %175 : vector<1x128x128xbf16> to vector<128x128xbf16>
    %cst_79 = arith.constant dense<0.000000e+00> : vector<32x128xf32>
    %177 = tpu.matmul %174, %176, %cst_79 {dimension_numbers = #tpu.dot_dimension_numbers<[1], [0], [0], [1], [0, 0, 1, 1], [], []>} : vector<32x128xbf16>, vector<128x128xbf16>, vector<32x128xf32> -> vector<32x128xf32>
    %c3_80 = arith.constant 3 : index
    %c0_81 = arith.constant 0 : index
    %c0_82 = arith.constant 0 : index
    %178 = vector.load %arg5[%c3_80, %c0_81, %c0_82] : memref<8x1x128xf32, #tpu.memory_space<vmem>>, vector<1x1x128xf32>
    %179 = vector.shape_cast %178 : vector<1x1x128xf32> to vector<1x128xf32>
    %180 = vector.broadcast %179 : vector<1x128xf32> to vector<32x128xf32>
    %181 = arith.addf %177, %180 : vector<32x128xf32>
    %182 = vector.broadcast %126 : vector<32x1xf32> to vector<32x128xf32>
    %183 = arith.mulf %181, %182 : vector<32x128xf32>
    %c3_83 = arith.constant 3 : index
    %c0_84 = arith.constant 0 : index
    %c0_85 = arith.constant 0 : index
    %184 = vector.load %arg6[%c3_83, %c0_84, %c0_85] : memref<8x1x128xf32, #tpu.memory_space<vmem>>, vector<1x1x128xf32>
    %185 = vector.shape_cast %184 : vector<1x1x128xf32> to vector<1x128xf32>
    %c3_86 = arith.constant 3 : index
    %c0_87 = arith.constant 0 : index
    %c0_88 = arith.constant 0 : index
    %186 = vector.load %arg7[%c3_86, %c0_87, %c0_88] : memref<8x1x128xf32, #tpu.memory_space<vmem>>, vector<1x1x128xf32>
    %187 = vector.shape_cast %186 : vector<1x1x128xf32> to vector<1x128xf32>
    %cst_89 = arith.constant dense<0.000000e+00> : vector<128xf32>
    %188 = vector.multi_reduction <add>, %183, %cst_89 [0] : vector<32x128xf32> to vector<128xf32>
    %189 = vector.shape_cast %188 : vector<128xf32> to vector<1x128xf32>
    %cst_90 = arith.constant 3.200000e+01 : f32
    %190 = vector.broadcast %cst_90 : f32 to vector<1x128xf32>
    %191 = arith.divf %189, %190 : vector<1x128xf32>
    %192 = vector.broadcast %191 : vector<1x128xf32> to vector<32x128xf32>
    %193 = arith.subf %183, %192 : vector<32x128xf32>
    %194 = arith.mulf %193, %193 : vector<32x128xf32>
    %cst_91 = arith.constant dense<0.000000e+00> : vector<128xf32>
    %195 = vector.multi_reduction <add>, %194, %cst_91 [0] : vector<32x128xf32> to vector<128xf32>
    %196 = vector.shape_cast %195 : vector<128xf32> to vector<1x128xf32>
    %cst_92 = arith.constant 3.200000e+01 : f32
    %197 = vector.broadcast %cst_92 : f32 to vector<1x128xf32>
    %198 = arith.divf %196, %197 : vector<1x128xf32>
    %cst_93 = arith.constant 9.99999974E-6 : f32
    %199 = vector.broadcast %cst_93 : f32 to vector<1x128xf32>
    %200 = arith.addf %198, %199 : vector<1x128xf32>
    %201 = math.rsqrt %200 : vector<1x128xf32>
    %202 = arith.mulf %185, %201 : vector<1x128xf32>
    %203 = vector.broadcast %202 : vector<1x128xf32> to vector<32x128xf32>
    %204 = arith.mulf %193, %203 : vector<32x128xf32>
    %205 = vector.broadcast %187 : vector<1x128xf32> to vector<32x128xf32>
    %206 = arith.addf %204, %205 : vector<32x128xf32>
    %cst_94 = arith.constant 0.000000e+00 : f32
    %207 = vector.broadcast %cst_94 : f32 to vector<32x128xf32>
    %208 = arith.maximumf %206, %207 : vector<32x128xf32>
    %209 = arith.addf %208, %119 : vector<32x128xf32>
    %210 = vector.broadcast %18 : vector<32x1xf32> to vector<32x128xf32>
    %211 = arith.mulf %209, %210 : vector<32x128xf32>
    %c4_i32 = arith.constant 4 : i32
    %212 = vector.broadcast %c4_i32 : i32 to vector<32x1xi32>
    %213 = arith.cmpi sge, %15, %212 : vector<32x1xi32>
    %c12_i32 = arith.constant 12 : i32
    %214 = vector.broadcast %c12_i32 : i32 to vector<32x1xi32>
    %215 = arith.cmpi slt, %15, %214 : vector<32x1xi32>
    %216 = arith.andi %213, %215 : vector<32x1xi1>
    %217 = arith.extui %216 : vector<32x1xi1> to vector<32x1xi32>
    %218 = arith.sitofp %217 : vector<32x1xi32> to vector<32x1xf32>
    %c4_i32_95 = arith.constant 4 : i32
    %219 = tpu.dynamic_rotate %211 by %c4_i32_95 dim 0 : vector<32x128xf32>, i32 -> vector<32x128xf32>
    %c32_i32_96 = arith.constant 32 : i32
    %220 = tpu.dynamic_rotate %211 by %c32_i32_96 dim 1 : vector<32x128xf32>, i32 -> vector<32x128xf32>
    %221 = arith.addf %219, %220 : vector<32x128xf32>
    %c28_i32 = arith.constant 28 : i32
    %222 = tpu.dynamic_rotate %211 by %c28_i32 dim 0 : vector<32x128xf32>, i32 -> vector<32x128xf32>
    %c64_i32_97 = arith.constant 64 : i32
    %223 = tpu.dynamic_rotate %222 by %c64_i32_97 dim 1 : vector<32x128xf32>, i32 -> vector<32x128xf32>
    %224 = arith.addf %221, %223 : vector<32x128xf32>
    %225 = arith.truncf %224 : vector<32x128xf32> to vector<32x128xbf16>
    %c4 = arith.constant 4 : index
    %c0_98 = arith.constant 0 : index
    %c0_99 = arith.constant 0 : index
    %226 = vector.load %arg4[%c4, %c0_98, %c0_99] : memref<8x128x128xbf16, #tpu.memory_space<vmem>>, vector<1x128x128xbf16>
    %227 = vector.shape_cast %226 : vector<1x128x128xbf16> to vector<128x128xbf16>
    %cst_100 = arith.constant dense<0.000000e+00> : vector<32x128xf32>
    %228 = tpu.matmul %225, %227, %cst_100 {dimension_numbers = #tpu.dot_dimension_numbers<[1], [0], [0], [1], [0, 0, 1, 1], [], []>} : vector<32x128xbf16>, vector<128x128xbf16>, vector<32x128xf32> -> vector<32x128xf32>
    %c4_101 = arith.constant 4 : index
    %c0_102 = arith.constant 0 : index
    %c0_103 = arith.constant 0 : index
    %229 = vector.load %arg5[%c4_101, %c0_102, %c0_103] : memref<8x1x128xf32, #tpu.memory_space<vmem>>, vector<1x1x128xf32>
    %230 = vector.shape_cast %229 : vector<1x1x128xf32> to vector<1x128xf32>
    %231 = vector.broadcast %230 : vector<1x128xf32> to vector<32x128xf32>
    %232 = arith.addf %228, %231 : vector<32x128xf32>
    %233 = vector.broadcast %218 : vector<32x1xf32> to vector<32x128xf32>
    %234 = arith.mulf %232, %233 : vector<32x128xf32>
    %c4_104 = arith.constant 4 : index
    %c0_105 = arith.constant 0 : index
    %c0_106 = arith.constant 0 : index
    %235 = vector.load %arg6[%c4_104, %c0_105, %c0_106] : memref<8x1x128xf32, #tpu.memory_space<vmem>>, vector<1x1x128xf32>
    %236 = vector.shape_cast %235 : vector<1x1x128xf32> to vector<1x128xf32>
    %c4_107 = arith.constant 4 : index
    %c0_108 = arith.constant 0 : index
    %c0_109 = arith.constant 0 : index
    %237 = vector.load %arg7[%c4_107, %c0_108, %c0_109] : memref<8x1x128xf32, #tpu.memory_space<vmem>>, vector<1x1x128xf32>
    %238 = vector.shape_cast %237 : vector<1x1x128xf32> to vector<1x128xf32>
    %cst_110 = arith.constant dense<0.000000e+00> : vector<128xf32>
    %239 = vector.multi_reduction <add>, %234, %cst_110 [0] : vector<32x128xf32> to vector<128xf32>
    %240 = vector.shape_cast %239 : vector<128xf32> to vector<1x128xf32>
    %cst_111 = arith.constant 3.200000e+01 : f32
    %241 = vector.broadcast %cst_111 : f32 to vector<1x128xf32>
    %242 = arith.divf %240, %241 : vector<1x128xf32>
    %243 = vector.broadcast %242 : vector<1x128xf32> to vector<32x128xf32>
    %244 = arith.subf %234, %243 : vector<32x128xf32>
    %245 = arith.mulf %244, %244 : vector<32x128xf32>
    %cst_112 = arith.constant dense<0.000000e+00> : vector<128xf32>
    %246 = vector.multi_reduction <add>, %245, %cst_112 [0] : vector<32x128xf32> to vector<128xf32>
    %247 = vector.shape_cast %246 : vector<128xf32> to vector<1x128xf32>
    %cst_113 = arith.constant 3.200000e+01 : f32
    %248 = vector.broadcast %cst_113 : f32 to vector<1x128xf32>
    %249 = arith.divf %247, %248 : vector<1x128xf32>
    %cst_114 = arith.constant 9.99999974E-6 : f32
    %250 = vector.broadcast %cst_114 : f32 to vector<1x128xf32>
    %251 = arith.addf %249, %250 : vector<1x128xf32>
    %252 = math.rsqrt %251 : vector<1x128xf32>
    %253 = arith.mulf %236, %252 : vector<1x128xf32>
    %254 = vector.broadcast %253 : vector<1x128xf32> to vector<32x128xf32>
    %255 = arith.mulf %244, %254 : vector<32x128xf32>
    %256 = vector.broadcast %238 : vector<1x128xf32> to vector<32x128xf32>
    %257 = arith.addf %255, %256 : vector<32x128xf32>
    %cst_115 = arith.constant 0.000000e+00 : f32
    %258 = vector.broadcast %cst_115 : f32 to vector<32x128xf32>
    %259 = arith.maximumf %257, %258 : vector<32x128xf32>
    %c4_i32_116 = arith.constant 4 : i32
    %260 = tpu.dynamic_rotate %259 by %c4_i32_116 dim 0 : vector<32x128xf32>, i32 -> vector<32x128xf32>
    %c32_i32_117 = arith.constant 32 : i32
    %261 = tpu.dynamic_rotate %259 by %c32_i32_117 dim 1 : vector<32x128xf32>, i32 -> vector<32x128xf32>
    %262 = arith.addf %260, %261 : vector<32x128xf32>
    %c28_i32_118 = arith.constant 28 : i32
    %263 = tpu.dynamic_rotate %259 by %c28_i32_118 dim 0 : vector<32x128xf32>, i32 -> vector<32x128xf32>
    %c64_i32_119 = arith.constant 64 : i32
    %264 = tpu.dynamic_rotate %263 by %c64_i32_119 dim 1 : vector<32x128xf32>, i32 -> vector<32x128xf32>
    %265 = arith.addf %262, %264 : vector<32x128xf32>
    %266 = arith.truncf %265 : vector<32x128xf32> to vector<32x128xbf16>
    %c5 = arith.constant 5 : index
    %c0_120 = arith.constant 0 : index
    %c0_121 = arith.constant 0 : index
    %267 = vector.load %arg4[%c5, %c0_120, %c0_121] : memref<8x128x128xbf16, #tpu.memory_space<vmem>>, vector<1x128x128xbf16>
    %268 = vector.shape_cast %267 : vector<1x128x128xbf16> to vector<128x128xbf16>
    %cst_122 = arith.constant dense<0.000000e+00> : vector<32x128xf32>
    %269 = tpu.matmul %266, %268, %cst_122 {dimension_numbers = #tpu.dot_dimension_numbers<[1], [0], [0], [1], [0, 0, 1, 1], [], []>} : vector<32x128xbf16>, vector<128x128xbf16>, vector<32x128xf32> -> vector<32x128xf32>
    %c5_123 = arith.constant 5 : index
    %c0_124 = arith.constant 0 : index
    %c0_125 = arith.constant 0 : index
    %270 = vector.load %arg5[%c5_123, %c0_124, %c0_125] : memref<8x1x128xf32, #tpu.memory_space<vmem>>, vector<1x1x128xf32>
    %271 = vector.shape_cast %270 : vector<1x1x128xf32> to vector<1x128xf32>
    %272 = vector.broadcast %271 : vector<1x128xf32> to vector<32x128xf32>
    %273 = arith.addf %269, %272 : vector<32x128xf32>
    %274 = vector.broadcast %218 : vector<32x1xf32> to vector<32x128xf32>
    %275 = arith.mulf %273, %274 : vector<32x128xf32>
    %c5_126 = arith.constant 5 : index
    %c0_127 = arith.constant 0 : index
    %c0_128 = arith.constant 0 : index
    %276 = vector.load %arg6[%c5_126, %c0_127, %c0_128] : memref<8x1x128xf32, #tpu.memory_space<vmem>>, vector<1x1x128xf32>
    %277 = vector.shape_cast %276 : vector<1x1x128xf32> to vector<1x128xf32>
    %c5_129 = arith.constant 5 : index
    %c0_130 = arith.constant 0 : index
    %c0_131 = arith.constant 0 : index
    %278 = vector.load %arg7[%c5_129, %c0_130, %c0_131] : memref<8x1x128xf32, #tpu.memory_space<vmem>>, vector<1x1x128xf32>
    %279 = vector.shape_cast %278 : vector<1x1x128xf32> to vector<1x128xf32>
    %cst_132 = arith.constant dense<0.000000e+00> : vector<128xf32>
    %280 = vector.multi_reduction <add>, %275, %cst_132 [0] : vector<32x128xf32> to vector<128xf32>
    %281 = vector.shape_cast %280 : vector<128xf32> to vector<1x128xf32>
    %cst_133 = arith.constant 3.200000e+01 : f32
    %282 = vector.broadcast %cst_133 : f32 to vector<1x128xf32>
    %283 = arith.divf %281, %282 : vector<1x128xf32>
    %284 = vector.broadcast %283 : vector<1x128xf32> to vector<32x128xf32>
    %285 = arith.subf %275, %284 : vector<32x128xf32>
    %286 = arith.mulf %285, %285 : vector<32x128xf32>
    %cst_134 = arith.constant dense<0.000000e+00> : vector<128xf32>
    %287 = vector.multi_reduction <add>, %286, %cst_134 [0] : vector<32x128xf32> to vector<128xf32>
    %288 = vector.shape_cast %287 : vector<128xf32> to vector<1x128xf32>
    %cst_135 = arith.constant 3.200000e+01 : f32
    %289 = vector.broadcast %cst_135 : f32 to vector<1x128xf32>
    %290 = arith.divf %288, %289 : vector<1x128xf32>
    %cst_136 = arith.constant 9.99999974E-6 : f32
    %291 = vector.broadcast %cst_136 : f32 to vector<1x128xf32>
    %292 = arith.addf %290, %291 : vector<1x128xf32>
    %293 = math.rsqrt %292 : vector<1x128xf32>
    %294 = arith.mulf %277, %293 : vector<1x128xf32>
    %295 = vector.broadcast %294 : vector<1x128xf32> to vector<32x128xf32>
    %296 = arith.mulf %285, %295 : vector<32x128xf32>
    %297 = vector.broadcast %279 : vector<1x128xf32> to vector<32x128xf32>
    %298 = arith.addf %296, %297 : vector<32x128xf32>
    %cst_137 = arith.constant 0.000000e+00 : f32
    %299 = vector.broadcast %cst_137 : f32 to vector<32x128xf32>
    %300 = arith.maximumf %298, %299 : vector<32x128xf32>
    %301 = arith.addf %300, %211 : vector<32x128xf32>
    %302 = vector.broadcast %18 : vector<32x1xf32> to vector<32x128xf32>
    %303 = arith.mulf %301, %302 : vector<32x128xf32>
    %c1_i32_138 = arith.constant 1 : i32
    %304 = vector.broadcast %c1_i32_138 : i32 to vector<32x1xi32>
    %305 = arith.cmpi sge, %15, %304 : vector<32x1xi32>
    %c15_i32_139 = arith.constant 15 : i32
    %306 = vector.broadcast %c15_i32_139 : i32 to vector<32x1xi32>
    %307 = arith.cmpi slt, %15, %306 : vector<32x1xi32>
    %308 = arith.andi %305, %307 : vector<32x1xi1>
    %309 = arith.extui %308 : vector<32x1xi1> to vector<32x1xi32>
    %310 = arith.sitofp %309 : vector<32x1xi32> to vector<32x1xf32>
    %c1_i32_140 = arith.constant 1 : i32
    %311 = tpu.dynamic_rotate %303 by %c1_i32_140 dim 0 : vector<32x128xf32>, i32 -> vector<32x128xf32>
    %c32_i32_141 = arith.constant 32 : i32
    %312 = tpu.dynamic_rotate %303 by %c32_i32_141 dim 1 : vector<32x128xf32>, i32 -> vector<32x128xf32>
    %313 = arith.addf %311, %312 : vector<32x128xf32>
    %c31_i32_142 = arith.constant 31 : i32
    %314 = tpu.dynamic_rotate %303 by %c31_i32_142 dim 0 : vector<32x128xf32>, i32 -> vector<32x128xf32>
    %c64_i32_143 = arith.constant 64 : i32
    %315 = tpu.dynamic_rotate %314 by %c64_i32_143 dim 1 : vector<32x128xf32>, i32 -> vector<32x128xf32>
    %316 = arith.addf %313, %315 : vector<32x128xf32>
    %317 = arith.truncf %316 : vector<32x128xf32> to vector<32x128xbf16>
    %c6 = arith.constant 6 : index
    %c0_144 = arith.constant 0 : index
    %c0_145 = arith.constant 0 : index
    %318 = vector.load %arg4[%c6, %c0_144, %c0_145] : memref<8x128x128xbf16, #tpu.memory_space<vmem>>, vector<1x128x128xbf16>
    %319 = vector.shape_cast %318 : vector<1x128x128xbf16> to vector<128x128xbf16>
    %cst_146 = arith.constant dense<0.000000e+00> : vector<32x128xf32>
    %320 = tpu.matmul %317, %319, %cst_146 {dimension_numbers = #tpu.dot_dimension_numbers<[1], [0], [0], [1], [0, 0, 1, 1], [], []>} : vector<32x128xbf16>, vector<128x128xbf16>, vector<32x128xf32> -> vector<32x128xf32>
    %c6_147 = arith.constant 6 : index
    %c0_148 = arith.constant 0 : index
    %c0_149 = arith.constant 0 : index
    %321 = vector.load %arg5[%c6_147, %c0_148, %c0_149] : memref<8x1x128xf32, #tpu.memory_space<vmem>>, vector<1x1x128xf32>
    %322 = vector.shape_cast %321 : vector<1x1x128xf32> to vector<1x128xf32>
    %323 = vector.broadcast %322 : vector<1x128xf32> to vector<32x128xf32>
    %324 = arith.addf %320, %323 : vector<32x128xf32>
    %325 = vector.broadcast %310 : vector<32x1xf32> to vector<32x128xf32>
    %326 = arith.mulf %324, %325 : vector<32x128xf32>
    %c6_150 = arith.constant 6 : index
    %c0_151 = arith.constant 0 : index
    %c0_152 = arith.constant 0 : index
    %327 = vector.load %arg6[%c6_150, %c0_151, %c0_152] : memref<8x1x128xf32, #tpu.memory_space<vmem>>, vector<1x1x128xf32>
    %328 = vector.shape_cast %327 : vector<1x1x128xf32> to vector<1x128xf32>
    %c6_153 = arith.constant 6 : index
    %c0_154 = arith.constant 0 : index
    %c0_155 = arith.constant 0 : index
    %329 = vector.load %arg7[%c6_153, %c0_154, %c0_155] : memref<8x1x128xf32, #tpu.memory_space<vmem>>, vector<1x1x128xf32>
    %330 = vector.shape_cast %329 : vector<1x1x128xf32> to vector<1x128xf32>
    %cst_156 = arith.constant dense<0.000000e+00> : vector<128xf32>
    %331 = vector.multi_reduction <add>, %326, %cst_156 [0] : vector<32x128xf32> to vector<128xf32>
    %332 = vector.shape_cast %331 : vector<128xf32> to vector<1x128xf32>
    %cst_157 = arith.constant 3.200000e+01 : f32
    %333 = vector.broadcast %cst_157 : f32 to vector<1x128xf32>
    %334 = arith.divf %332, %333 : vector<1x128xf32>
    %335 = vector.broadcast %334 : vector<1x128xf32> to vector<32x128xf32>
    %336 = arith.subf %326, %335 : vector<32x128xf32>
    %337 = arith.mulf %336, %336 : vector<32x128xf32>
    %cst_158 = arith.constant dense<0.000000e+00> : vector<128xf32>
    %338 = vector.multi_reduction <add>, %337, %cst_158 [0] : vector<32x128xf32> to vector<128xf32>
    %339 = vector.shape_cast %338 : vector<128xf32> to vector<1x128xf32>
    %cst_159 = arith.constant 3.200000e+01 : f32
    %340 = vector.broadcast %cst_159 : f32 to vector<1x128xf32>
    %341 = arith.divf %339, %340 : vector<1x128xf32>
    %cst_160 = arith.constant 9.99999974E-6 : f32
    %342 = vector.broadcast %cst_160 : f32 to vector<1x128xf32>
    %343 = arith.addf %341, %342 : vector<1x128xf32>
    %344 = math.rsqrt %343 : vector<1x128xf32>
    %345 = arith.mulf %328, %344 : vector<1x128xf32>
    %346 = vector.broadcast %345 : vector<1x128xf32> to vector<32x128xf32>
    %347 = arith.mulf %336, %346 : vector<32x128xf32>
    %348 = vector.broadcast %330 : vector<1x128xf32> to vector<32x128xf32>
    %349 = arith.addf %347, %348 : vector<32x128xf32>
    %cst_161 = arith.constant 0.000000e+00 : f32
    %350 = vector.broadcast %cst_161 : f32 to vector<32x128xf32>
    %351 = arith.maximumf %349, %350 : vector<32x128xf32>
    %c1_i32_162 = arith.constant 1 : i32
    %352 = tpu.dynamic_rotate %351 by %c1_i32_162 dim 0 : vector<32x128xf32>, i32 -> vector<32x128xf32>
    %c32_i32_163 = arith.constant 32 : i32
    %353 = tpu.dynamic_rotate %351 by %c32_i32_163 dim 1 : vector<32x128xf32>, i32 -> vector<32x128xf32>
    %354 = arith.addf %352, %353 : vector<32x128xf32>
    %c31_i32_164 = arith.constant 31 : i32
    %355 = tpu.dynamic_rotate %351 by %c31_i32_164 dim 0 : vector<32x128xf32>, i32 -> vector<32x128xf32>
    %c64_i32_165 = arith.constant 64 : i32
    %356 = tpu.dynamic_rotate %355 by %c64_i32_165 dim 1 : vector<32x128xf32>, i32 -> vector<32x128xf32>
    %357 = arith.addf %354, %356 : vector<32x128xf32>
    %358 = arith.truncf %357 : vector<32x128xf32> to vector<32x128xbf16>
    %c7 = arith.constant 7 : index
    %c0_166 = arith.constant 0 : index
    %c0_167 = arith.constant 0 : index
    %359 = vector.load %arg4[%c7, %c0_166, %c0_167] : memref<8x128x128xbf16, #tpu.memory_space<vmem>>, vector<1x128x128xbf16>
    %360 = vector.shape_cast %359 : vector<1x128x128xbf16> to vector<128x128xbf16>
    %cst_168 = arith.constant dense<0.000000e+00> : vector<32x128xf32>
    %361 = tpu.matmul %358, %360, %cst_168 {dimension_numbers = #tpu.dot_dimension_numbers<[1], [0], [0], [1], [0, 0, 1, 1], [], []>} : vector<32x128xbf16>, vector<128x128xbf16>, vector<32x128xf32> -> vector<32x128xf32>
    %c7_169 = arith.constant 7 : index
    %c0_170 = arith.constant 0 : index
    %c0_171 = arith.constant 0 : index
    %362 = vector.load %arg5[%c7_169, %c0_170, %c0_171] : memref<8x1x128xf32, #tpu.memory_space<vmem>>, vector<1x1x128xf32>
    %363 = vector.shape_cast %362 : vector<1x1x128xf32> to vector<1x128xf32>
    %364 = vector.broadcast %363 : vector<1x128xf32> to vector<32x128xf32>
    %365 = arith.addf %361, %364 : vector<32x128xf32>
    %366 = vector.broadcast %310 : vector<32x1xf32> to vector<32x128xf32>
    %367 = arith.mulf %365, %366 : vector<32x128xf32>
    %c7_172 = arith.constant 7 : index
    %c0_173 = arith.constant 0 : index
    %c0_174 = arith.constant 0 : index
    %368 = vector.load %arg6[%c7_172, %c0_173, %c0_174] : memref<8x1x128xf32, #tpu.memory_space<vmem>>, vector<1x1x128xf32>
    %369 = vector.shape_cast %368 : vector<1x1x128xf32> to vector<1x128xf32>
    %c7_175 = arith.constant 7 : index
    %c0_176 = arith.constant 0 : index
    %c0_177 = arith.constant 0 : index
    %370 = vector.load %arg7[%c7_175, %c0_176, %c0_177] : memref<8x1x128xf32, #tpu.memory_space<vmem>>, vector<1x1x128xf32>
    %371 = vector.shape_cast %370 : vector<1x1x128xf32> to vector<1x128xf32>
    %cst_178 = arith.constant dense<0.000000e+00> : vector<128xf32>
    %372 = vector.multi_reduction <add>, %367, %cst_178 [0] : vector<32x128xf32> to vector<128xf32>
    %373 = vector.shape_cast %372 : vector<128xf32> to vector<1x128xf32>
    %cst_179 = arith.constant 3.200000e+01 : f32
    %374 = vector.broadcast %cst_179 : f32 to vector<1x128xf32>
    %375 = arith.divf %373, %374 : vector<1x128xf32>
    %376 = vector.broadcast %375 : vector<1x128xf32> to vector<32x128xf32>
    %377 = arith.subf %367, %376 : vector<32x128xf32>
    %378 = arith.mulf %377, %377 : vector<32x128xf32>
    %cst_180 = arith.constant dense<0.000000e+00> : vector<128xf32>
    %379 = vector.multi_reduction <add>, %378, %cst_180 [0] : vector<32x128xf32> to vector<128xf32>
    %380 = vector.shape_cast %379 : vector<128xf32> to vector<1x128xf32>
    %cst_181 = arith.constant 3.200000e+01 : f32
    %381 = vector.broadcast %cst_181 : f32 to vector<1x128xf32>
    %382 = arith.divf %380, %381 : vector<1x128xf32>
    %cst_182 = arith.constant 9.99999974E-6 : f32
    %383 = vector.broadcast %cst_182 : f32 to vector<1x128xf32>
    %384 = arith.addf %382, %383 : vector<1x128xf32>
    %385 = math.rsqrt %384 : vector<1x128xf32>
    %386 = arith.mulf %369, %385 : vector<1x128xf32>
    %387 = vector.broadcast %386 : vector<1x128xf32> to vector<32x128xf32>
    %388 = arith.mulf %377, %387 : vector<32x128xf32>
    %389 = vector.broadcast %371 : vector<1x128xf32> to vector<32x128xf32>
    %390 = arith.addf %388, %389 : vector<32x128xf32>
    %cst_183 = arith.constant 0.000000e+00 : f32
    %391 = vector.broadcast %cst_183 : f32 to vector<32x128xf32>
    %392 = arith.maximumf %390, %391 : vector<32x128xf32>
    %393 = arith.addf %392, %303 : vector<32x128xf32>
    %394 = vector.broadcast %18 : vector<32x1xf32> to vector<32x128xf32>
    %395 = arith.mulf %393, %394 : vector<32x128xf32>
    %396 = arith.extf %0 : vector<32x128xbf16> to vector<32x128xf32>
    %397 = arith.addf %395, %396 : vector<32x128xf32>
    %398 = arith.truncf %397 : vector<32x128xf32> to vector<32x128xbf16>
    %c0_184 = arith.constant 0 : index
    %c0_185 = arith.constant 0 : index
    %399 = vector.load %arg8[%c0_184, %c0_185] : memref<128x128xbf16, #tpu.memory_space<vmem>>, vector<128x128xbf16>
    %c0_186 = arith.constant 0 : index
    %c0_187 = arith.constant 0 : index
    %400 = vector.load %arg9[%c0_186, %c0_187] : memref<1x128xf32, #tpu.memory_space<vmem>>, vector<1x128xf32>
    %cst_188 = arith.constant dense<0.000000e+00> : vector<32x128xf32>
    %401 = tpu.matmul %398, %399, %cst_188 {dimension_numbers = #tpu.dot_dimension_numbers<[1], [0], [0], [1], [0, 0, 1, 1], [], []>} : vector<32x128xbf16>, vector<128x128xbf16>, vector<32x128xf32> -> vector<32x128xf32>
    %402 = vector.broadcast %400 : vector<1x128xf32> to vector<32x128xf32>
    %403 = arith.addf %401, %402 : vector<32x128xf32>
    %cst_189 = arith.constant 0.000000e+00 : f32
    %404 = vector.broadcast %cst_189 : f32 to vector<32x128xf32>
    %405 = arith.maximumf %403, %404 : vector<32x128xf32>
    %c0_190 = arith.constant 0 : index
    %c0_191 = arith.constant 0 : index
    %406 = vector.load %arg10[%c0_190, %c0_191] : memref<1x128xf32, #tpu.memory_space<vmem>>, vector<1x128xf32>
    %c0_192 = arith.constant 0 : index
    %c0_193 = arith.constant 0 : index
    %407 = vector.load %arg11[%c0_192, %c0_193] : memref<1x128xf32, #tpu.memory_space<vmem>>, vector<1x128xf32>
    %cst_194 = arith.constant dense<0.000000e+00> : vector<128xf32>
    %408 = vector.multi_reduction <add>, %405, %cst_194 [0] : vector<32x128xf32> to vector<128xf32>
    %409 = vector.shape_cast %408 : vector<128xf32> to vector<1x128xf32>
    %cst_195 = arith.constant 3.200000e+01 : f32
    %410 = vector.broadcast %cst_195 : f32 to vector<1x128xf32>
    %411 = arith.divf %409, %410 : vector<1x128xf32>
    %412 = vector.broadcast %411 : vector<1x128xf32> to vector<32x128xf32>
    %413 = arith.subf %405, %412 : vector<32x128xf32>
    %414 = arith.mulf %413, %413 : vector<32x128xf32>
    %cst_196 = arith.constant dense<0.000000e+00> : vector<128xf32>
    %415 = vector.multi_reduction <add>, %414, %cst_196 [0] : vector<32x128xf32> to vector<128xf32>
    %416 = vector.shape_cast %415 : vector<128xf32> to vector<1x128xf32>
    %cst_197 = arith.constant 3.200000e+01 : f32
    %417 = vector.broadcast %cst_197 : f32 to vector<1x128xf32>
    %418 = arith.divf %416, %417 : vector<1x128xf32>
    %cst_198 = arith.constant 9.99999974E-6 : f32
    %419 = vector.broadcast %cst_198 : f32 to vector<1x128xf32>
    %420 = arith.addf %418, %419 : vector<1x128xf32>
    %421 = math.rsqrt %420 : vector<1x128xf32>
    %422 = arith.mulf %406, %421 : vector<1x128xf32>
    %423 = vector.broadcast %422 : vector<1x128xf32> to vector<32x128xf32>
    %424 = arith.mulf %413, %423 : vector<32x128xf32>
    %425 = vector.broadcast %407 : vector<1x128xf32> to vector<32x128xf32>
    %426 = arith.addf %424, %425 : vector<32x128xf32>
    %427 = arith.truncf %426 : vector<32x128xf32> to vector<32x128xbf16>
    %c0_199 = arith.constant 0 : index
    %c0_200 = arith.constant 0 : index
    %428 = vector.load %arg12[%c0_199, %c0_200] : memref<128x128xbf16, #tpu.memory_space<vmem>>, vector<128x128xbf16>
    %c0_201 = arith.constant 0 : index
    %c0_202 = arith.constant 0 : index
    %429 = vector.load %arg13[%c0_201, %c0_202] : memref<1x128xf32, #tpu.memory_space<vmem>>, vector<1x128xf32>
    %cst_203 = arith.constant dense<0.000000e+00> : vector<32x128xf32>
    %430 = tpu.matmul %427, %428, %cst_203 {dimension_numbers = #tpu.dot_dimension_numbers<[1], [0], [0], [1], [0, 0, 1, 1], [], []>} : vector<32x128xbf16>, vector<128x128xbf16>, vector<32x128xf32> -> vector<32x128xf32>
    %431 = vector.broadcast %429 : vector<1x128xf32> to vector<32x128xf32>
    %432 = arith.addf %430, %431 : vector<32x128xf32>
    %433 = vector.broadcast %18 : vector<32x1xf32> to vector<32x128xf32>
    %434 = arith.mulf %432, %433 : vector<32x128xf32>
    %c0_204 = arith.constant 0 : index
    %c0_205 = arith.constant 0 : index
    %435 = vector.load %arg14[%c0_204, %c0_205] : memref<32x128xf32, #tpu.memory_space<vmem>>, vector<32x128xf32>
    tpu.vector_store %arg14[%c0_204, %c0_205], %434 {strides = array<i32>} : memref<32x128xf32, #tpu.memory_space<vmem>>, vector<32x128xf32>,
    return
  }
}

</mosaic_0001>

<llo_original>
// kernel: tpu_custom_call.1
$region0: #{tpu_custom_call.1}
  #allocation0 [shape = 'u32[]', space=smem, size = 0x4, offset = 0x4, fixed_abs, tag = 'smem constant byte address 0x4 - core index']
  #allocation1 [shape = 'u32[144,128]{1,0:T(1,128)}', space=vmem, size = 0x12000, scoped, tag = 'internal scratch']
  %s0 = inlined_call_operand.hbm [shape: s32[2], index: 0, kind: input, shape index: {}]
  %s1 = inlined_call_operand.hbm [shape: bf16[32,128], index: 1, kind: input, shape index: {}]
  %s2 = inlined_call_operand.hbm [shape: bf16[128,128], index: 2, kind: input, shape index: {}]
  %s3 = inlined_call_operand.vmem [shape: f32[1,128], index: 3, kind: input, shape index: {}]
  %s4 = inlined_call_operand.hbm [shape: bf16[8,128,128], index: 4, kind: input, shape index: {}]
  %s5 = inlined_call_operand.vmem [shape: f32[8,1,128], index: 5, kind: input, shape index: {}]
  %s6 = inlined_call_operand.vmem [shape: f32[8,1,128], index: 6, kind: input, shape index: {}]
  %s7 = inlined_call_operand.vmem [shape: f32[8,1,128], index: 7, kind: input, shape index: {}]
  %s8 = inlined_call_operand.hbm [shape: bf16[128,128], index: 8, kind: input, shape index: {}]
  %s9 = inlined_call_operand.vmem [shape: f32[1,128], index: 9, kind: input, shape index: {}]
  %s10 = inlined_call_operand.vmem [shape: f32[1,128], index: 10, kind: input, shape index: {}]
  %s11 = inlined_call_operand.vmem [shape: f32[1,128], index: 11, kind: input, shape index: {}]
  %s12 = inlined_call_operand.hbm [shape: bf16[128,128], index: 12, kind: input, shape index: {}]
  %s13 = inlined_call_operand.vmem [shape: f32[1,128], index: 13, kind: input, shape index: {}]
  %s14 = inlined_call_operand.hbm [shape: f32[32,128], index: 14, kind: output, shape index: {}]
  %s15 = sld [smem:[#allocation0]]
  $region90: #{tpu_custom_call.1} parent=0
    _
  %s17 = ssub.s32 1, %s15
  %s18 = scalar_select 0, %s17, %s15
  $region1: #{tpu_custom_call.1} parent=0
    #allocation2 [shape = 'u8[512]{0}', space=smem, size = 0x200, scoped, tag = 'input window, operand 0, single buffered']
    #allocation3 [shape = 's32[1]{0}', space=sflag, size = 0x4, scoped, tag = 'scoped memory for tpu_custom_call.1']
    #allocation4 [shape = 's32[1]{0}', space=sflag, size = 0x4, scoped, tag = 'scoped memory for tpu_custom_call.1']
    #allocation5 [shape = 's32[1]{0}', space=sflag, size = 0x4, scoped, tag = 'scoped memory for tpu_custom_call.1']
    #allocation6 [shape = 'u8[8192]{0}', space=vmem, size = 0x2000, scoped, tag = 'input window, operand 1, single buffered']
    #allocation7 [shape = 'u8[32768]{0}', space=vmem, size = 0x8000, scoped, tag = 'input window, operand 2, single buffered']
    #allocation8 [shape = 's32[1]{0}', space=sflag, size = 0x4, scoped, tag = 'scoped memory for tpu_custom_call.1']
    #allocation9 [shape = 'u8[262144]{0}', space=vmem, size = 0x40000, scoped, tag = 'input window, operand 4, single buffered']
    #allocation10 [shape = 'u8[32768]{0}', space=vmem, size = 0x8000, scoped, tag = 'input window, operand 8, single buffered']
    #allocation11 [shape = 's32[1]{0}', space=sflag, size = 0x4, scoped, tag = 'scoped memory for tpu_custom_call.1']
    #allocation12 [shape = 'u8[32768]{0}', space=vmem, size = 0x8000, scoped, tag = 'input window, operand 12, single buffered']
    #allocation13 [shape = 'u8[16384]{0}', space=vmem, size = 0x4000, scoped, tag = 'output window, operand 0, single buffered']
    %19 = vsyncpa [#allocation5], 0
    %20 = vsyncpa [#allocation3], 0
    %21 = vsyncpa [#allocation8], 0
    %22 = vsyncpa [#allocation11], 0
    %23 = vsyncpa [#allocation4], 0
    // Predicated region
    $region2: #{tpu_custom_call.1} parent=1 // pred_check
      _
    $region3: #{tpu_custom_call.1} parent=1 // pred_check_branch
      %25 = sbr.rel (0) target = $region5
    $region4: #{tpu_custom_call.1} parent=1 // pred_region
      %s27 = ssub.s32 16, 16
      %28 = vsyncadd [#allocation5], %s27
      %31 = dma.hbm_to_smem %s0, 16, [#allocation2], [#allocation5]
    $region5: #{tpu_custom_call.1} parent=1 // pred_fallthru
      _
    // Predicated region
    $region6: #{tpu_custom_call.1} parent=1 // pred_check
      _
    $region7: #{tpu_custom_call.1} parent=1 // pred_check_branch
      %33 = sbr.rel (0) target = $region9
    $region8: #{tpu_custom_call.1} parent=1 // pred_region
      %s35 = ssub.s32 256, 256
      %36 = vsyncadd [#allocation3], %s35
      %s37 = sshll.u32 [#allocation6], 4
      %s38 = int_to_ptr.vmem [resolvable:$true] %s37
      %43 = dma.hbm_to_vmem [thread:$0]  %s1, 256, %s38, [#allocation3], 64, 64, 4
    $region9: #{tpu_custom_call.1} parent=1 // pred_fallthru
      _
    // Predicated region
    $region10: #{tpu_custom_call.1} parent=1 // pred_check
      _
    $region11: #{tpu_custom_call.1} parent=1 // pred_check_branch
      %45 = sbr.rel (0) target = $region13
    $region12: #{tpu_custom_call.1} parent=1 // pred_region
      %s47 = ssub.s32 1024, 1024
      %48 = vsyncadd [#allocation8], %s47
      %s49 = sshll.u32 [#allocation7], 4
      %s50 = int_to_ptr.vmem [resolvable:$true] %s49
      %55 = dma.hbm_to_vmem [thread:$0]  %s2, 1024, %s50, [#allocation8], 64, 64, 4
    $region13: #{tpu_custom_call.1} parent=1 // pred_fallthru
      _
    // Predicated region
    $region14: #{tpu_custom_call.1} parent=1 // pred_check
      _
    $region15: #{tpu_custom_call.1} parent=1 // pred_check_branch
      %57 = sbr.rel (0) target = $region17
    $region16: #{tpu_custom_call.1} parent=1 // pred_region
      _
    $region17: #{tpu_custom_call.1} parent=1 // pred_fallthru
      _
    // Predicated region
    $region18: #{tpu_custom_call.1} parent=1 // pred_check
      _
    $region19: #{tpu_custom_call.1} parent=1 // pred_check_branch
      %59 = sbr.rel (0) target = $region21
    $region20: #{tpu_custom_call.1} parent=1 // pred_region
      %s61 = ssub.s32 8192, 8192
      %62 = vsyncadd [#allocation8], %s61
      %s63 = sshll.u32 [#allocation9], 4
      %s64 = int_to_ptr.vmem [resolvable:$true] %s63
      %69 = dma.hbm_to_vmem [thread:$0]  %s4, 8192, %s64, [#allocation8], 64, 64, 4
    $region21: #{tpu_custom_call.1} parent=1 // pred_fallthru
      _
    // Predicated region
    $region22: #{tpu_custom_call.1} parent=1 // pred_check
      _
    $region23: #{tpu_custom_call.1} parent=1 // pred_check_branch
      %71 = sbr.rel (0) target = $region25
    $region24: #{tpu_custom_call.1} parent=1 // pred_region
      _
    $region25: #{tpu_custom_call.1} parent=1 // pred_fallthru
      _
    // Predicated region
    $region26: #{tpu_custom_call.1} parent=1 // pred_check
      _
    $region27: #{tpu_custom_call.1} parent=1 // pred_check_branch
      %73 = sbr.rel (0) target = $region29
    $region28: #{tpu_custom_call.1} parent=1 // pred_region
      _
    $region29: #{tpu_custom_call.1} parent=1 // pred_fallthru
      _
    // Predicated region
    $region30: #{tpu_custom_call.1} parent=1 // pred_check
      _
    $region31: #{tpu_custom_call.1} parent=1 // pred_check_branch
      %75 = sbr.rel (0) target = $region33
    $region32: #{tpu_custom_call.1} parent=1 // pred_region
      _
    $region33: #{tpu_custom_call.1} parent=1 // pred_fallthru
      _
    // Predicated region
    $region34: #{tpu_custom_call.1} parent=1 // pred_check
      _
    $region35: #{tpu_custom_call.1} parent=1 // pred_check_branch
      %77 = sbr.rel (0) target = $region37
    $region36: #{tpu_custom_call.1} parent=1 // pred_region
      %s79 = ssub.s32 1024, 1024
      %80 = vsyncadd [#allocation11], %s79
      %s81 = sshll.u32 [#allocation10], 4
      %s82 = int_to_ptr.vmem [resolvable:$true] %s81
      %87 = dma.hbm_to_vmem [thread:$0]  %s8, 1024, %s82, [#allocation11], 64, 64, 4
    $region37: #{tpu_custom_call.1} parent=1 // pred_fallthru
      _
    // Predicated region
    $region38: #{tpu_custom_call.1} parent=1 // pred_check
      _
    $region39: #{tpu_custom_call.1} parent=1 // pred_check_branch
      %89 = sbr.rel (0) target = $region41
    $region40: #{tpu_custom_call.1} parent=1 // pred_region
      _
    $region41: #{tpu_custom_call.1} parent=1 // pred_fallthru
      _
    // Predicated region
    $region42: #{tpu_custom_call.1} parent=1 // pred_check
      _
    $region43: #{tpu_custom_call.1} parent=1 // pred_check_branch
      %91 = sbr.rel (0) target = $region45
    $region44: #{tpu_custom_call.1} parent=1 // pred_region
      _
    $region45: #{tpu_custom_call.1} parent=1 // pred_fallthru
      _
    // Predicated region
    $region46: #{tpu_custom_call.1} parent=1 // pred_check
      _
    $region47: #{tpu_custom_call.1} parent=1 // pred_check_branch
      %93 = sbr.rel (0) target = $region49
    $region48: #{tpu_custom_call.1} parent=1 // pred_region
      _
    $region49: #{tpu_custom_call.1} parent=1 // pred_fallthru
      _
    // Predicated region
    $region50: #{tpu_custom_call.1} parent=1 // pred_check
      _
    $region51: #{tpu_custom_call.1} parent=1 // pred_check_branch
      %95 = sbr.rel (0) target = $region53
    $region52: #{tpu_custom_call.1} parent=1 // pred_region
      %s97 = ssub.s32 1024, 1024
      %98 = vsyncadd [#allocation11], %s97
      %s99 = sshll.u32 [#allocation12], 4
      %s100 = int_to_ptr.vmem [resolvable:$true] %s99
      %105 = dma.hbm_to_vmem [thread:$0]  %s12, 1024, %s100, [#allocation11], 64, 64, 4
    $region53: #{tpu_custom_call.1} parent=1 // pred_fallthru
      _
    // Predicated region
    $region54: #{tpu_custom_call.1} parent=1 // pred_check
      _
    $region55: #{tpu_custom_call.1} parent=1 // pred_check_branch
      %107 = sbr.rel (0) target = $region57
    $region56: #{tpu_custom_call.1} parent=1 // pred_region
      _
    $region57: #{tpu_custom_call.1} parent=1 // pred_fallthru
      _
    // Predicated region
    $region58: #{tpu_custom_call.1} parent=1 // pred_check
      _
    $region59: #{tpu_custom_call.1} parent=1 // pred_check_branch
      %109 = sbr.rel (0) target = $region61
    $region60: #{tpu_custom_call.1} parent=1 // pred_region
      %110 = dma.done [#allocation5], 16
    $region61: #{tpu_custom_call.1} parent=1 // pred_fallthru
      _
    // Predicated region
    $region62: #{tpu_custom_call.1} parent=1 // pred_check
      _
    $region63: #{tpu_custom_call.1} parent=1 // pred_check_branch
      %112 = sbr.rel (0) target = $region65
    $region64: #{tpu_custom_call.1} parent=1 // pred_region
      %113 = dma.done [#allocation3], 256
    $region65: #{tpu_custom_call.1} parent=1 // pred_fallthru
      _
    // Predicated region
    $region66: #{tpu_custom_call.1} parent=1 // pred_check
      _
    $region67: #{tpu_custom_call.1} parent=1 // pred_check_branch
      %115 = sbr.rel (0) target = $region69
    $region68: #{tpu_custom_call.1} parent=1 // pred_region
      %116 = dma.done [#allocation8], 1024
    $region69: #{tpu_custom_call.1} parent=1 // pred_fallthru
      _
    // Predicated region
    $region70: #{tpu_custom_call.1} parent=1 // pred_check
      _
    $region71: #{tpu_custom_call.1} parent=1 // pred_check_branch
      %118 = sbr.rel (0) target = $region73
    $region72: #{tpu_custom_call.1} parent=1 // pred_region
      %119 = dma.done [#allocation8], 8192
    $region73: #{tpu_custom_call.1} parent=1 // pred_fallthru
      _
    // Predicated region
    $region74: #{tpu_custom_call.1} parent=1 // pred_check
      _
    $region75: #{tpu_custom_call.1} parent=1 // pred_check_branch
      %121 = sbr.rel (0) target = $region77
    $region76: #{tpu_custom_call.1} parent=1 // pred_region
      %122 = dma.done [#allocation11], 1024
    $region77: #{tpu_custom_call.1} parent=1 // pred_fallthru
      _
    // Predicated region
    $region78: #{tpu_custom_call.1} parent=1 // pred_check
      _
    $region79: #{tpu_custom_call.1} parent=1 // pred_check_branch
      %124 = sbr.rel (0) target = $region81
    $region80: #{tpu_custom_call.1} parent=1 // pred_region
      %125 = dma.done [#allocation11], 1024
    $region81: #{tpu_custom_call.1} parent=1 // pred_fallthru
      _
    %126 = sfence
    %v128 = vld [vmem:[#allocation6] sm:$0xf]
    %v129 = vld [vmem:[#allocation6 + $0x4] sm:$0xf]
    %v130 = vld [vmem:[#allocation6 + $0x8] sm:$0xf]
    %v131 = vld [vmem:[#allocation6 + $0xc] sm:$0xf]
    %v132 = vlaneseq
    %v133 = vshrl.u32 %v132, 7
    %v134 = vadd.s32 %v133, 8
    %v135 = vadd.s32 %v133, 16
    %v136 = vadd.s32 %v133, 24
    %vm137 = vcmp.ge.s32.totalorder %v133, 0
    %vm138 = vcmp.ge.s32.totalorder %v134, 0
    %vm139 = vcmp.ge.s32.totalorder %v135, 0
    %vm140 = vcmp.ge.s32.totalorder %v136, 0
    %s141 = sld [smem:[#allocation2]]
    %v142 = vstv %s141
    %v143 = vsel %vm137, %v142, 0
    %v144 = vsel %vm138, %v142, 0
    %v145 = vsel %vm139, %v142, 0
    %v146 = vsel %vm140, %v142, 0
    %vm147 = vcmp.ge.s32.totalorder %v133, 16
    %vm148 = vcmp.ge.s32.totalorder %v134, 16
    %vm149 = vcmp.ge.s32.totalorder %v135, 16
    %vm150 = vcmp.ge.s32.totalorder %v136, 16
    %s151 = sld [smem:[#allocation2 + $0x1]]
    %v152 = vstv %s151
    %v153 = vsel %vm147, %v152, %v143
    %v154 = vsel %vm148, %v152, %v144
    %v155 = vsel %vm149, %v152, %v145
    %v156 = vsel %vm150, %v152, %v146
    %v157 = vsub.s32 %v133, 16
    %v158 = vsub.s32 %v134, 16
    %v159 = vsub.s32 %v136, 16
    %v160 = vsel %vm147, %v157, %v133
    %v161 = vsel %vm148, %v158, %v134
    %v162 = vsel %vm149, %v133, %v135
    %v163 = vsel %vm150, %v159, %v136
    %vm164 = vcmp.lt.s32.totalorder %v160, %v153
    %vm165 = vcmp.lt.s32.totalorder %v161, %v154
    %vm166 = vcmp.lt.s32.totalorder %v162, %v155
    %vm167 = vcmp.lt.s32.totalorder %v163, %v156
    %v168 = vsel %vm164, 1, 0
    %v169 = vsel %vm165, 1, 0
    %v170 = vsel %vm166, 1, 0
    %v171 = vsel %vm167, 1, 0
    %v172 = vcvt.s32.f32 %v168
    %v173 = vcvt.s32.f32 %v169
    %v174 = vcvt.s32.f32 %v170
    %v175 = vcvt.s32.f32 %v171
    %v176 = vld [vmem:[#allocation7] sm:$0xf]
    %v177 = vld [vmem:[#allocation7 + $0x4] sm:$0xf]
    %v178 = vld [vmem:[#allocation7 + $0x8] sm:$0xf]
    %v179 = vld [vmem:[#allocation7 + $0xc] sm:$0xf]
    %v180 = vld [vmem:[#allocation7 + $0x10] sm:$0xf]
    %v181 = vld [vmem:[#allocation7 + $0x14] sm:$0xf]
    %v182 = vld [vmem:[#allocation7 + $0x18] sm:$0xf]
    %v183 = vld [vmem:[#allocation7 + $0x1c] sm:$0xf]
    %v184 = vld [vmem:[#allocation7 + $0x20] sm:$0xf]
    %v185 = vld [vmem:[#allocation7 + $0x24] sm:$0xf]
    %v186 = vld [vmem:[#allocation7 + $0x28] sm:$0xf]
    %v187 = vld [vmem:[#allocation7 + $0x2c] sm:$0xf]
    %v188 = vld [vmem:[#allocation7 + $0x30] sm:$0xf]
    %v189 = vld [vmem:[#allocation7 + $0x34] sm:$0xf]
    %v190 = vld [vmem:[#allocation7 + $0x38] sm:$0xf]
    %v191 = vld [vmem:[#allocation7 + $0x3c] sm:$0xf]
    %v192 = vld [vmem:[%s3] sm:$0x1]
    %v194 = vlaneseq
    %v195 = vshrl.u32 %v194, 7
    %v196 = vsub.s32 0, %v195
    %v197 = vrot.slane %v192, %v196
    %v203 = vunpack.c.l.b16 %v128
    %v204 = vunpack.c.l.b16 %v129
    %v205 = vunpack.c.l.b16 %v130
    %v206 = vunpack.c.l.b16 %v131
    %v207 = vpack.c.b16 %v204, %v203
    %v208 = vpack.c.b16 %v206, %v205
    %v227 = vunpack.c.l.b16 %v176
    %v228 = vunpack.c.l.b16 %v177
    %v229 = vunpack.c.l.b16 %v178
    %v230 = vunpack.c.l.b16 %v179
    %v231 = vunpack.c.l.b16 %v180
    %v232 = vunpack.c.l.b16 %v181
    %v233 = vunpack.c.l.b16 %v182
    %v234 = vunpack.c.l.b16 %v183
    %v235 = vunpack.c.l.b16 %v184
    %v236 = vunpack.c.l.b16 %v185
    %v237 = vunpack.c.l.b16 %v186
    %v238 = vunpack.c.l.b16 %v187
    %v239 = vunpack.c.l.b16 %v188
    %v240 = vunpack.c.l.b16 %v189
    %v241 = vunpack.c.l.b16 %v190
    %v242 = vunpack.c.l.b16 %v191
    %v243 = vpack.c.b16 %v228, %v227
    %v244 = vpack.c.b16 %v230, %v229
    %v245 = vpack.c.b16 %v232, %v231
    %v246 = vpack.c.b16 %v234, %v233
    %v247 = vpack.c.b16 %v236, %v235
    %v248 = vpack.c.b16 %v238, %v237
    %v249 = vpack.c.b16 %v240, %v239
    %v250 = vpack.c.b16 %v242, %v241
    %259 = vmatprep.subr.bf16.mxu0 0
    %260 = vmatpush1.bf16.msra.mxu0 %v243
    %261 = vmatprep.subr.bf16.mxu0 0
    %262 = vmatpush1.bf16.msra.mxu0 %v244
    %263 = vmatprep.subr.bf16.mxu0 0
    %264 = vmatpush1.bf16.msra.mxu0 %v245
    %265 = vmatprep.subr.bf16.mxu0 0
    %266 = vmatpush1.bf16.msra.mxu0 %v246
    %267 = vmatprep.subr.bf16.mxu0 0
    %268 = vmatpush1.bf16.msra.mxu0 %v247
    %269 = vmatprep.subr.bf16.mxu0 0
    %270 = vmatpush1.bf16.msra.mxu0 %v248
    %271 = vmatprep.subr.bf16.mxu0 0
    %272 = vmatpush1.bf16.msra.mxu0 %v249
    %273 = vmatprep.subr.bf16.mxu0 0
    %274 = vmatpush1.bf16.msra.mxu0 %v250
    %275 = vmatprep.subr.bf16.mxu0 0
    %276 = vmatpush1.bf16.msra.mxu0 0
    %277 = vmatprep.subr.bf16.mxu0 0
    %278 = vmatpush1.bf16.msra.mxu0 0
    %279 = vmatprep.subr.bf16.mxu0 0
    %280 = vmatpush1.bf16.msra.mxu0 0
    %281 = vmatprep.subr.bf16.mxu0 0
    %282 = vmatpush1.bf16.msra.mxu0 0
    %283 = vmatprep.subr.bf16.mxu0 0
    %284 = vmatpush1.bf16.msra.mxu0 0
    %285 = vmatprep.subr.bf16.mxu0 0
    %286 = vmatpush1.bf16.msra.mxu0 0
    %287 = vmatprep.subr.bf16.mxu0 0
    %288 = vmatpush1.bf16.msra.mxu0 0
    %289 = vmatprep.subr.bf16.mxu0 0
    %290 = vmatpush1.bf16.msra.mxu0 0
    %291 = vmatprep.mubr.bf16.mxu0 0
    %292 = vmatmul.mubr.bf16.gmra.mrb[0].mxu0 %v207
    %v293 = vpop.f32.mrb[0].mxu0
    %v294 = vadd.f32 %v197, %v293
    %v295 = vpop.f32.mrb[0].mxu0
    %v296 = vpop.f32.mrb[0].mxu0
    %v297 = vadd.f32 %v197, %v296
    %v298 = vpop.f32.mrb[0].mxu0
    %299 = vmatprep.mubr.bf16.mxu0 0
    %300 = vmatmul.mubr.bf16.gmra.mrb[0].mxu0 %v208
    %v301 = vpop.f32.mrb[0].mxu0
    %v302 = vadd.f32 %v197, %v301
    %v303 = vpop.f32.mrb[0].mxu0
    %v304 = vpop.f32.mrb[0].mxu0
    %v305 = vadd.f32 %v197, %v304
    %v306 = vpop.f32.mrb[0].mxu0
    %307 = vdwg.mxu0
    %v308 = vmax.f32 %v294, 0.0
    %v309 = vmax.f32 %v297, 0.0
    %v310 = vmax.f32 %v302, 0.0
    %v311 = vmax.f32 %v305, 0.0
    %v312 = vmul.f32 %v308, %v172
    %v313 = vmul.f32 %v309, %v173
    %v314 = vmul.f32 %v310, %v174
    %v315 = vmul.f32 %v311, %v175
    %vm316 = vcmp.ge.s32.totalorder %v160, 1
    %vm317 = vcmp.ge.s32.totalorder %v161, 1
    %vm318 = vcmp.ge.s32.totalorder %v162, 1
    %vm319 = vcmp.ge.s32.totalorder %v163, 1
    %vm320 = vcmp.lt.s32.totalorder %v160, 15
    %vm321 = vcmp.lt.s32.totalorder %v161, 15
    %vm322 = vcmp.lt.s32.totalorder %v162, 15
    %vm323 = vcmp.lt.s32.totalorder %v163, 15
    %vm324 = vmand %vm316, %vm320
    %vm325 = vmand %vm317, %vm321
    %vm326 = vmand %vm318, %vm322
    %vm327 = vmand %vm319, %vm323
    %v328 = vsel %vm324, 1, 0
    %v329 = vsel %vm325, 1, 0
    %v330 = vsel %vm326, 1, 0
    %v331 = vsel %vm327, 1, 0
    %v332 = vcvt.s32.f32 %v328
    %v333 = vcvt.s32.f32 %v329
    %v334 = vcvt.s32.f32 %v330
    %v335 = vcvt.s32.f32 %v331
    %v336 = vrot.slane %v312, 7
    %v337 = vrot.slane %v313, 7
    %v338 = vrot.slane %v314, 7
    %v339 = vrot.slane %v315, 7
    %vm340 = vcmp.lt.s32.totalorder %v133, 1
    %v341 = vsel %vm340, %v338, %v339
    %v342 = vsel %vm340, %v337, %v338
    %v343 = vsel %vm340, %v336, %v337
    %v344 = vsel %vm340, %v339, %v336
    %345 = vrot.lane.b32.xlu0 %v312, 32
    %v346 = vpop.permute.xlu0 %345
    %347 = vrot.lane.b32.xlu0 %v313, 32
    %v348 = vpop.permute.xlu0 %347
    %349 = vrot.lane.b32.xlu0 %v314, 32
    %v350 = vpop.permute.xlu0 %349
    %351 = vrot.lane.b32.xlu0 %v315, 32
    %v352 = vpop.permute.xlu0 %351
    %v353 = vadd.f32 %v344, %v346
    %v354 = vadd.f32 %v343, %v348
    %v355 = vadd.f32 %v342, %v350
    %v356 = vadd.f32 %v341, %v352
    %v357 = vrot.slane %v312, 1
    %v358 = vrot.slane %v313, 1
    %v359 = vrot.slane %v314, 1
    %v360 = vrot.slane %v315, 1
    %vm361 = vcmp.lt.s32.totalorder %v133, 7
    %v362 = vsel %vm361, %v359, %v360
    %v363 = vsel %vm361, %v358, %v359
    %v364 = vsel %vm361, %v357, %v358
    %v365 = vsel %vm361, %v360, %v357
    %366 = vrot.lane.b32.xlu0 %v364, 64
    %v367 = vpop.permute.xlu0 %366
    %368 = vrot.lane.b32.xlu0 %v363, 64
    %v369 = vpop.permute.xlu0 %368
    %370 = vrot.lane.b32.xlu0 %v362, 64
    %v371 = vpop.permute.xlu0 %370
    %372 = vrot.lane.b32.xlu0 %v365, 64
    %v373 = vpop.permute.xlu0 %372
    %v374 = vadd.f32 %v353, %v367
    %v375 = vadd.f32 %v354, %v369
    %v376 = vadd.f32 %v355, %v371
    %v377 = vadd.f32 %v356, %v373
    %v378 = vpack.c.bf16 %v375, %v374
    %v379 = vpack.c.bf16 %v377, %v376
    %v380 = vld [vmem:[#allocation9] sm:$0xf]
    %v381 = vld [vmem:[#allocation9 + $0x4] sm:$0xf]
    %v382 = vld [vmem:[#allocation9 + $0x8] sm:$0xf]
    %v383 = vld [vmem:[#allocation9 + $0xc] sm:$0xf]
    %v384 = vld [vmem:[#allocation9 + $0x10] sm:$0xf]
    %v385 = vld [vmem:[#allocation9 + $0x14] sm:$0xf]
    %v386 = vld [vmem:[#allocation9 + $0x18] sm:$0xf]
    %v387 = vld [vmem:[#allocation9 + $0x1c] sm:$0xf]
    %v388 = vld [vmem:[#allocation9 + $0x20] sm:$0xf]
    %v389 = vld [vmem:[#allocation9 + $0x24] sm:$0xf]
    %v390 = vld [vmem:[#allocation9 + $0x28] sm:$0xf]
    %v391 = vld [vmem:[#allocation9 + $0x2c] sm:$0xf]
    %v392 = vld [vmem:[#allocation9 + $0x30] sm:$0xf]
    %v393 = vld [vmem:[#allocation9 + $0x34] sm:$0xf]
    %v394 = vld [vmem:[#allocation9 + $0x38] sm:$0xf]
    %v395 = vld [vmem:[#allocation9 + $0x3c] sm:$0xf]
    %v396 = vld [vmem:[%s5] sm:$0x1]
    %v398 = vlaneseq
    %v399 = vshrl.u32 %v398, 7
    %v400 = vsub.s32 0, %v399
    %v401 = vrot.slane %v396, %v400
    %v419 = vunpack.c.l.b16 %v380
    %v420 = vunpack.c.l.b16 %v381
    %v421 = vunpack.c.l.b16 %v382
    %v422 = vunpack.c.l.b16 %v383
    %v423 = vunpack.c.l.b16 %v384
    %v424 = vunpack.c.l.b16 %v385
    %v425 = vunpack.c.l.b16 %v386
    %v426 = vunpack.c.l.b16 %v387
    %v427 = vunpack.c.l.b16 %v388
    %v428 = vunpack.c.l.b16 %v389
    %v429 = vunpack.c.l.b16 %v390
    %v430 = vunpack.c.l.b16 %v391
    %v431 = vunpack.c.l.b16 %v392
    %v432 = vunpack.c.l.b16 %v393
    %v433 = vunpack.c.l.b16 %v394
    %v434 = vunpack.c.l.b16 %v395
    %v435 = vpack.c.b16 %v420, %v419
    %v436 = vpack.c.b16 %v422, %v421
    %v437 = vpack.c.b16 %v424, %v423
    %v438 = vpack.c.b16 %v426, %v425
    %v439 = vpack.c.b16 %v428, %v427
    %v440 = vpack.c.b16 %v430, %v429
    %v441 = vpack.c.b16 %v432, %v431
    %v442 = vpack.c.b16 %v434, %v433
    %451 = vmatprep.subr.bf16.mxu0 0
    %452 = vmatpush1.bf16.msra.mxu0 %v435
    %453 = vmatprep.subr.bf16.mxu0 0
    %454 = vmatpush1.bf16.msra.mxu0 %v436
    %455 = vmatprep.subr.bf16.mxu0 0
    %456 = vmatpush1.bf16.msra.mxu0 %v437
    %457 = vmatprep.subr.bf16.mxu0 0
    %458 = vmatpush1.bf16.msra.mxu0 %v438
    %459 = vmatprep.subr.bf16.mxu0 0
    %460 = vmatpush1.bf16.msra.mxu0 %v439
    %461 = vmatprep.subr.bf16.mxu0 0
    %462 = vmatpush1.bf16.msra.mxu0 %v440
    %463 = vmatprep.subr.bf16.mxu0 0
    %464 = vmatpush1.bf16.msra.mxu0 %v441
    %465 = vmatprep.subr.bf16.mxu0 0
    %466 = vmatpush1.bf16.msra.mxu0 %v442
    %467 = vmatprep.subr.bf16.mxu0 0
    %468 = vmatpush1.bf16.msra.mxu0 0
    %469 = vmatprep.subr.bf16.mxu0 0
    %470 = vmatpush1.bf16.msra.mxu0 0
    %471 = vmatprep.subr.bf16.mxu0 0
    %472 = vmatpush1.bf16.msra.mxu0 0
    %473 = vmatprep.subr.bf16.mxu0 0
    %474 = vmatpush1.bf16.msra.mxu0 0
    %475 = vmatprep.subr.bf16.mxu0 0
    %476 = vmatpush1.bf16.msra.mxu0 0
    %477 = vmatprep.subr.bf16.mxu0 0
    %478 = vmatpush1.bf16.msra.mxu0 0
    %479 = vmatprep.subr.bf16.mxu0 0
    %480 = vmatpush1.bf16.msra.mxu0 0
    %481 = vmatprep.subr.bf16.mxu0 0
    %482 = vmatpush1.bf16.msra.mxu0 0
    %483 = vmatprep.mubr.bf16.mxu0 0
    %484 = vmatmul.mubr.bf16.gmra.mrb[0].mxu0 %v378
    %v485 = vpop.f32.mrb[0].mxu0
    %v486 = vadd.f32 %v401, %v485
    %v487 = vpop.f32.mrb[0].mxu0
    %v488 = vpop.f32.mrb[0].mxu0
    %v489 = vadd.f32 %v401, %v488
    %v490 = vpop.f32.mrb[0].mxu0
    %491 = vmatprep.mubr.bf16.mxu0 0
    %492 = vmatmul.mubr.bf16.gmra.mrb[0].mxu0 %v379
    %v493 = vpop.f32.mrb[0].mxu0
    %v494 = vadd.f32 %v401, %v493
    %v495 = vpop.f32.mrb[0].mxu0
    %v496 = vpop.f32.mrb[0].mxu0
    %v497 = vadd.f32 %v401, %v496
    %v498 = vpop.f32.mrb[0].mxu0
    %499 = vdwg.mxu0
    %v500 = vmul.f32 %v486, %v332
    %v501 = vmul.f32 %v489, %v333
    %v502 = vmul.f32 %v494, %v334
    %v503 = vmul.f32 %v497, %v335
    %v504 = vld [vmem:[%s6] sm:$0x1]
    %v505 = vld [vmem:[%s7] sm:$0x1]
    %v506 = vadd.f32 %v500, %v501
    %v507 = vadd.f32 %v506, %v502
    %v508 = vadd.f32 %v507, %v503
    %v509 = vrot.slane %v508, 4
    %v510 = vadd.f32 %v508, %v509
    %v511 = vrot.slane %v510, 2
    %v512 = vadd.f32 %v510, %v511
    %v513 = vrot.slane %v512, 1
    %v514 = vadd.f32 %v512, %v513
    %v515 = vrcp.pop 32.0
    %v516 = vmul.f32 %v514, %v515
    %v517 = vsub.f32 %v500, %v516
    %v518 = vsub.f32 %v501, %v516
    %v519 = vsub.f32 %v502, %v516
    %v520 = vsub.f32 %v503, %v516
    %v521 = vmul.f32 %v517, %v517
    %v522 = vmul.f32 %v518, %v518
    %v523 = vmul.f32 %v519, %v519
    %v524 = vmul.f32 %v520, %v520
    %v525 = vadd.f32 %v521, %v522
    %v526 = vadd.f32 %v525, %v523
    %v527 = vadd.f32 %v526, %v524
    %v528 = vrot.slane %v527, 4
    %v529 = vadd.f32 %v527, %v528
    %v530 = vrot.slane %v529, 2
    %v531 = vadd.f32 %v529, %v530
    %v532 = vrot.slane %v531, 1
    %v533 = vadd.f32 %v531, %v532
    %v534 = vmul.f32 %v533, %v515
    %v535 = vadd.f32 %v534, 1e-05
    %v536 = vrsqrt.pop %v535
    %v537 = vmul.f32 %v504, %v536
    %v539 = vlaneseq
    %v540 = vshrl.u32 %v539, 7
    %v541 = vsub.s32 0, %v540
    %v542 = vrot.slane %v537, %v541
    %v544 = vmul.f32 %v517, %v542
    %v545 = vmul.f32 %v518, %v542
    %v546 = vmul.f32 %v519, %v542
    %v547 = vmul.f32 %v520, %v542
    %v549 = vlaneseq
    %v550 = vshrl.u32 %v549, 7
    %v551 = vsub.s32 0, %v550
    %v552 = vrot.slane %v505, %v551
    %v554 = vadd.f32 %v544, %v552
    %v555 = vadd.f32 %v545, %v552
    %v556 = vadd.f32 %v546, %v552
    %v557 = vadd.f32 %v547, %v552
    %v558 = vmax.f32 %v554, 0.0
    %v559 = vmax.f32 %v555, 0.0
    %v560 = vmax.f32 %v556, 0.0
    %v561 = vmax.f32 %v557, 0.0
    %v562 = vrot.slane %v558, 7
    %v563 = vrot.slane %v559, 7
    %v564 = vrot.slane %v560, 7
    %v565 = vrot.slane %v561, 7
    %v566 = vsel %vm340, %v564, %v565
    %v567 = vsel %vm340, %v563, %v564
    %v568 = vsel %vm340, %v562, %v563
    %v569 = vsel %vm340, %v565, %v562
    %570 = vrot.lane.b32.xlu0 %v558, 32
    %v571 = vpop.permute.xlu0 %570
    %572 = vrot.lane.b32.xlu0 %v559, 32
    %v573 = vpop.permute.xlu0 %572
    %574 = vrot.lane.b32.xlu0 %v560, 32
    %v575 = vpop.permute.xlu0 %574
    %576 = vrot.lane.b32.xlu0 %v561, 32
    %v577 = vpop.permute.xlu0 %576
    %v578 = vadd.f32 %v569, %v571
    %v579 = vadd.f32 %v568, %v573
    %v580 = vadd.f32 %v567, %v575
    %v581 = vadd.f32 %v566, %v577
    %v582 = vrot.slane %v558, 1
    %v583 = vrot.slane %v559, 1
    %v584 = vrot.slane %v560, 1
    %v585 = vrot.slane %v561, 1
    %v586 = vsel %vm361, %v584, %v585
    %v587 = vsel %vm361, %v583, %v584
    %v588 = vsel %vm361, %v582, %v583
    %v589 = vsel %vm361, %v585, %v582
    %590 = vrot.lane.b32.xlu0 %v588, 64
    %v591 = vpop.permute.xlu0 %590
    %592 = vrot.lane.b32.xlu0 %v587, 64
    %v593 = vpop.permute.xlu0 %592
    %594 = vrot.lane.b32.xlu0 %v586, 64
    %v595 = vpop.permute.xlu0 %594
    %596 = vrot.lane.b32.xlu0 %v589, 64
    %v597 = vpop.permute.xlu0 %596
    %v598 = vadd.f32 %v578, %v591
    %v599 = vadd.f32 %v579, %v593
    %v600 = vadd.f32 %v580, %v595
    %v601 = vadd.f32 %v581, %v597
    %v602 = vpack.c.bf16 %v599, %v598
    %v603 = vpack.c.bf16 %v601, %v600
    %s604 = scalar_lea.vmem [#allocation9], 64
    %v605 = vld [vmem:[%s604] sm:$0xf]
    %v606 = vld [vmem:[%s604 + $0x4] sm:$0xf]
    %v607 = vld [vmem:[%s604 + $0x8] sm:$0xf]
    %v608 = vld [vmem:[%s604 + $0xc] sm:$0xf]
    %v609 = vld [vmem:[%s604 + $0x10] sm:$0xf]
    %v610 = vld [vmem:[%s604 + $0x14] sm:$0xf]
    %v611 = vld [vmem:[%s604 + $0x18] sm:$0xf]
    %v612 = vld [vmem:[%s604 + $0x1c] sm:$0xf]
    %v613 = vld [vmem:[%s604 + $0x20] sm:$0xf]
    %v614 = vld [vmem:[%s604 + $0x24] sm:$0xf]
    %v615 = vld [vmem:[%s604 + $0x28] sm:$0xf]
    %v616 = vld [vmem:[%s604 + $0x2c] sm:$0xf]
    %v617 = vld [vmem:[%s604 + $0x30] sm:$0xf]
    %v618 = vld [vmem:[%s604 + $0x34] sm:$0xf]
    %v619 = vld [vmem:[%s604 + $0x38] sm:$0xf]
    %v620 = vld [vmem:[%s604 + $0x3c] sm:$0xf]
    %s621 = scalar_lea.vmem %s5, 1
    %v622 = vld [vmem:[%s621] sm:$0x1]
    %v624 = vlaneseq
    %v625 = vshrl.u32 %v624, 7
    %v626 = vsub.s32 0, %v625
    %v627 = vrot.slane %v622, %v626
    %v645 = vunpack.c.l.b16 %v605
    %v646 = vunpack.c.l.b16 %v606
    %v647 = vunpack.c.l.b16 %v607
    %v648 = vunpack.c.l.b16 %v608
    %v649 = vunpack.c.l.b16 %v609
    %v650 = vunpack.c.l.b16 %v610
    %v651 = vunpack.c.l.b16 %v611
    %v652 = vunpack.c.l.b16 %v612
    %v653 = vunpack.c.l.b16 %v613
    %v654 = vunpack.c.l.b16 %v614
    %v655 = vunpack.c.l.b16 %v615
    %v656 = vunpack.c.l.b16 %v616
    %v657 = vunpack.c.l.b16 %v617
    %v658 = vunpack.c.l.b16 %v618
    %v659 = vunpack.c.l.b16 %v619
    %v660 = vunpack.c.l.b16 %v620
    %v661 = vpack.c.b16 %v646, %v645
    %v662 = vpack.c.b16 %v648, %v647
    %v663 = vpack.c.b16 %v650, %v649
    %v664 = vpack.c.b16 %v652, %v651
    %v665 = vpack.c.b16 %v654, %v653
    %v666 = vpack.c.b16 %v656, %v655
    %v667 = vpack.c.b16 %v658, %v657
    %v668 = vpack.c.b16 %v660, %v659
    %677 = vmatprep.subr.bf16.mxu0 0
    %678 = vmatpush1.bf16.msra.mxu0 %v661
    %679 = vmatprep.subr.bf16.mxu0 0
    %680 = vmatpush1.bf16.msra.mxu0 %v662
    %681 = vmatprep.subr.bf16.mxu0 0
    %682 = vmatpush1.bf16.msra.mxu0 %v663
    %683 = vmatprep.subr.bf16.mxu0 0
    %684 = vmatpush1.bf16.msra.mxu0 %v664
    %685 = vmatprep.subr.bf16.mxu0 0
    %686 = vmatpush1.bf16.msra.mxu0 %v665
    %687 = vmatprep.subr.bf16.mxu0 0
    %688 = vmatpush1.bf16.msra.mxu0 %v666
    %689 = vmatprep.subr.bf16.mxu0 0
    %690 = vmatpush1.bf16.msra.mxu0 %v667
    %691 = vmatprep.subr.bf16.mxu0 0
    %692 = vmatpush1.bf16.msra.mxu0 %v668
    %693 = vmatprep.subr.bf16.mxu0 0
    %694 = vmatpush1.bf16.msra.mxu0 0
    %695 = vmatprep.subr.bf16.mxu0 0
    %696 = vmatpush1.bf16.msra.mxu0 0
    %697 = vmatprep.subr.bf16.mxu0 0
    %698 = vmatpush1.bf16.msra.mxu0 0
    %699 = vmatprep.subr.bf16.mxu0 0
    %700 = vmatpush1.bf16.msra.mxu0 0
    %701 = vmatprep.subr.bf16.mxu0 0
    %702 = vmatpush1.bf16.msra.mxu0 0
    %703 = vmatprep.subr.bf16.mxu0 0
    %704 = vmatpush1.bf16.msra.mxu0 0
    %705 = vmatprep.subr.bf16.mxu0 0
    %706 = vmatpush1.bf16.msra.mxu0 0
    %707 = vmatprep.subr.bf16.mxu0 0
    %708 = vmatpush1.bf16.msra.mxu0 0
    %709 = vmatprep.mubr.bf16.mxu0 0
    %710 = vmatmul.mubr.bf16.gmra.mrb[0].mxu0 %v602
    %v711 = vpop.f32.mrb[0].mxu0
    %v712 = vadd.f32 %v627, %v711
    %v713 = vpop.f32.mrb[0].mxu0
    %v714 = vpop.f32.mrb[0].mxu0
    %v715 = vadd.f32 %v627, %v714
    %v716 = vpop.f32.mrb[0].mxu0
    %717 = vmatprep.mubr.bf16.mxu0 0
    %718 = vmatmul.mubr.bf16.gmra.mrb[0].mxu0 %v603
    %v719 = vpop.f32.mrb[0].mxu0
    %v720 = vadd.f32 %v627, %v719
    %v721 = vpop.f32.mrb[0].mxu0
    %v722 = vpop.f32.mrb[0].mxu0
    %v723 = vadd.f32 %v627, %v722
    %v724 = vpop.f32.mrb[0].mxu0
    %725 = vdwg.mxu0
    %v726 = vmul.f32 %v712, %v332
    %v727 = vmul.f32 %v715, %v333
    %v728 = vmul.f32 %v720, %v334
    %v729 = vmul.f32 %v723, %v335
    %s730 = scalar_lea.vmem %s6, 1
    %v731 = vld [vmem:[%s730] sm:$0x1]
    %s732 = scalar_lea.vmem %s7, 1
    %v733 = vld [vmem:[%s732] sm:$0x1]
    %v734 = vadd.f32 %v726, %v727
    %v735 = vadd.f32 %v734, %v728
    %v736 = vadd.f32 %v735, %v729
    %v737 = vrot.slane %v736, 4
    %v738 = vadd.f32 %v736, %v737
    %v739 = vrot.slane %v738, 2
    %v740 = vadd.f32 %v738, %v739
    %v741 = vrot.slane %v740, 1
    %v742 = vadd.f32 %v740, %v741
    %v743 = vmul.f32 %v742, %v515
    %v744 = vsub.f32 %v726, %v743
    %v745 = vsub.f32 %v727, %v743
    %v746 = vsub.f32 %v728, %v743
    %v747 = vsub.f32 %v729, %v743
    %v748 = vmul.f32 %v744, %v744
    %v749 = vmul.f32 %v745, %v745
    %v750 = vmul.f32 %v746, %v746
    %v751 = vmul.f32 %v747, %v747
    %v752 = vadd.f32 %v748, %v749
    %v753 = vadd.f32 %v752, %v750
    %v754 = vadd.f32 %v753, %v751
    %v755 = vrot.slane %v754, 4
    %v756 = vadd.f32 %v754, %v755
    %v757 = vrot.slane %v756, 2
    %v758 = vadd.f32 %v756, %v757
    %v759 = vrot.slane %v758, 1
    %v760 = vadd.f32 %v758, %v759
    %v761 = vmul.f32 %v760, %v515
    %v762 = vadd.f32 %v761, 1e-05
    %v763 = vrsqrt.pop %v762
    %v764 = vmul.f32 %v731, %v763
    %v766 = vlaneseq
    %v767 = vshrl.u32 %v766, 7
    %v768 = vsub.s32 0, %v767
    %v769 = vrot.slane %v764, %v768
    %v771 = vmul.f32 %v744, %v769
    %v772 = vmul.f32 %v745, %v769
    %v773 = vmul.f32 %v746, %v769
    %v774 = vmul.f32 %v747, %v769
    %v776 = vlaneseq
    %v777 = vshrl.u32 %v776, 7
    %v778 = vsub.s32 0, %v777
    %v779 = vrot.slane %v733, %v778
    %v781 = vadd.f32 %v771, %v779
    %v782 = vadd.f32 %v772, %v779
    %v783 = vadd.f32 %v773, %v779
    %v784 = vadd.f32 %v774, %v779
    %v785 = vmax.f32 %v781, 0.0
    %v786 = vmax.f32 %v782, 0.0
    %v787 = vmax.f32 %v783, 0.0
    %v788 = vmax.f32 %v784, 0.0
    %v789 = vadd.f32 %v785, %v312
    %v790 = vadd.f32 %v786, %v313
    %v791 = vadd.f32 %v787, %v314
    %v792 = vadd.f32 %v788, %v315
    %v793 = vmul.f32 %v789, %v172
    %v794 = vmul.f32 %v790, %v173
    %v795 = vmul.f32 %v791, %v174
    %v796 = vmul.f32 %v792, %v175
    %vm797 = vcmp.ge.s32.totalorder %v160, 2
    %vm798 = vcmp.ge.s32.totalorder %v161, 2
    %vm799 = vcmp.ge.s32.totalorder %v162, 2
    %vm800 = vcmp.ge.s32.totalorder %v163, 2
    %vm801 = vcmp.lt.s32.totalorder %v160, 14
    %vm802 = vcmp.lt.s32.totalorder %v161, 14
    %vm803 = vcmp.lt.s32.totalorder %v162, 14
    %vm804 = vcmp.lt.s32.totalorder %v163, 14
    %vm805 = vmand %vm797, %vm801
    %vm806 = vmand %vm798, %vm802
    %vm807 = vmand %vm799, %vm803
    %vm808 = vmand %vm800, %vm804
    %v809 = vsel %vm805, 1, 0
    %v810 = vsel %vm806, 1, 0
    %v811 = vsel %vm807, 1, 0
    %v812 = vsel %vm808, 1, 0
    %v813 = vcvt.s32.f32 %v809
    %v814 = vcvt.s32.f32 %v810
    %v815 = vcvt.s32.f32 %v811
    %v816 = vcvt.s32.f32 %v812
    %v817 = vrot.slane %v793, 6
    %v818 = vrot.slane %v794, 6
    %v819 = vrot.slane %v795, 6
    %v820 = vrot.slane %v796, 6
    %vm821 = vcmp.lt.s32.totalorder %v133, 2
    %v822 = vsel %vm821, %v819, %v820
    %v823 = vsel %vm821, %v818, %v819
    %v824 = vsel %vm821, %v817, %v818
    %v825 = vsel %vm821, %v820, %v817
    %826 = vrot.lane.b32.xlu0 %v793, 32
    %v827 = vpop.permute.xlu0 %826
    %828 = vrot.lane.b32.xlu0 %v794, 32
    %v829 = vpop.permute.xlu0 %828
    %830 = vrot.lane.b32.xlu0 %v795, 32
    %v831 = vpop.permute.xlu0 %830
    %832 = vrot.lane.b32.xlu0 %v796, 32
    %v833 = vpop.permute.xlu0 %832
    %v834 = vadd.f32 %v825, %v827
    %v835 = vadd.f32 %v824, %v829
    %v836 = vadd.f32 %v823, %v831
    %v837 = vadd.f32 %v822, %v833
    %v838 = vrot.slane %v793, 2
    %v839 = vrot.slane %v794, 2
    %v840 = vrot.slane %v795, 2
    %v841 = vrot.slane %v796, 2
    %vm842 = vcmp.lt.s32.totalorder %v133, 6
    %v843 = vsel %vm842, %v840, %v841
    %v844 = vsel %vm842, %v839, %v840
    %v845 = vsel %vm842, %v838, %v839
    %v846 = vsel %vm842, %v841, %v838
    %847 = vrot.lane.b32.xlu0 %v845, 64
    %v848 = vpop.permute.xlu0 %847
    %849 = vrot.lane.b32.xlu0 %v844, 64
    %v850 = vpop.permute.xlu0 %849
    %851 = vrot.lane.b32.xlu0 %v843, 64
    %v852 = vpop.permute.xlu0 %851
    %853 = vrot.lane.b32.xlu0 %v846, 64
    %v854 = vpop.permute.xlu0 %853
    %v855 = vadd.f32 %v834, %v848
    %v856 = vadd.f32 %v835, %v850
    %v857 = vadd.f32 %v836, %v852
    %v858 = vadd.f32 %v837, %v854
    %v859 = vpack.c.bf16 %v856, %v855
    %v860 = vpack.c.bf16 %v858, %v857
    %s861 = scalar_lea.vmem [#allocation9], 128
    %v862 = vld [vmem:[%s861] sm:$0xf]
    %v863 = vld [vmem:[%s861 + $0x4] sm:$0xf]
    %v864 = vld [vmem:[%s861 + $0x8] sm:$0xf]
    %v865 = vld [vmem:[%s861 + $0xc] sm:$0xf]
    %v866 = vld [vmem:[%s861 + $0x10] sm:$0xf]
    %v867 = vld [vmem:[%s861 + $0x14] sm:$0xf]
    %v868 = vld [vmem:[%s861 + $0x18] sm:$0xf]
    %v869 = vld [vmem:[%s861 + $0x1c] sm:$0xf]
    %v870 = vld [vmem:[%s861 + $0x20] sm:$0xf]
    %v871 = vld [vmem:[%s861 + $0x24] sm:$0xf]
    %v872 = vld [vmem:[%s861 + $0x28] sm:$0xf]
    %v873 = vld [vmem:[%s861 + $0x2c] sm:$0xf]
    %v874 = vld [vmem:[%s861 + $0x30] sm:$0xf]
    %v875 = vld [vmem:[%s861 + $0x34] sm:$0xf]
    %v876 = vld [vmem:[%s861 + $0x38] sm:$0xf]
    %v877 = vld [vmem:[%s861 + $0x3c] sm:$0xf]
    %s878 = scalar_lea.vmem %s5, 2
    %v879 = vld [vmem:[%s878] sm:$0x1]
    %v881 = vlaneseq
    %v882 = vshrl.u32 %v881, 7
    %v883 = vsub.s32 0, %v882
    %v884 = vrot.slane %v879, %v883
    %v902 = vunpack.c.l.b16 %v862
    %v903 = vunpack.c.l.b16 %v863
    %v904 = vunpack.c.l.b16 %v864
    %v905 = vunpack.c.l.b16 %v865
    %v906 = vunpack.c.l.b16 %v866
    %v907 = vunpack.c.l.b16 %v867
    %v908 = vunpack.c.l.b16 %v868
    %v909 = vunpack.c.l.b16 %v869
    %v910 = vunpack.c.l.b16 %v870
    %v911 = vunpack.c.l.b16 %v871
    %v912 = vunpack.c.l.b16 %v872
    %v913 = vunpack.c.l.b16 %v873
    %v914 = vunpack.c.l.b16 %v874
    %v915 = vunpack.c.l.b16 %v875
    %v916 = vunpack.c.l.b16 %v876
    %v917 = vunpack.c.l.b16 %v877
    %v918 = vpack.c.b16 %v903, %v902
    %v919 = vpack.c.b16 %v905, %v904
    %v920 = vpack.c.b16 %v907, %v906
    %v921 = vpack.c.b16 %v909, %v908
    %v922 = vpack.c.b16 %v911, %v910
    %v923 = vpack.c.b16 %v913, %v912
    %v924 = vpack.c.b16 %v915, %v914
    %v925 = vpack.c.b16 %v917, %v916
    %934 = vmatprep.subr.bf16.mxu0 0
    %935 = vmatpush1.bf16.msra.mxu0 %v918
    %936 = vmatprep.subr.bf16.mxu0 0
    %937 = vmatpush1.bf16.msra.mxu0 %v919
    %938 = vmatprep.subr.bf16.mxu0 0
    %939 = vmatpush1.bf16.msra.mxu0 %v920
    %940 = vmatprep.subr.bf16.mxu0 0
    %941 = vmatpush1.bf16.msra.mxu0 %v921
    %942 = vmatprep.subr.bf16.mxu0 0
    %943 = vmatpush1.bf16.msra.mxu0 %v922
    %944 = vmatprep.subr.bf16.mxu0 0
    %945 = vmatpush1.bf16.msra.mxu0 %v923
    %946 = vmatprep.subr.bf16.mxu0 0
    %947 = vmatpush1.bf16.msra.mxu0 %v924
    %948 = vmatprep.subr.bf16.mxu0 0
    %949 = vmatpush1.bf16.msra.mxu0 %v925
    %950 = vmatprep.subr.bf16.mxu0 0
    %951 = vmatpush1.bf16.msra.mxu0 0
    %952 = vmatprep.subr.bf16.mxu0 0
    %953 = vmatpush1.bf16.msra.mxu0 0
    %954 = vmatprep.subr.bf16.mxu0 0
    %955 = vmatpush1.bf16.msra.mxu0 0
    %956 = vmatprep.subr.bf16.mxu0 0
    %957 = vmatpush1.bf16.msra.mxu0 0
    %958 = vmatprep.subr.bf16.mxu0 0
    %959 = vmatpush1.bf16.msra.mxu0 0
    %960 = vmatprep.subr.bf16.mxu0 0
    %961 = vmatpush1.bf16.msra.mxu0 0
    %962 = vmatprep.subr.bf16.mxu0 0
    %963 = vmatpush1.bf16.msra.mxu0 0
    %964 = vmatprep.subr.bf16.mxu0 0
    %965 = vmatpush1.bf16.msra.mxu0 0
    %966 = vmatprep.mubr.bf16.mxu0 0
    %967 = vmatmul.mubr.bf16.gmra.mrb[0].mxu0 %v859
    %v968 = vpop.f32.mrb[0].mxu0
    %v969 = vadd.f32 %v884, %v968
    %v970 = vpop.f32.mrb[0].mxu0
    %v971 = vpop.f32.mrb[0].mxu0
    %v972 = vadd.f32 %v884, %v971
    %v973 = vpop.f32.mrb[0].mxu0
    %974 = vmatprep.mubr.bf16.mxu0 0
    %975 = vmatmul.mubr.bf16.gmra.mrb[0].mxu0 %v860
    %v976 = vpop.f32.mrb[0].mxu0
    %v977 = vadd.f32 %v884, %v976
    %v978 = vpop.f32.mrb[0].mxu0
    %v979 = vpop.f32.mrb[0].mxu0
    %v980 = vadd.f32 %v884, %v979
    %v981 = vpop.f32.mrb[0].mxu0
    %982 = vdwg.mxu0
    %v983 = vmul.f32 %v969, %v813
    %v984 = vmul.f32 %v972, %v814
    %v985 = vmul.f32 %v977, %v815
    %v986 = vmul.f32 %v980, %v816
    %s987 = scalar_lea.vmem %s6, 2
    %v988 = vld [vmem:[%s987] sm:$0x1]
    %s989 = scalar_lea.vmem %s7, 2
    %v990 = vld [vmem:[%s989] sm:$0x1]
    %v991 = vadd.f32 %v983, %v984
    %v992 = vadd.f32 %v991, %v985
    %v993 = vadd.f32 %v992, %v986
    %v994 = vrot.slane %v993, 4
    %v995 = vadd.f32 %v993, %v994
    %v996 = vrot.slane %v995, 2
    %v997 = vadd.f32 %v995, %v996
    %v998 = vrot.slane %v997, 1
    %v999 = vadd.f32 %v997, %v998
    %v1000 = vmul.f32 %v999, %v515
    %v1001 = vsub.f32 %v983, %v1000
    %v1002 = vsub.f32 %v984, %v1000
    %v1003 = vsub.f32 %v985, %v1000
    %v1004 = vsub.f32 %v986, %v1000
    %v1005 = vmul.f32 %v1001, %v1001
    %v1006 = vmul.f32 %v1002, %v1002
    %v1007 = vmul.f32 %v1003, %v1003
    %v1008 = vmul.f32 %v1004, %v1004
    %v1009 = vadd.f32 %v1005, %v1006
    %v1010 = vadd.f32 %v1009, %v1007
    %v1011 = vadd.f32 %v1010, %v1008
    %v1012 = vrot.slane %v1011, 4
    %v1013 = vadd.f32 %v1011, %v1012
    %v1014 = vrot.slane %v1013, 2
    %v1015 = vadd.f32 %v1013, %v1014
    %v1016 = vrot.slane %v1015, 1
    %v1017 = vadd.f32 %v1015, %v1016
    %v1018 = vmul.f32 %v1017, %v515
    %v1019 = vadd.f32 %v1018, 1e-05
    %v1020 = vrsqrt.pop %v1019
    %v1021 = vmul.f32 %v988, %v1020
    %v1023 = vlaneseq
    %v1024 = vshrl.u32 %v1023, 7
    %v1025 = vsub.s32 0, %v1024
    %v1026 = vrot.slane %v1021, %v1025
    %v1028 = vmul.f32 %v1001, %v1026
    %v1029 = vmul.f32 %v1002, %v1026
    %v1030 = vmul.f32 %v1003, %v1026
    %v1031 = vmul.f32 %v1004, %v1026
    %v1033 = vlaneseq
    %v1034 = vshrl.u32 %v1033, 7
    %v1035 = vsub.s32 0, %v1034
    %v1036 = vrot.slane %v990, %v1035
    %v1038 = vadd.f32 %v1028, %v1036
    %v1039 = vadd.f32 %v1029, %v1036
    %v1040 = vadd.f32 %v1030, %v1036
    %v1041 = vadd.f32 %v1031, %v1036
    %v1042 = vmax.f32 %v1038, 0.0
    %v1043 = vmax.f32 %v1039, 0.0
    %v1044 = vmax.f32 %v1040, 0.0
    %v1045 = vmax.f32 %v1041, 0.0
    %v1046 = vrot.slane %v1042, 6
    %v1047 = vrot.slane %v1043, 6
    %v1048 = vrot.slane %v1044, 6
    %v1049 = vrot.slane %v1045, 6
    %v1050 = vsel %vm821, %v1048, %v1049
    %v1051 = vsel %vm821, %v1047, %v1048
    %v1052 = vsel %vm821, %v1046, %v1047
    %v1053 = vsel %vm821, %v1049, %v1046
    %1054 = vrot.lane.b32.xlu0 %v1042, 32
    %v1055 = vpop.permute.xlu0 %1054
    %1056 = vrot.lane.b32.xlu0 %v1043, 32
    %v1057 = vpop.permute.xlu0 %1056
    %1058 = vrot.lane.b32.xlu0 %v1044, 32
    %v1059 = vpop.permute.xlu0 %1058
    %1060 = vrot.lane.b32.xlu0 %v1045, 32
    %v1061 = vpop.permute.xlu0 %1060
    %v1062 = vadd.f32 %v1053, %v1055
    %v1063 = vadd.f32 %v1052, %v1057
    %v1064 = vadd.f32 %v1051, %v1059
    %v1065 = vadd.f32 %v1050, %v1061
    %v1066 = vrot.slane %v1042, 2
    %v1067 = vrot.slane %v1043, 2
    %v1068 = vrot.slane %v1044, 2
    %v1069 = vrot.slane %v1045, 2
    %v1070 = vsel %vm842, %v1068, %v1069
    %v1071 = vsel %vm842, %v1067, %v1068
    %v1072 = vsel %vm842, %v1066, %v1067
    %v1073 = vsel %vm842, %v1069, %v1066
    %1074 = vrot.lane.b32.xlu0 %v1072, 64
    %v1075 = vpop.permute.xlu0 %1074
    %1076 = vrot.lane.b32.xlu0 %v1071, 64
    %v1077 = vpop.permute.xlu0 %1076
    %1078 = vrot.lane.b32.xlu0 %v1070, 64
    %v1079 = vpop.permute.xlu0 %1078
    %1080 = vrot.lane.b32.xlu0 %v1073, 64
    %v1081 = vpop.permute.xlu0 %1080
    %v1082 = vadd.f32 %v1062, %v1075
    %v1083 = vadd.f32 %v1063, %v1077
    %v1084 = vadd.f32 %v1064, %v1079
    %v1085 = vadd.f32 %v1065, %v1081
    %v1086 = vpack.c.bf16 %v1083, %v1082
    %v1087 = vpack.c.bf16 %v1085, %v1084
    %s1088 = scalar_lea.vmem [#allocation9], 192
    %v1089 = vld [vmem:[%s1088] sm:$0xf]
    %v1090 = vld [vmem:[%s1088 + $0x4] sm:$0xf]
    %v1091 = vld [vmem:[%s1088 + $0x8] sm:$0xf]
    %v1092 = vld [vmem:[%s1088 + $0xc] sm:$0xf]
    %v1093 = vld [vmem:[%s1088 + $0x10] sm:$0xf]
    %v1094 = vld [vmem:[%s1088 + $0x14] sm:$0xf]
    %v1095 = vld [vmem:[%s1088 + $0x18] sm:$0xf]
    %v1096 = vld [vmem:[%s1088 + $0x1c] sm:$0xf]
    %v1097 = vld [vmem:[%s1088 + $0x20] sm:$0xf]
    %v1098 = vld [vmem:[%s1088 + $0x24] sm:$0xf]
    %v1099 = vld [vmem:[%s1088 + $0x28] sm:$0xf]
    %v1100 = vld [vmem:[%s1088 + $0x2c] sm:$0xf]
    %v1101 = vld [vmem:[%s1088 + $0x30] sm:$0xf]
    %v1102 = vld [vmem:[%s1088 + $0x34] sm:$0xf]
    %v1103 = vld [vmem:[%s1088 + $0x38] sm:$0xf]
    %v1104 = vld [vmem:[%s1088 + $0x3c] sm:$0xf]
    %s1105 = scalar_lea.vmem %s5, 3
    %v1106 = vld [vmem:[%s1105] sm:$0x1]
    %v1108 = vlaneseq
    %v1109 = vshrl.u32 %v1108, 7
    %v1110 = vsub.s32 0, %v1109
    %v1111 = vrot.slane %v1106, %v1110
    %v1129 = vunpack.c.l.b16 %v1089
    %v1130 = vunpack.c.l.b16 %v1090
    %v1131 = vunpack.c.l.b16 %v1091
    %v1132 = vunpack.c.l.b16 %v1092
    %v1133 = vunpack.c.l.b16 %v1093
    %v1134 = vunpack.c.l.b16 %v1094
    %v1135 = vunpack.c.l.b16 %v1095
    %v1136 = vunpack.c.l.b16 %v1096
    %v1137 = vunpack.c.l.b16 %v1097
    %v1138 = vunpack.c.l.b16 %v1098
    %v1139 = vunpack.c.l.b16 %v1099
    %v1140 = vunpack.c.l.b16 %v1100
    %v1141 = vunpack.c.l.b16 %v1101
    %v1142 = vunpack.c.l.b16 %v1102
    %v1143 = vunpack.c.l.b16 %v1103
    %v1144 = vunpack.c.l.b16 %v1104
    %v1145 = vpack.c.b16 %v1130, %v1129
    %v1146 = vpack.c.b16 %v1132, %v1131
    %v1147 = vpack.c.b16 %v1134, %v1133
    %v1148 = vpack.c.b16 %v1136, %v1135
    %v1149 = vpack.c.b16 %v1138, %v1137
    %v1150 = vpack.c.b16 %v1140, %v1139
    %v1151 = vpack.c.b16 %v1142, %v1141
    %v1152 = vpack.c.b16 %v1144, %v1143
    %1161 = vmatprep.subr.bf16.mxu0 0
    %1162 = vmatpush1.bf16.msra.mxu0 %v1145
    %1163 = vmatprep.subr.bf16.mxu0 0
    %1164 = vmatpush1.bf16.msra.mxu0 %v1146
    %1165 = vmatprep.subr.bf16.mxu0 0
    %1166 = vmatpush1.bf16.msra.mxu0 %v1147
    %1167 = vmatprep.subr.bf16.mxu0 0
    %1168 = vmatpush1.bf16.msra.mxu0 %v1148
    %1169 = vmatprep.subr.bf16.mxu0 0
    %1170 = vmatpush1.bf16.msra.mxu0 %v1149
    %1171 = vmatprep.subr.bf16.mxu0 0
    %1172 = vmatpush1.bf16.msra.mxu0 %v1150
    %1173 = vmatprep.subr.bf16.mxu0 0
    %1174 = vmatpush1.bf16.msra.mxu0 %v1151
    %1175 = vmatprep.subr.bf16.mxu0 0
    %1176 = vmatpush1.bf16.msra.mxu0 %v1152
    %1177 = vmatprep.subr.bf16.mxu0 0
    %1178 = vmatpush1.bf16.msra.mxu0 0
    %1179 = vmatprep.subr.bf16.mxu0 0
    %1180 = vmatpush1.bf16.msra.mxu0 0
    %1181 = vmatprep.subr.bf16.mxu0 0
    %1182 = vmatpush1.bf16.msra.mxu0 0
    %1183 = vmatprep.subr.bf16.mxu0 0
    %1184 = vmatpush1.bf16.msra.mxu0 0
    %1185 = vmatprep.subr.bf16.mxu0 0
    %1186 = vmatpush1.bf16.msra.mxu0 0
    %1187 = vmatprep.subr.bf16.mxu0 0
    %1188 = vmatpush1.bf16.msra.mxu0 0
    %1189 = vmatprep.subr.bf16.mxu0 0
    %1190 = vmatpush1.bf16.msra.mxu0 0
    %1191 = vmatprep.subr.bf16.mxu0 0
    %1192 = vmatpush1.bf16.msra.mxu0 0
    %1193 = vmatprep.mubr.bf16.mxu0 0
    %1194 = vmatmul.mubr.bf16.gmra.mrb[0].mxu0 %v1086
    %v1195 = vpop.f32.mrb[0].mxu0
    %v1196 = vadd.f32 %v1111, %v1195
    %v1197 = vpop.f32.mrb[0].mxu0
    %v1198 = vpop.f32.mrb[0].mxu0
    %v1199 = vadd.f32 %v1111, %v1198
    %v1200 = vpop.f32.mrb[0].mxu0
    %1201 = vmatprep.mubr.bf16.mxu0 0
    %1202 = vmatmul.mubr.bf16.gmra.mrb[0].mxu0 %v1087
    %v1203 = vpop.f32.mrb[0].mxu0
    %v1204 = vadd.f32 %v1111, %v1203
    %v1205 = vpop.f32.mrb[0].mxu0
    %v1206 = vpop.f32.mrb[0].mxu0
    %v1207 = vadd.f32 %v1111, %v1206
    %v1208 = vpop.f32.mrb[0].mxu0
    %1209 = vdwg.mxu0
    %v1210 = vmul.f32 %v1196, %v813
    %v1211 = vmul.f32 %v1199, %v814
    %v1212 = vmul.f32 %v1204, %v815
    %v1213 = vmul.f32 %v1207, %v816
    %s1214 = scalar_lea.vmem %s6, 3
    %v1215 = vld [vmem:[%s1214] sm:$0x1]
    %s1216 = scalar_lea.vmem %s7, 3
    %v1217 = vld [vmem:[%s1216] sm:$0x1]
    %v1218 = vadd.f32 %v1210, %v1211
    %v1219 = vadd.f32 %v1218, %v1212
    %v1220 = vadd.f32 %v1219, %v1213
    %v1221 = vrot.slane %v1220, 4
    %v1222 = vadd.f32 %v1220, %v1221
    %v1223 = vrot.slane %v1222, 2
    %v1224 = vadd.f32 %v1222, %v1223
    %v1225 = vrot.slane %v1224, 1
    %v1226 = vadd.f32 %v1224, %v1225
    %v1227 = vmul.f32 %v1226, %v515
    %v1228 = vsub.f32 %v1210, %v1227
    %v1229 = vsub.f32 %v1211, %v1227
    %v1230 = vsub.f32 %v1212, %v1227
    %v1231 = vsub.f32 %v1213, %v1227
    %v1232 = vmul.f32 %v1228, %v1228
    %v1233 = vmul.f32 %v1229, %v1229
    %v1234 = vmul.f32 %v1230, %v1230
    %v1235 = vmul.f32 %v1231, %v1231
    %v1236 = vadd.f32 %v1232, %v1233
    %v1237 = vadd.f32 %v1236, %v1234
    %v1238 = vadd.f32 %v1237, %v1235
    %v1239 = vrot.slane %v1238, 4
    %v1240 = vadd.f32 %v1238, %v1239
    %v1241 = vrot.slane %v1240, 2
    %v1242 = vadd.f32 %v1240, %v1241
    %v1243 = vrot.slane %v1242, 1
    %v1244 = vadd.f32 %v1242, %v1243
    %v1245 = vmul.f32 %v1244, %v515
    %v1246 = vadd.f32 %v1245, 1e-05
    %v1247 = vrsqrt.pop %v1246
    %v1248 = vmul.f32 %v1215, %v1247
    %v1250 = vlaneseq
    %v1251 = vshrl.u32 %v1250, 7
    %v1252 = vsub.s32 0, %v1251
    %v1253 = vrot.slane %v1248, %v1252
    %v1255 = vmul.f32 %v1228, %v1253
    %v1256 = vmul.f32 %v1229, %v1253
    %v1257 = vmul.f32 %v1230, %v1253
    %v1258 = vmul.f32 %v1231, %v1253
    %v1260 = vlaneseq
    %v1261 = vshrl.u32 %v1260, 7
    %v1262 = vsub.s32 0, %v1261
    %v1263 = vrot.slane %v1217, %v1262
    %v1265 = vadd.f32 %v1255, %v1263
    %v1266 = vadd.f32 %v1256, %v1263
    %v1267 = vadd.f32 %v1257, %v1263
    %v1268 = vadd.f32 %v1258, %v1263
    %v1269 = vmax.f32 %v1265, 0.0
    %v1270 = vmax.f32 %v1266, 0.0
    %v1271 = vmax.f32 %v1267, 0.0
    %v1272 = vmax.f32 %v1268, 0.0
    %v1273 = vadd.f32 %v1269, %v793
    %v1274 = vadd.f32 %v1270, %v794
    %v1275 = vadd.f32 %v1271, %v795
    %v1276 = vadd.f32 %v1272, %v796
    %v1277 = vmul.f32 %v1273, %v172
    %v1278 = vmul.f32 %v1274, %v173
    %v1279 = vmul.f32 %v1275, %v174
    %v1280 = vmul.f32 %v1276, %v175
    %vm1281 = vcmp.ge.s32.totalorder %v160, 4
    %vm1282 = vcmp.ge.s32.totalorder %v161, 4
    %vm1283 = vcmp.ge.s32.totalorder %v162, 4
    %vm1284 = vcmp.ge.s32.totalorder %v163, 4
    %vm1285 = vcmp.lt.s32.totalorder %v160, 12
    %vm1286 = vcmp.lt.s32.totalorder %v161, 12
    %vm1287 = vcmp.lt.s32.totalorder %v162, 12
    %vm1288 = vcmp.lt.s32.totalorder %v163, 12
    %vm1289 = vmand %vm1281, %vm1285
    %vm1290 = vmand %vm1282, %vm1286
    %vm1291 = vmand %vm1283, %vm1287
    %vm1292 = vmand %vm1284, %vm1288
    %v1293 = vsel %vm1289, 1, 0
    %v1294 = vsel %vm1290, 1, 0
    %v1295 = vsel %vm1291, 1, 0
    %v1296 = vsel %vm1292, 1, 0
    %v1297 = vcvt.s32.f32 %v1293
    %v1298 = vcvt.s32.f32 %v1294
    %v1299 = vcvt.s32.f32 %v1295
    %v1300 = vcvt.s32.f32 %v1296
    %v1301 = vrot.slane %v1277, 4
    %v1302 = vrot.slane %v1278, 4
    %v1303 = vrot.slane %v1279, 4
    %v1304 = vrot.slane %v1280, 4
    %vm1305 = vcmp.lt.s32.totalorder %v133, 4
    %v1306 = vsel %vm1305, %v1303, %v1304
    %v1307 = vsel %vm1305, %v1302, %v1303
    %v1308 = vsel %vm1305, %v1301, %v1302
    %v1309 = vsel %vm1305, %v1304, %v1301
    %1310 = vrot.lane.b32.xlu0 %v1277, 32
    %v1311 = vpop.permute.xlu0 %1310
    %1312 = vrot.lane.b32.xlu0 %v1278, 32
    %v1313 = vpop.permute.xlu0 %1312
    %1314 = vrot.lane.b32.xlu0 %v1279, 32
    %v1315 = vpop.permute.xlu0 %1314
    %1316 = vrot.lane.b32.xlu0 %v1280, 32
    %v1317 = vpop.permute.xlu0 %1316
    %v1318 = vadd.f32 %v1309, %v1311
    %v1319 = vadd.f32 %v1308, %v1313
    %v1320 = vadd.f32 %v1307, %v1315
    %v1321 = vadd.f32 %v1306, %v1317
    %1322 = vrot.lane.b32.xlu0 %v1308, 64
    %v1323 = vpop.permute.xlu0 %1322
    %1324 = vrot.lane.b32.xlu0 %v1307, 64
    %v1325 = vpop.permute.xlu0 %1324
    %1326 = vrot.lane.b32.xlu0 %v1306, 64
    %v1327 = vpop.permute.xlu0 %1326
    %1328 = vrot.lane.b32.xlu0 %v1309, 64
    %v1329 = vpop.permute.xlu0 %1328
    %v1330 = vadd.f32 %v1318, %v1323
    %v1331 = vadd.f32 %v1319, %v1325
    %v1332 = vadd.f32 %v1320, %v1327
    %v1333 = vadd.f32 %v1321, %v1329
    %v1334 = vpack.c.bf16 %v1331, %v1330
    %v1335 = vpack.c.bf16 %v1333, %v1332
    %s1336 = scalar_lea.vmem [#allocation9], 256
    %v1337 = vld [vmem:[%s1336] sm:$0xf]
    %v1338 = vld [vmem:[%s1336 + $0x4] sm:$0xf]
    %v1339 = vld [vmem:[%s1336 + $0x8] sm:$0xf]
    %v1340 = vld [vmem:[%s1336 + $0xc] sm:$0xf]
    %v1341 = vld [vmem:[%s1336 + $0x10] sm:$0xf]
    %v1342 = vld [vmem:[%s1336 + $0x14] sm:$0xf]
    %v1343 = vld [vmem:[%s1336 + $0x18] sm:$0xf]
    %v1344 = vld [vmem:[%s1336 + $0x1c] sm:$0xf]
    %v1345 = vld [vmem:[%s1336 + $0x20] sm:$0xf]
    %v1346 = vld [vmem:[%s1336 + $0x24] sm:$0xf]
    %v1347 = vld [vmem:[%s1336 + $0x28] sm:$0xf]
    %v1348 = vld [vmem:[%s1336 + $0x2c] sm:$0xf]
    %v1349 = vld [vmem:[%s1336 + $0x30] sm:$0xf]
    %v1350 = vld [vmem:[%s1336 + $0x34] sm:$0xf]
    %v1351 = vld [vmem:[%s1336 + $0x38] sm:$0xf]
    %v1352 = vld [vmem:[%s1336 + $0x3c] sm:$0xf]
    %s1353 = scalar_lea.vmem %s5, 4
    %v1354 = vld [vmem:[%s1353] sm:$0x1]
    %v1356 = vlaneseq
    %v1357 = vshrl.u32 %v1356, 7
    %v1358 = vsub.s32 0, %v1357
    %v1359 = vrot.slane %v1354, %v1358
    %v1377 = vunpack.c.l.b16 %v1337
    %v1378 = vunpack.c.l.b16 %v1338
    %v1379 = vunpack.c.l.b16 %v1339
    %v1380 = vunpack.c.l.b16 %v1340
    %v1381 = vunpack.c.l.b16 %v1341
    %v1382 = vunpack.c.l.b16 %v1342
    %v1383 = vunpack.c.l.b16 %v1343
    %v1384 = vunpack.c.l.b16 %v1344
    %v1385 = vunpack.c.l.b16 %v1345
    %v1386 = vunpack.c.l.b16 %v1346
    %v1387 = vunpack.c.l.b16 %v1347
    %v1388 = vunpack.c.l.b16 %v1348
    %v1389 = vunpack.c.l.b16 %v1349
    %v1390 = vunpack.c.l.b16 %v1350
    %v1391 = vunpack.c.l.b16 %v1351
    %v1392 = vunpack.c.l.b16 %v1352
    %v1393 = vpack.c.b16 %v1378, %v1377
    %v1394 = vpack.c.b16 %v1380, %v1379
    %v1395 = vpack.c.b16 %v1382, %v1381
    %v1396 = vpack.c.b16 %v1384, %v1383
    %v1397 = vpack.c.b16 %v1386, %v1385
    %v1398 = vpack.c.b16 %v1388, %v1387
    %v1399 = vpack.c.b16 %v1390, %v1389
    %v1400 = vpack.c.b16 %v1392, %v1391
    %1409 = vmatprep.subr.bf16.mxu0 0
    %1410 = vmatpush1.bf16.msra.mxu0 %v1393
    %1411 = vmatprep.subr.bf16.mxu0 0
    %1412 = vmatpush1.bf16.msra.mxu0 %v1394
    %1413 = vmatprep.subr.bf16.mxu0 0
    %1414 = vmatpush1.bf16.msra.mxu0 %v1395
    %1415 = vmatprep.subr.bf16.mxu0 0
    %1416 = vmatpush1.bf16.msra.mxu0 %v1396
    %1417 = vmatprep.subr.bf16.mxu0 0
    %1418 = vmatpush1.bf16.msra.mxu0 %v1397
    %1419 = vmatprep.subr.bf16.mxu0 0
    %1420 = vmatpush1.bf16.msra.mxu0 %v1398
    %1421 = vmatprep.subr.bf16.mxu0 0
    %1422 = vmatpush1.bf16.msra.mxu0 %v1399
    %1423 = vmatprep.subr.bf16.mxu0 0
    %1424 = vmatpush1.bf16.msra.mxu0 %v1400
    %1425 = vmatprep.subr.bf16.mxu0 0
    %1426 = vmatpush1.bf16.msra.mxu0 0
    %1427 = vmatprep.subr.bf16.mxu0 0
    %1428 = vmatpush1.bf16.msra.mxu0 0
    %1429 = vmatprep.subr.bf16.mxu0 0
    %1430 = vmatpush1.bf16.msra.mxu0 0
    %1431 = vmatprep.subr.bf16.mxu0 0
    %1432 = vmatpush1.bf16.msra.mxu0 0
    %1433 = vmatprep.subr.bf16.mxu0 0
    %1434 = vmatpush1.bf16.msra.mxu0 0
    %1435 = vmatprep.subr.bf16.mxu0 0
    %1436 = vmatpush1.bf16.msra.mxu0 0
    %1437 = vmatprep.subr.bf16.mxu0 0
    %1438 = vmatpush1.bf16.msra.mxu0 0
    %1439 = vmatprep.subr.bf16.mxu0 0
    %1440 = vmatpush1.bf16.msra.mxu0 0
    %1441 = vmatprep.mubr.bf16.mxu0 0
    %1442 = vmatmul.mubr.bf16.gmra.mrb[0].mxu0 %v1334
    %v1443 = vpop.f32.mrb[0].mxu0
    %v1444 = vadd.f32 %v1359, %v1443
    %v1445 = vpop.f32.mrb[0].mxu0
    %v1446 = vpop.f32.mrb[0].mxu0
    %v1447 = vadd.f32 %v1359, %v1446
    %v1448 = vpop.f32.mrb[0].mxu0
    %1449 = vmatprep.mubr.bf16.mxu0 0
    %1450 = vmatmul.mubr.bf16.gmra.mrb[0].mxu0 %v1335
    %v1451 = vpop.f32.mrb[0].mxu0
    %v1452 = vadd.f32 %v1359, %v1451
    %v1453 = vpop.f32.mrb[0].mxu0
    %v1454 = vpop.f32.mrb[0].mxu0
    %v1455 = vadd.f32 %v1359, %v1454
    %v1456 = vpop.f32.mrb[0].mxu0
    %1457 = vdwg.mxu0
    %v1458 = vmul.f32 %v1444, %v1297
    %v1459 = vmul.f32 %v1447, %v1298
    %v1460 = vmul.f32 %v1452, %v1299
    %v1461 = vmul.f32 %v1455, %v1300
    %s1462 = scalar_lea.vmem %s6, 4
    %v1463 = vld [vmem:[%s1462] sm:$0x1]
    %s1464 = scalar_lea.vmem %s7, 4
    %v1465 = vld [vmem:[%s1464] sm:$0x1]
    %v1466 = vadd.f32 %v1458, %v1459
    %v1467 = vadd.f32 %v1466, %v1460
    %v1468 = vadd.f32 %v1467, %v1461
    %v1469 = vrot.slane %v1468, 4
    %v1470 = vadd.f32 %v1468, %v1469
    %v1471 = vrot.slane %v1470, 2
    %v1472 = vadd.f32 %v1470, %v1471
    %v1473 = vrot.slane %v1472, 1
    %v1474 = vadd.f32 %v1472, %v1473
    %v1475 = vmul.f32 %v1474, %v515
    %v1476 = vsub.f32 %v1458, %v1475
    %v1477 = vsub.f32 %v1459, %v1475
    %v1478 = vsub.f32 %v1460, %v1475
    %v1479 = vsub.f32 %v1461, %v1475
    %v1480 = vmul.f32 %v1476, %v1476
    %v1481 = vmul.f32 %v1477, %v1477
    %v1482 = vmul.f32 %v1478, %v1478
    %v1483 = vmul.f32 %v1479, %v1479
    %v1484 = vadd.f32 %v1480, %v1481
    %v1485 = vadd.f32 %v1484, %v1482
    %v1486 = vadd.f32 %v1485, %v1483
    %v1487 = vrot.slane %v1486, 4
    %v1488 = vadd.f32 %v1486, %v1487
    %v1489 = vrot.slane %v1488, 2
    %v1490 = vadd.f32 %v1488, %v1489
    %v1491 = vrot.slane %v1490, 1
    %v1492 = vadd.f32 %v1490, %v1491
    %v1493 = vmul.f32 %v1492, %v515
    %v1494 = vadd.f32 %v1493, 1e-05
    %v1495 = vrsqrt.pop %v1494
    %v1496 = vmul.f32 %v1463, %v1495
    %v1498 = vlaneseq
    %v1499 = vshrl.u32 %v1498, 7
    %v1500 = vsub.s32 0, %v1499
    %v1501 = vrot.slane %v1496, %v1500
    %v1503 = vmul.f32 %v1476, %v1501
    %v1504 = vmul.f32 %v1477, %v1501
    %v1505 = vmul.f32 %v1478, %v1501
    %v1506 = vmul.f32 %v1479, %v1501
    %v1508 = vlaneseq
    %v1509 = vshrl.u32 %v1508, 7
    %v1510 = vsub.s32 0, %v1509
    %v1511 = vrot.slane %v1465, %v1510
    %v1513 = vadd.f32 %v1503, %v1511
    %v1514 = vadd.f32 %v1504, %v1511
    %v1515 = vadd.f32 %v1505, %v1511
    %v1516 = vadd.f32 %v1506, %v1511
    %v1517 = vmax.f32 %v1513, 0.0
    %v1518 = vmax.f32 %v1514, 0.0
    %v1519 = vmax.f32 %v1515, 0.0
    %v1520 = vmax.f32 %v1516, 0.0
    %v1521 = vrot.slane %v1517, 4
    %v1522 = vrot.slane %v1518, 4
    %v1523 = vrot.slane %v1519, 4
    %v1524 = vrot.slane %v1520, 4
    %v1525 = vsel %vm1305, %v1523, %v1524
    %v1526 = vsel %vm1305, %v1522, %v1523
    %v1527 = vsel %vm1305, %v1521, %v1522
    %v1528 = vsel %vm1305, %v1524, %v1521
    %1529 = vrot.lane.b32.xlu0 %v1517, 32
    %v1530 = vpop.permute.xlu0 %1529
    %1531 = vrot.lane.b32.xlu0 %v1518, 32
    %v1532 = vpop.permute.xlu0 %1531
    %1533 = vrot.lane.b32.xlu0 %v1519, 32
    %v1534 = vpop.permute.xlu0 %1533
    %1535 = vrot.lane.b32.xlu0 %v1520, 32
    %v1536 = vpop.permute.xlu0 %1535
    %v1537 = vadd.f32 %v1528, %v1530
    %v1538 = vadd.f32 %v1527, %v1532
    %v1539 = vadd.f32 %v1526, %v1534
    %v1540 = vadd.f32 %v1525, %v1536
    %1541 = vrot.lane.b32.xlu0 %v1527, 64
    %v1542 = vpop.permute.xlu0 %1541
    %1543 = vrot.lane.b32.xlu0 %v1526, 64
    %v1544 = vpop.permute.xlu0 %1543
    %1545 = vrot.lane.b32.xlu0 %v1525, 64
    %v1546 = vpop.permute.xlu0 %1545
    %1547 = vrot.lane.b32.xlu0 %v1528, 64
    %v1548 = vpop.permute.xlu0 %1547
    %v1549 = vadd.f32 %v1537, %v1542
    %v1550 = vadd.f32 %v1538, %v1544
    %v1551 = vadd.f32 %v1539, %v1546
    %v1552 = vadd.f32 %v1540, %v1548
    %v1553 = vpack.c.bf16 %v1550, %v1549
    %v1554 = vpack.c.bf16 %v1552, %v1551
    %s1555 = scalar_lea.vmem [#allocation9], 320
    %v1556 = vld [vmem:[%s1555] sm:$0xf]
    %v1557 = vld [vmem:[%s1555 + $0x4] sm:$0xf]
    %v1558 = vld [vmem:[%s1555 + $0x8] sm:$0xf]
    %v1559 = vld [vmem:[%s1555 + $0xc] sm:$0xf]
    %v1560 = vld [vmem:[%s1555 + $0x10] sm:$0xf]
    %v1561 = vld [vmem:[%s1555 + $0x14] sm:$0xf]
    %v1562 = vld [vmem:[%s1555 + $0x18] sm:$0xf]
    %v1563 = vld [vmem:[%s1555 + $0x1c] sm:$0xf]
    %v1564 = vld [vmem:[%s1555 + $0x20] sm:$0xf]
    %v1565 = vld [vmem:[%s1555 + $0x24] sm:$0xf]
    %v1566 = vld [vmem:[%s1555 + $0x28] sm:$0xf]
    %v1567 = vld [vmem:[%s1555 + $0x2c] sm:$0xf]
    %v1568 = vld [vmem:[%s1555 + $0x30] sm:$0xf]
    %v1569 = vld [vmem:[%s1555 + $0x34] sm:$0xf]
    %v1570 = vld [vmem:[%s1555 + $0x38] sm:$0xf]
    %v1571 = vld [vmem:[%s1555 + $0x3c] sm:$0xf]
    %s1572 = scalar_lea.vmem %s5, 5
    %v1573 = vld [vmem:[%s1572] sm:$0x1]
    %v1575 = vlaneseq
    %v1576 = vshrl.u32 %v1575, 7
    %v1577 = vsub.s32 0, %v1576
    %v1578 = vrot.slane %v1573, %v1577
    %v1596 = vunpack.c.l.b16 %v1556
    %v1597 = vunpack.c.l.b16 %v1557
    %v1598 = vunpack.c.l.b16 %v1558
    %v1599 = vunpack.c.l.b16 %v1559
    %v1600 = vunpack.c.l.b16 %v1560
    %v1601 = vunpack.c.l.b16 %v1561
    %v1602 = vunpack.c.l.b16 %v1562
    %v1603 = vunpack.c.l.b16 %v1563
    %v1604 = vunpack.c.l.b16 %v1564
    %v1605 = vunpack.c.l.b16 %v1565
    %v1606 = vunpack.c.l.b16 %v1566
    %v1607 = vunpack.c.l.b16 %v1567
    %v1608 = vunpack.c.l.b16 %v1568
    %v1609 = vunpack.c.l.b16 %v1569
    %v1610 = vunpack.c.l.b16 %v1570
    %v1611 = vunpack.c.l.b16 %v1571
    %v1612 = vpack.c.b16 %v1597, %v1596
    %v1613 = vpack.c.b16 %v1599, %v1598
    %v1614 = vpack.c.b16 %v1601, %v1600
    %v1615 = vpack.c.b16 %v1603, %v1602
    %v1616 = vpack.c.b16 %v1605, %v1604
    %v1617 = vpack.c.b16 %v1607, %v1606
    %v1618 = vpack.c.b16 %v1609, %v1608
    %v1619 = vpack.c.b16 %v1611, %v1610
    %1628 = vmatprep.subr.bf16.mxu0 0
    %1629 = vmatpush1.bf16.msra.mxu0 %v1612
    %1630 = vmatprep.subr.bf16.mxu0 0
    %1631 = vmatpush1.bf16.msra.mxu0 %v1613
    %1632 = vmatprep.subr.bf16.mxu0 0
    %1633 = vmatpush1.bf16.msra.mxu0 %v1614
    %1634 = vmatprep.subr.bf16.mxu0 0
    %1635 = vmatpush1.bf16.msra.mxu0 %v1615
    %1636 = vmatprep.subr.bf16.mxu0 0
    %1637 = vmatpush1.bf16.msra.mxu0 %v1616
    %1638 = vmatprep.subr.bf16.mxu0 0
    %1639 = vmatpush1.bf16.msra.mxu0 %v1617
    %1640 = vmatprep.subr.bf16.mxu0 0
    %1641 = vmatpush1.bf16.msra.mxu0 %v1618
    %1642 = vmatprep.subr.bf16.mxu0 0
    %1643 = vmatpush1.bf16.msra.mxu0 %v1619
    %1644 = vmatprep.subr.bf16.mxu0 0
    %1645 = vmatpush1.bf16.msra.mxu0 0
    %1646 = vmatprep.subr.bf16.mxu0 0
    %1647 = vmatpush1.bf16.msra.mxu0 0
    %1648 = vmatprep.subr.bf16.mxu0 0
    %1649 = vmatpush1.bf16.msra.mxu0 0
    %1650 = vmatprep.subr.bf16.mxu0 0
    %1651 = vmatpush1.bf16.msra.mxu0 0
    %1652 = vmatprep.subr.bf16.mxu0 0
    %1653 = vmatpush1.bf16.msra.mxu0 0
    %1654 = vmatprep.subr.bf16.mxu0 0
    %1655 = vmatpush1.bf16.msra.mxu0 0
    %1656 = vmatprep.subr.bf16.mxu0 0
    %1657 = vmatpush1.bf16.msra.mxu0 0
    %1658 = vmatprep.subr.bf16.mxu0 0
    %1659 = vmatpush1.bf16.msra.mxu0 0
    %1660 = vmatprep.mubr.bf16.mxu0 0
    %1661 = vmatmul.mubr.bf16.gmra.mrb[0].mxu0 %v1553
    %v1662 = vpop.f32.mrb[0].mxu0
    %v1663 = vadd.f32 %v1578, %v1662
    %v1664 = vpop.f32.mrb[0].mxu0
    %v1665 = vpop.f32.mrb[0].mxu0
    %v1666 = vadd.f32 %v1578, %v1665
    %v1667 = vpop.f32.mrb[0].mxu0
    %1668 = vmatprep.mubr.bf16.mxu0 0
    %1669 = vmatmul.mubr.bf16.gmra.mrb[0].mxu0 %v1554
    %v1670 = vpop.f32.mrb[0].mxu0
    %v1671 = vadd.f32 %v1578, %v1670
    %v1672 = vpop.f32.mrb[0].mxu0
    %v1673 = vpop.f32.mrb[0].mxu0
    %v1674 = vadd.f32 %v1578, %v1673
    %v1675 = vpop.f32.mrb[0].mxu0
    %1676 = vdwg.mxu0
    %v1677 = vmul.f32 %v1663, %v1297
    %v1678 = vmul.f32 %v1666, %v1298
    %v1679 = vmul.f32 %v1671, %v1299
    %v1680 = vmul.f32 %v1674, %v1300
    %s1681 = scalar_lea.vmem %s6, 5
    %v1682 = vld [vmem:[%s1681] sm:$0x1]
    %s1683 = scalar_lea.vmem %s7, 5
    %v1684 = vld [vmem:[%s1683] sm:$0x1]
    %v1685 = vadd.f32 %v1677, %v1678
    %v1686 = vadd.f32 %v1685, %v1679
    %v1687 = vadd.f32 %v1686, %v1680
    %v1688 = vrot.slane %v1687, 4
    %v1689 = vadd.f32 %v1687, %v1688
    %v1690 = vrot.slane %v1689, 2
    %v1691 = vadd.f32 %v1689, %v1690
    %v1692 = vrot.slane %v1691, 1
    %v1693 = vadd.f32 %v1691, %v1692
    %v1694 = vmul.f32 %v1693, %v515
    %v1695 = vsub.f32 %v1677, %v1694
    %v1696 = vsub.f32 %v1678, %v1694
    %v1697 = vsub.f32 %v1679, %v1694
    %v1698 = vsub.f32 %v1680, %v1694
    %v1699 = vmul.f32 %v1695, %v1695
    %v1700 = vmul.f32 %v1696, %v1696
    %v1701 = vmul.f32 %v1697, %v1697
    %v1702 = vmul.f32 %v1698, %v1698
    %v1703 = vadd.f32 %v1699, %v1700
    %v1704 = vadd.f32 %v1703, %v1701
    %v1705 = vadd.f32 %v1704, %v1702
    %v1706 = vrot.slane %v1705, 4
    %v1707 = vadd.f32 %v1705, %v1706
    %v1708 = vrot.slane %v1707, 2
    %v1709 = vadd.f32 %v1707, %v1708
    %v1710 = vrot.slane %v1709, 1
    %v1711 = vadd.f32 %v1709, %v1710
    %v1712 = vmul.f32 %v1711, %v515
    %v1713 = vadd.f32 %v1712, 1e-05
    %v1714 = vrsqrt.pop %v1713
    %v1715 = vmul.f32 %v1682, %v1714
    %v1717 = vlaneseq
    %v1718 = vshrl.u32 %v1717, 7
    %v1719 = vsub.s32 0, %v1718
    %v1720 = vrot.slane %v1715, %v1719
    %v1722 = vmul.f32 %v1695, %v1720
    %v1723 = vmul.f32 %v1696, %v1720
    %v1724 = vmul.f32 %v1697, %v1720
    %v1725 = vmul.f32 %v1698, %v1720
    %v1727 = vlaneseq
    %v1728 = vshrl.u32 %v1727, 7
    %v1729 = vsub.s32 0, %v1728
    %v1730 = vrot.slane %v1684, %v1729
    %v1732 = vadd.f32 %v1722, %v1730
    %v1733 = vadd.f32 %v1723, %v1730
    %v1734 = vadd.f32 %v1724, %v1730
    %v1735 = vadd.f32 %v1725, %v1730
    %v1736 = vmax.f32 %v1732, 0.0
    %v1737 = vmax.f32 %v1733, 0.0
    %v1738 = vmax.f32 %v1734, 0.0
    %v1739 = vmax.f32 %v1735, 0.0
    %v1740 = vadd.f32 %v1736, %v1277
    %v1741 = vadd.f32 %v1737, %v1278
    %v1742 = vadd.f32 %v1738, %v1279
    %v1743 = vadd.f32 %v1739, %v1280
    %v1744 = vmul.f32 %v1740, %v172
    %v1745 = vmul.f32 %v1741, %v173
    %v1746 = vmul.f32 %v1742, %v174
    %v1747 = vmul.f32 %v1743, %v175
    %v1748 = vrot.slane %v1744, 7
    %v1749 = vrot.slane %v1745, 7
    %v1750 = vrot.slane %v1746, 7
    %v1751 = vrot.slane %v1747, 7
    %v1752 = vsel %vm340, %v1750, %v1751
    %v1753 = vsel %vm340, %v1749, %v1750
    %v1754 = vsel %vm340, %v1748, %v1749
    %v1755 = vsel %vm340, %v1751, %v1748
    %1756 = vrot.lane.b32.xlu0 %v1744, 32
    %v1757 = vpop.permute.xlu0 %1756
    %1758 = vrot.lane.b32.xlu0 %v1745, 32
    %v1759 = vpop.permute.xlu0 %1758
    %1760 = vrot.lane.b32.xlu0 %v1746, 32
    %v1761 = vpop.permute.xlu0 %1760
    %1762 = vrot.lane.b32.xlu0 %v1747, 32
    %v1763 = vpop.permute.xlu0 %1762
    %v1764 = vadd.f32 %v1755, %v1757
    %v1765 = vadd.f32 %v1754, %v1759
    %v1766 = vadd.f32 %v1753, %v1761
    %v1767 = vadd.f32 %v1752, %v1763
    %v1768 = vrot.slane %v1744, 1
    %v1769 = vrot.slane %v1745, 1
    %v1770 = vrot.slane %v1746, 1
    %v1771 = vrot.slane %v1747, 1
    %v1772 = vsel %vm361, %v1770, %v1771
    %v1773 = vsel %vm361, %v1769, %v1770
    %v1774 = vsel %vm361, %v1768, %v1769
    %v1775 = vsel %vm361, %v1771, %v1768
    %1776 = vrot.lane.b32.xlu0 %v1774, 64
    %v1777 = vpop.permute.xlu0 %1776
    %1778 = vrot.lane.b32.xlu0 %v1773, 64
    %v1779 = vpop.permute.xlu0 %1778
    %1780 = vrot.lane.b32.xlu0 %v1772, 64
    %v1781 = vpop.permute.xlu0 %1780
    %1782 = vrot.lane.b32.xlu0 %v1775, 64
    %v1783 = vpop.permute.xlu0 %1782
    %v1784 = vadd.f32 %v1764, %v1777
    %v1785 = vadd.f32 %v1765, %v1779
    %v1786 = vadd.f32 %v1766, %v1781
    %v1787 = vadd.f32 %v1767, %v1783
    %v1788 = vpack.c.bf16 %v1785, %v1784
    %v1789 = vpack.c.bf16 %v1787, %v1786
    %s1790 = scalar_lea.vmem [#allocation9], 384
    %v1791 = vld [vmem:[%s1790] sm:$0xf]
    %v1792 = vld [vmem:[%s1790 + $0x4] sm:$0xf]
    %v1793 = vld [vmem:[%s1790 + $0x8] sm:$0xf]
    %v1794 = vld [vmem:[%s1790 + $0xc] sm:$0xf]
    %v1795 = vld [vmem:[%s1790 + $0x10] sm:$0xf]
    %v1796 = vld [vmem:[%s1790 + $0x14] sm:$0xf]
    %v1797 = vld [vmem:[%s1790 + $0x18] sm:$0xf]
    %v1798 = vld [vmem:[%s1790 + $0x1c] sm:$0xf]
    %v1799 = vld [vmem:[%s1790 + $0x20] sm:$0xf]
    %v1800 = vld [vmem:[%s1790 + $0x24] sm:$0xf]
    %v1801 = vld [vmem:[%s1790 + $0x28] sm:$0xf]
    %v1802 = vld [vmem:[%s1790 + $0x2c] sm:$0xf]
    %v1803 = vld [vmem:[%s1790 + $0x30] sm:$0xf]
    %v1804 = vld [vmem:[%s1790 + $0x34] sm:$0xf]
    %v1805 = vld [vmem:[%s1790 + $0x38] sm:$0xf]
    %v1806 = vld [vmem:[%s1790 + $0x3c] sm:$0xf]
    %s1807 = scalar_lea.vmem %s5, 6
    %v1808 = vld [vmem:[%s1807] sm:$0x1]
    %v1810 = vlaneseq
    %v1811 = vshrl.u32 %v1810, 7
    %v1812 = vsub.s32 0, %v1811
    %v1813 = vrot.slane %v1808, %v1812
    %v1831 = vunpack.c.l.b16 %v1791
    %v1832 = vunpack.c.l.b16 %v1792
    %v1833 = vunpack.c.l.b16 %v1793
    %v1834 = vunpack.c.l.b16 %v1794
    %v1835 = vunpack.c.l.b16 %v1795
    %v1836 = vunpack.c.l.b16 %v1796
    %v1837 = vunpack.c.l.b16 %v1797
    %v1838 = vunpack.c.l.b16 %v1798
    %v1839 = vunpack.c.l.b16 %v1799
    %v1840 = vunpack.c.l.b16 %v1800
    %v1841 = vunpack.c.l.b16 %v1801
    %v1842 = vunpack.c.l.b16 %v1802
    %v1843 = vunpack.c.l.b16 %v1803
    %v1844 = vunpack.c.l.b16 %v1804
    %v1845 = vunpack.c.l.b16 %v1805
    %v1846 = vunpack.c.l.b16 %v1806
    %v1847 = vpack.c.b16 %v1832, %v1831
    %v1848 = vpack.c.b16 %v1834, %v1833
    %v1849 = vpack.c.b16 %v1836, %v1835
    %v1850 = vpack.c.b16 %v1838, %v1837
    %v1851 = vpack.c.b16 %v1840, %v1839
    %v1852 = vpack.c.b16 %v1842, %v1841
    %v1853 = vpack.c.b16 %v1844, %v1843
    %v1854 = vpack.c.b16 %v1846, %v1845
    %1863 = vmatprep.subr.bf16.mxu0 0
    %1864 = vmatpush1.bf16.msra.mxu0 %v1847
    %1865 = vmatprep.subr.bf16.mxu0 0
    %1866 = vmatpush1.bf16.msra.mxu0 %v1848
    %1867 = vmatprep.subr.bf16.mxu0 0
    %1868 = vmatpush1.bf16.msra.mxu0 %v1849
    %1869 = vmatprep.subr.bf16.mxu0 0
    %1870 = vmatpush1.bf16.msra.mxu0 %v1850
    %1871 = vmatprep.subr.bf16.mxu0 0
    %1872 = vmatpush1.bf16.msra.mxu0 %v1851
    %1873 = vmatprep.subr.bf16.mxu0 0
    %1874 = vmatpush1.bf16.msra.mxu0 %v1852
    %1875 = vmatprep.subr.bf16.mxu0 0
    %1876 = vmatpush1.bf16.msra.mxu0 %v1853
    %1877 = vmatprep.subr.bf16.mxu0 0
    %1878 = vmatpush1.bf16.msra.mxu0 %v1854
    %1879 = vmatprep.subr.bf16.mxu0 0
    %1880 = vmatpush1.bf16.msra.mxu0 0
    %1881 = vmatprep.subr.bf16.mxu0 0
    %1882 = vmatpush1.bf16.msra.mxu0 0
    %1883 = vmatprep.subr.bf16.mxu0 0
    %1884 = vmatpush1.bf16.msra.mxu0 0
    %1885 = vmatprep.subr.bf16.mxu0 0
    %1886 = vmatpush1.bf16.msra.mxu0 0
    %1887 = vmatprep.subr.bf16.mxu0 0
    %1888 = vmatpush1.bf16.msra.mxu0 0
    %1889 = vmatprep.subr.bf16.mxu0 0
    %1890 = vmatpush1.bf16.msra.mxu0 0
    %1891 = vmatprep.subr.bf16.mxu0 0
    %1892 = vmatpush1.bf16.msra.mxu0 0
    %1893 = vmatprep.subr.bf16.mxu0 0
    %1894 = vmatpush1.bf16.msra.mxu0 0
    %1895 = vmatprep.mubr.bf16.mxu0 0
    %1896 = vmatmul.mubr.bf16.gmra.mrb[0].mxu0 %v1788
    %v1897 = vpop.f32.mrb[0].mxu0
    %v1898 = vadd.f32 %v1813, %v1897
    %v1899 = vpop.f32.mrb[0].mxu0
    %v1900 = vpop.f32.mrb[0].mxu0
    %v1901 = vadd.f32 %v1813, %v1900
    %v1902 = vpop.f32.mrb[0].mxu0
    %1903 = vmatprep.mubr.bf16.mxu0 0
    %1904 = vmatmul.mubr.bf16.gmra.mrb[0].mxu0 %v1789
    %v1905 = vpop.f32.mrb[0].mxu0
    %v1906 = vadd.f32 %v1813, %v1905
    %v1907 = vpop.f32.mrb[0].mxu0
    %v1908 = vpop.f32.mrb[0].mxu0
    %v1909 = vadd.f32 %v1813, %v1908
    %v1910 = vpop.f32.mrb[0].mxu0
    %1911 = vdwg.mxu0
    %v1912 = vmul.f32 %v1898, %v332
    %v1913 = vmul.f32 %v1901, %v333
    %v1914 = vmul.f32 %v1906, %v334
    %v1915 = vmul.f32 %v1909, %v335
    %s1916 = scalar_lea.vmem %s6, 6
    %v1917 = vld [vmem:[%s1916] sm:$0x1]
    %s1918 = scalar_lea.vmem %s7, 6
    %v1919 = vld [vmem:[%s1918] sm:$0x1]
    %v1920 = vadd.f32 %v1912, %v1913
    %v1921 = vadd.f32 %v1920, %v1914
    %v1922 = vadd.f32 %v1921, %v1915
    %v1923 = vrot.slane %v1922, 4
    %v1924 = vadd.f32 %v1922, %v1923
    %v1925 = vrot.slane %v1924, 2
    %v1926 = vadd.f32 %v1924, %v1925
    %v1927 = vrot.slane %v1926, 1
    %v1928 = vadd.f32 %v1926, %v1927
    %v1929 = vmul.f32 %v1928, %v515
    %v1930 = vsub.f32 %v1912, %v1929
    %v1931 = vsub.f32 %v1913, %v1929
    %v1932 = vsub.f32 %v1914, %v1929
    %v1933 = vsub.f32 %v1915, %v1929
    %v1934 = vmul.f32 %v1930, %v1930
    %v1935 = vmul.f32 %v1931, %v1931
    %v1936 = vmul.f32 %v1932, %v1932
    %v1937 = vmul.f32 %v1933, %v1933
    %v1938 = vadd.f32 %v1934, %v1935
    %v1939 = vadd.f32 %v1938, %v1936
    %v1940 = vadd.f32 %v1939, %v1937
    %v1941 = vrot.slane %v1940, 4
    %v1942 = vadd.f32 %v1940, %v1941
    %v1943 = vrot.slane %v1942, 2
    %v1944 = vadd.f32 %v1942, %v1943
    %v1945 = vrot.slane %v1944, 1
    %v1946 = vadd.f32 %v1944, %v1945
    %v1947 = vmul.f32 %v1946, %v515
    %v1948 = vadd.f32 %v1947, 1e-05
    %v1949 = vrsqrt.pop %v1948
    %v1950 = vmul.f32 %v1917, %v1949
    %v1952 = vlaneseq
    %v1953 = vshrl.u32 %v1952, 7
    %v1954 = vsub.s32 0, %v1953
    %v1955 = vrot.slane %v1950, %v1954
    %v1957 = vmul.f32 %v1930, %v1955
    %v1958 = vmul.f32 %v1931, %v1955
    %v1959 = vmul.f32 %v1932, %v1955
    %v1960 = vmul.f32 %v1933, %v1955
    %v1962 = vlaneseq
    %v1963 = vshrl.u32 %v1962, 7
    %v1964 = vsub.s32 0, %v1963
    %v1965 = vrot.slane %v1919, %v1964
    %v1967 = vadd.f32 %v1957, %v1965
    %v1968 = vadd.f32 %v1958, %v1965
    %v1969 = vadd.f32 %v1959, %v1965
    %v1970 = vadd.f32 %v1960, %v1965
    %v1971 = vmax.f32 %v1967, 0.0
    %v1972 = vmax.f32 %v1968, 0.0
    %v1973 = vmax.f32 %v1969, 0.0
    %v1974 = vmax.f32 %v1970, 0.0
    %v1975 = vrot.slane %v1971, 7
    %v1976 = vrot.slane %v1972, 7
    %v1977 = vrot.slane %v1973, 7
    %v1978 = vrot.slane %v1974, 7
    %v1979 = vsel %vm340, %v1977, %v1978
    %v1980 = vsel %vm340, %v1976, %v1977
    %v1981 = vsel %vm340, %v1975, %v1976
    %v1982 = vsel %vm340, %v1978, %v1975
    %1983 = vrot.lane.b32.xlu0 %v1971, 32
    %v1984 = vpop.permute.xlu0 %1983
    %1985 = vrot.lane.b32.xlu0 %v1972, 32
    %v1986 = vpop.permute.xlu0 %1985
    %1987 = vrot.lane.b32.xlu0 %v1973, 32
    %v1988 = vpop.permute.xlu0 %1987
    %1989 = vrot.lane.b32.xlu0 %v1974, 32
    %v1990 = vpop.permute.xlu0 %1989
    %v1991 = vadd.f32 %v1982, %v1984
    %v1992 = vadd.f32 %v1981, %v1986
    %v1993 = vadd.f32 %v1980, %v1988
    %v1994 = vadd.f32 %v1979, %v1990
    %v1995 = vrot.slane %v1971, 1
    %v1996 = vrot.slane %v1972, 1
    %v1997 = vrot.slane %v1973, 1
    %v1998 = vrot.slane %v1974, 1
    %v1999 = vsel %vm361, %v1997, %v1998
    %v2000 = vsel %vm361, %v1996, %v1997
    %v2001 = vsel %vm361, %v1995, %v1996
    %v2002 = vsel %vm361, %v1998, %v1995
    %2003 = vrot.lane.b32.xlu0 %v2001, 64
    %v2004 = vpop.permute.xlu0 %2003
    %2005 = vrot.lane.b32.xlu0 %v2000, 64
    %v2006 = vpop.permute.xlu0 %2005
    %2007 = vrot.lane.b32.xlu0 %v1999, 64
    %v2008 = vpop.permute.xlu0 %2007
    %2009 = vrot.lane.b32.xlu0 %v2002, 64
    %v2010 = vpop.permute.xlu0 %2009
    %v2011 = vadd.f32 %v1991, %v2004
    %v2012 = vadd.f32 %v1992, %v2006
    %v2013 = vadd.f32 %v1993, %v2008
    %v2014 = vadd.f32 %v1994, %v2010
    %v2015 = vpack.c.bf16 %v2012, %v2011
    %v2016 = vpack.c.bf16 %v2014, %v2013
    %s2017 = scalar_lea.vmem [#allocation9], 448
    %v2018 = vld [vmem:[%s2017] sm:$0xf]
    %v2019 = vld [vmem:[%s2017 + $0x4] sm:$0xf]
    %v2020 = vld [vmem:[%s2017 + $0x8] sm:$0xf]
    %v2021 = vld [vmem:[%s2017 + $0xc] sm:$0xf]
    %v2022 = vld [vmem:[%s2017 + $0x10] sm:$0xf]
    %v2023 = vld [vmem:[%s2017 + $0x14] sm:$0xf]
    %v2024 = vld [vmem:[%s2017 + $0x18] sm:$0xf]
    %v2025 = vld [vmem:[%s2017 + $0x1c] sm:$0xf]
    %v2026 = vld [vmem:[%s2017 + $0x20] sm:$0xf]
    %v2027 = vld [vmem:[%s2017 + $0x24] sm:$0xf]
    %v2028 = vld [vmem:[%s2017 + $0x28] sm:$0xf]
    %v2029 = vld [vmem:[%s2017 + $0x2c] sm:$0xf]
    %v2030 = vld [vmem:[%s2017 + $0x30] sm:$0xf]
    %v2031 = vld [vmem:[%s2017 + $0x34] sm:$0xf]
    %v2032 = vld [vmem:[%s2017 + $0x38] sm:$0xf]
    %v2033 = vld [vmem:[%s2017 + $0x3c] sm:$0xf]
    %s2034 = scalar_lea.vmem %s5, 7
    %v2035 = vld [vmem:[%s2034] sm:$0x1]
    %v2037 = vlaneseq
    %v2038 = vshrl.u32 %v2037, 7
    %v2039 = vsub.s32 0, %v2038
    %v2040 = vrot.slane %v2035, %v2039
    %v2058 = vunpack.c.l.b16 %v2018
    %v2059 = vunpack.c.l.b16 %v2019
    %v2060 = vunpack.c.l.b16 %v2020
    %v2061 = vunpack.c.l.b16 %v2021
    %v2062 = vunpack.c.l.b16 %v2022
    %v2063 = vunpack.c.l.b16 %v2023
    %v2064 = vunpack.c.l.b16 %v2024
    %v2065 = vunpack.c.l.b16 %v2025
    %v2066 = vunpack.c.l.b16 %v2026
    %v2067 = vunpack.c.l.b16 %v2027
    %v2068 = vunpack.c.l.b16 %v2028
    %v2069 = vunpack.c.l.b16 %v2029
    %v2070 = vunpack.c.l.b16 %v2030
    %v2071 = vunpack.c.l.b16 %v2031
    %v2072 = vunpack.c.l.b16 %v2032
    %v2073 = vunpack.c.l.b16 %v2033
    %v2074 = vpack.c.b16 %v2059, %v2058
    %v2075 = vpack.c.b16 %v2061, %v2060
    %v2076 = vpack.c.b16 %v2063, %v2062
    %v2077 = vpack.c.b16 %v2065, %v2064
    %v2078 = vpack.c.b16 %v2067, %v2066
    %v2079 = vpack.c.b16 %v2069, %v2068
    %v2080 = vpack.c.b16 %v2071, %v2070
    %v2081 = vpack.c.b16 %v2073, %v2072
    %2090 = vmatprep.subr.bf16.mxu0 0
    %2091 = vmatpush1.bf16.msra.mxu0 %v2074
    %2092 = vmatprep.subr.bf16.mxu0 0
    %2093 = vmatpush1.bf16.msra.mxu0 %v2075
    %2094 = vmatprep.subr.bf16.mxu0 0
    %2095 = vmatpush1.bf16.msra.mxu0 %v2076
    %2096 = vmatprep.subr.bf16.mxu0 0
    %2097 = vmatpush1.bf16.msra.mxu0 %v2077
    %2098 = vmatprep.subr.bf16.mxu0 0
    %2099 = vmatpush1.bf16.msra.mxu0 %v2078
    %2100 = vmatprep.subr.bf16.mxu0 0
    %2101 = vmatpush1.bf16.msra.mxu0 %v2079
    %2102 = vmatprep.subr.bf16.mxu0 0
    %2103 = vmatpush1.bf16.msra.mxu0 %v2080
    %2104 = vmatprep.subr.bf16.mxu0 0
    %2105 = vmatpush1.bf16.msra.mxu0 %v2081
    %2106 = vmatprep.subr.bf16.mxu0 0
    %2107 = vmatpush1.bf16.msra.mxu0 0
    %2108 = vmatprep.subr.bf16.mxu0 0
    %2109 = vmatpush1.bf16.msra.mxu0 0
    %2110 = vmatprep.subr.bf16.mxu0 0
    %2111 = vmatpush1.bf16.msra.mxu0 0
    %2112 = vmatprep.subr.bf16.mxu0 0
    %2113 = vmatpush1.bf16.msra.mxu0 0
    %2114 = vmatprep.subr.bf16.mxu0 0
    %2115 = vmatpush1.bf16.msra.mxu0 0
    %2116 = vmatprep.subr.bf16.mxu0 0
    %2117 = vmatpush1.bf16.msra.mxu0 0
    %2118 = vmatprep.subr.bf16.mxu0 0
    %2119 = vmatpush1.bf16.msra.mxu0 0
    %2120 = vmatprep.subr.bf16.mxu0 0
    %2121 = vmatpush1.bf16.msra.mxu0 0
    %2122 = vmatprep.mubr.bf16.mxu0 0
    %2123 = vmatmul.mubr.bf16.gmra.mrb[0].mxu0 %v2015
    %v2124 = vpop.f32.mrb[0].mxu0
    %v2125 = vadd.f32 %v2040, %v2124
    %v2126 = vpop.f32.mrb[0].mxu0
    %v2127 = vpop.f32.mrb[0].mxu0
    %v2128 = vadd.f32 %v2040, %v2127
    %v2129 = vpop.f32.mrb[0].mxu0
    %2130 = vmatprep.mubr.bf16.mxu0 0
    %2131 = vmatmul.mubr.bf16.gmra.mrb[0].mxu0 %v2016
    %v2132 = vpop.f32.mrb[0].mxu0
    %v2133 = vadd.f32 %v2040, %v2132
    %v2134 = vpop.f32.mrb[0].mxu0
    %v2135 = vpop.f32.mrb[0].mxu0
    %v2136 = vadd.f32 %v2040, %v2135
    %v2137 = vpop.f32.mrb[0].mxu0
    %2138 = vdwg.mxu0
    %v2139 = vmul.f32 %v2125, %v332
    %v2140 = vmul.f32 %v2128, %v333
    %v2141 = vmul.f32 %v2133, %v334
    %v2142 = vmul.f32 %v2136, %v335
    %s2143 = scalar_lea.vmem %s6, 7
    %v2144 = vld [vmem:[%s2143] sm:$0x1]
    %s2145 = scalar_lea.vmem %s7, 7
    %v2146 = vld [vmem:[%s2145] sm:$0x1]
    %v2147 = vadd.f32 %v2139, %v2140
    %v2148 = vadd.f32 %v2147, %v2141
    %v2149 = vadd.f32 %v2148, %v2142
    %v2150 = vrot.slane %v2149, 4
    %v2151 = vadd.f32 %v2149, %v2150
    %v2152 = vrot.slane %v2151, 2
    %v2153 = vadd.f32 %v2151, %v2152
    %v2154 = vrot.slane %v2153, 1
    %v2155 = vadd.f32 %v2153, %v2154
    %v2156 = vmul.f32 %v2155, %v515
    %v2157 = vsub.f32 %v2139, %v2156
    %v2158 = vsub.f32 %v2140, %v2156
    %v2159 = vsub.f32 %v2141, %v2156
    %v2160 = vsub.f32 %v2142, %v2156
    %v2161 = vmul.f32 %v2157, %v2157
    %v2162 = vmul.f32 %v2158, %v2158
    %v2163 = vmul.f32 %v2159, %v2159
    %v2164 = vmul.f32 %v2160, %v2160
    %v2165 = vadd.f32 %v2161, %v2162
    %v2166 = vadd.f32 %v2165, %v2163
    %v2167 = vadd.f32 %v2166, %v2164
    %v2168 = vrot.slane %v2167, 4
    %v2169 = vadd.f32 %v2167, %v2168
    %v2170 = vrot.slane %v2169, 2
    %v2171 = vadd.f32 %v2169, %v2170
    %v2172 = vrot.slane %v2171, 1
    %v2173 = vadd.f32 %v2171, %v2172
    %v2174 = vmul.f32 %v2173, %v515
    %v2175 = vadd.f32 %v2174, 1e-05
    %v2176 = vrsqrt.pop %v2175
    %v2177 = vmul.f32 %v2144, %v2176
    %v2179 = vlaneseq
    %v2180 = vshrl.u32 %v2179, 7
    %v2181 = vsub.s32 0, %v2180
    %v2182 = vrot.slane %v2177, %v2181
    %v2184 = vmul.f32 %v2157, %v2182
    %v2185 = vmul.f32 %v2158, %v2182
    %v2186 = vmul.f32 %v2159, %v2182
    %v2187 = vmul.f32 %v2160, %v2182
    %v2189 = vlaneseq
    %v2190 = vshrl.u32 %v2189, 7
    %v2191 = vsub.s32 0, %v2190
    %v2192 = vrot.slane %v2146, %v2191
    %v2194 = vadd.f32 %v2184, %v2192
    %v2195 = vadd.f32 %v2185, %v2192
    %v2196 = vadd.f32 %v2186, %v2192
    %v2197 = vadd.f32 %v2187, %v2192
    %v2198 = vmax.f32 %v2194, 0.0
    %v2199 = vmax.f32 %v2195, 0.0
    %v2200 = vmax.f32 %v2196, 0.0
    %v2201 = vmax.f32 %v2197, 0.0
    %v2202 = vadd.f32 %v2198, %v1744
    %v2203 = vadd.f32 %v2199, %v1745
    %v2204 = vadd.f32 %v2200, %v1746
    %v2205 = vadd.f32 %v2201, %v1747
    %v2206 = vmul.f32 %v2202, %v172
    %v2207 = vmul.f32 %v2203, %v173
    %v2208 = vmul.f32 %v2204, %v174
    %v2209 = vmul.f32 %v2205, %v175
    %v2210 = vunpack.c.l.bf16 %v128
    %v2211 = vunpack.c.l.bf16 %v129
    %v2212 = vunpack.c.l.bf16 %v130
    %v2213 = vunpack.c.l.bf16 %v131
    %v2214 = vadd.f32 %v2206, %v2210
    %v2215 = vadd.f32 %v2207, %v2211
    %v2216 = vadd.f32 %v2208, %v2212
    %v2217 = vadd.f32 %v2209, %v2213
    %v2218 = vpack.c.bf16 %v2215, %v2214
    %v2219 = vpack.c.bf16 %v2217, %v2216
    %v2220 = vld [vmem:[#allocation10] sm:$0xf]
    %v2221 = vld [vmem:[#allocation10 + $0x4] sm:$0xf]
    %v2222 = vld [vmem:[#allocation10 + $0x8] sm:$0xf]
    %v2223 = vld [vmem:[#allocation10 + $0xc] sm:$0xf]
    %v2224 = vld [vmem:[#allocation10 + $0x10] sm:$0xf]
    %v2225 = vld [vmem:[#allocation10 + $0x14] sm:$0xf]
    %v2226 = vld [vmem:[#allocation10 + $0x18] sm:$0xf]
    %v2227 = vld [vmem:[#allocation10 + $0x1c] sm:$0xf]
    %v2228 = vld [vmem:[#allocation10 + $0x20] sm:$0xf]
    %v2229 = vld [vmem:[#allocation10 + $0x24] sm:$0xf]
    %v2230 = vld [vmem:[#allocation10 + $0x28] sm:$0xf]
    %v2231 = vld [vmem:[#allocation10 + $0x2c] sm:$0xf]
    %v2232 = vld [vmem:[#allocation10 + $0x30] sm:$0xf]
    %v2233 = vld [vmem:[#allocation10 + $0x34] sm:$0xf]
    %v2234 = vld [vmem:[#allocation10 + $0x38] sm:$0xf]
    %v2235 = vld [vmem:[#allocation10 + $0x3c] sm:$0xf]
    %v2236 = vld [vmem:[%s9] sm:$0x1]
    %v2238 = vlaneseq
    %v2239 = vshrl.u32 %v2238, 7
    %v2240 = vsub.s32 0, %v2239
    %v2241 = vrot.slane %v2236, %v2240
    %v2259 = vunpack.c.l.b16 %v2220
    %v2260 = vunpack.c.l.b16 %v2221
    %v2261 = vunpack.c.l.b16 %v2222
    %v2262 = vunpack.c.l.b16 %v2223
    %v2263 = vunpack.c.l.b16 %v2224
    %v2264 = vunpack.c.l.b16 %v2225
    %v2265 = vunpack.c.l.b16 %v2226
    %v2266 = vunpack.c.l.b16 %v2227
    %v2267 = vunpack.c.l.b16 %v2228
    %v2268 = vunpack.c.l.b16 %v2229
    %v2269 = vunpack.c.l.b16 %v2230
    %v2270 = vunpack.c.l.b16 %v2231
    %v2271 = vunpack.c.l.b16 %v2232
    %v2272 = vunpack.c.l.b16 %v2233
    %v2273 = vunpack.c.l.b16 %v2234
    %v2274 = vunpack.c.l.b16 %v2235
    %v2275 = vpack.c.b16 %v2260, %v2259
    %v2276 = vpack.c.b16 %v2262, %v2261
    %v2277 = vpack.c.b16 %v2264, %v2263
    %v2278 = vpack.c.b16 %v2266, %v2265
    %v2279 = vpack.c.b16 %v2268, %v2267
    %v2280 = vpack.c.b16 %v2270, %v2269
    %v2281 = vpack.c.b16 %v2272, %v2271
    %v2282 = vpack.c.b16 %v2274, %v2273
    %2291 = vmatprep.subr.bf16.mxu0 0
    %2292 = vmatpush1.bf16.msra.mxu0 %v2275
    %2293 = vmatprep.subr.bf16.mxu0 0
    %2294 = vmatpush1.bf16.msra.mxu0 %v2276
    %2295 = vmatprep.subr.bf16.mxu0 0
    %2296 = vmatpush1.bf16.msra.mxu0 %v2277
    %2297 = vmatprep.subr.bf16.mxu0 0
    %2298 = vmatpush1.bf16.msra.mxu0 %v2278
    %2299 = vmatprep.subr.bf16.mxu0 0
    %2300 = vmatpush1.bf16.msra.mxu0 %v2279
    %2301 = vmatprep.subr.bf16.mxu0 0
    %2302 = vmatpush1.bf16.msra.mxu0 %v2280
    %2303 = vmatprep.subr.bf16.mxu0 0
    %2304 = vmatpush1.bf16.msra.mxu0 %v2281
    %2305 = vmatprep.subr.bf16.mxu0 0
    %2306 = vmatpush1.bf16.msra.mxu0 %v2282
    %2307 = vmatprep.subr.bf16.mxu0 0
    %2308 = vmatpush1.bf16.msra.mxu0 0
    %2309 = vmatprep.subr.bf16.mxu0 0
    %2310 = vmatpush1.bf16.msra.mxu0 0
    %2311 = vmatprep.subr.bf16.mxu0 0
    %2312 = vmatpush1.bf16.msra.mxu0 0
    %2313 = vmatprep.subr.bf16.mxu0 0
    %2314 = vmatpush1.bf16.msra.mxu0 0
    %2315 = vmatprep.subr.bf16.mxu0 0
    %2316 = vmatpush1.bf16.msra.mxu0 0
    %2317 = vmatprep.subr.bf16.mxu0 0
    %2318 = vmatpush1.bf16.msra.mxu0 0
    %2319 = vmatprep.subr.bf16.mxu0 0
    %2320 = vmatpush1.bf16.msra.mxu0 0
    %2321 = vmatprep.subr.bf16.mxu0 0
    %2322 = vmatpush1.bf16.msra.mxu0 0
    %2323 = vmatprep.mubr.bf16.mxu0 0
    %2324 = vmatmul.mubr.bf16.gmra.mrb[0].mxu0 %v2218
    %v2325 = vpop.f32.mrb[0].mxu0
    %v2326 = vadd.f32 %v2241, %v2325
    %v2327 = vpop.f32.mrb[0].mxu0
    %v2328 = vpop.f32.mrb[0].mxu0
    %v2329 = vadd.f32 %v2241, %v2328
    %v2330 = vpop.f32.mrb[0].mxu0
    %2331 = vmatprep.mubr.bf16.mxu0 0
    %2332 = vmatmul.mubr.bf16.gmra.mrb[0].mxu0 %v2219
    %v2333 = vpop.f32.mrb[0].mxu0
    %v2334 = vadd.f32 %v2241, %v2333
    %v2335 = vpop.f32.mrb[0].mxu0
    %v2336 = vpop.f32.mrb[0].mxu0
    %v2337 = vadd.f32 %v2241, %v2336
    %v2338 = vpop.f32.mrb[0].mxu0
    %2339 = vdwg.mxu0
    %v2340 = vmax.f32 %v2326, 0.0
    %v2341 = vmax.f32 %v2329, 0.0
    %v2342 = vmax.f32 %v2334, 0.0
    %v2343 = vmax.f32 %v2337, 0.0
    %v2344 = vld [vmem:[%s10] sm:$0x1]
    %v2345 = vld [vmem:[%s11] sm:$0x1]
    %v2346 = vadd.f32 %v2340, %v2341
    %v2347 = vadd.f32 %v2346, %v2342
    %v2348 = vadd.f32 %v2347, %v2343
    %v2349 = vrot.slane %v2348, 4
    %v2350 = vadd.f32 %v2348, %v2349
    %v2351 = vrot.slane %v2350, 2
    %v2352 = vadd.f32 %v2350, %v2351
    %v2353 = vrot.slane %v2352, 1
    %v2354 = vadd.f32 %v2352, %v2353
    %v2355 = vmul.f32 %v2354, %v515
    %v2356 = vsub.f32 %v2340, %v2355
    %v2357 = vsub.f32 %v2341, %v2355
    %v2358 = vsub.f32 %v2342, %v2355
    %v2359 = vsub.f32 %v2343, %v2355
    %v2360 = vmul.f32 %v2356, %v2356
    %v2361 = vmul.f32 %v2357, %v2357
    %v2362 = vmul.f32 %v2358, %v2358
    %v2363 = vmul.f32 %v2359, %v2359
    %v2364 = vadd.f32 %v2360, %v2361
    %v2365 = vadd.f32 %v2364, %v2362
    %v2366 = vadd.f32 %v2365, %v2363
    %v2367 = vrot.slane %v2366, 4
    %v2368 = vadd.f32 %v2366, %v2367
    %v2369 = vrot.slane %v2368, 2
    %v2370 = vadd.f32 %v2368, %v2369
    %v2371 = vrot.slane %v2370, 1
    %v2372 = vadd.f32 %v2370, %v2371
    %v2373 = vmul.f32 %v2372, %v515
    %v2374 = vadd.f32 %v2373, 1e-05
    %v2375 = vrsqrt.pop %v2374
    %v2376 = vmul.f32 %v2344, %v2375
    %v2378 = vlaneseq
    %v2379 = vshrl.u32 %v2378, 7
    %v2380 = vsub.s32 0, %v2379
    %v2381 = vrot.slane %v2376, %v2380
    %v2383 = vmul.f32 %v2356, %v2381
    %v2384 = vmul.f32 %v2357, %v2381
    %v2385 = vmul.f32 %v2358, %v2381
    %v2386 = vmul.f32 %v2359, %v2381
    %v2388 = vlaneseq
    %v2389 = vshrl.u32 %v2388, 7
    %v2390 = vsub.s32 0, %v2389
    %v2391 = vrot.slane %v2345, %v2390
    %v2393 = vadd.f32 %v2383, %v2391
    %v2394 = vadd.f32 %v2384, %v2391
    %v2395 = vadd.f32 %v2385, %v2391
    %v2396 = vadd.f32 %v2386, %v2391
    %v2397 = vpack.c.bf16 %v2394, %v2393
    %v2398 = vpack.c.bf16 %v2396, %v2395
    %v2399 = vld [vmem:[#allocation12] sm:$0xf]
    %v2400 = vld [vmem:[#allocation12 + $0x4] sm:$0xf]
    %v2401 = vld [vmem:[#allocation12 + $0x8] sm:$0xf]
    %v2402 = vld [vmem:[#allocation12 + $0xc] sm:$0xf]
    %v2403 = vld [vmem:[#allocation12 + $0x10] sm:$0xf]
    %v2404 = vld [vmem:[#allocation12 + $0x14] sm:$0xf]
    %v2405 = vld [vmem:[#allocation12 + $0x18] sm:$0xf]
    %v2406 = vld [vmem:[#allocation12 + $0x1c] sm:$0xf]
    %v2407 = vld [vmem:[#allocation12 + $0x20] sm:$0xf]
    %v2408 = vld [vmem:[#allocation12 + $0x24] sm:$0xf]
    %v2409 = vld [vmem:[#allocation12 + $0x28] sm:$0xf]
    %v2410 = vld [vmem:[#allocation12 + $0x2c] sm:$0xf]
    %v2411 = vld [vmem:[#allocation12 + $0x30] sm:$0xf]
    %v2412 = vld [vmem:[#allocation12 + $0x34] sm:$0xf]
    %v2413 = vld [vmem:[#allocation12 + $0x38] sm:$0xf]
    %v2414 = vld [vmem:[#allocation12 + $0x3c] sm:$0xf]
    %v2415 = vld [vmem:[%s13] sm:$0x1]
    %v2417 = vlaneseq
    %v2418 = vshrl.u32 %v2417, 7
    %v2419 = vsub.s32 0, %v2418
    %v2420 = vrot.slane %v2415, %v2419
    %v2438 = vunpack.c.l.b16 %v2399
    %v2439 = vunpack.c.l.b16 %v2400
    %v2440 = vunpack.c.l.b16 %v2401
    %v2441 = vunpack.c.l.b16 %v2402
    %v2442 = vunpack.c.l.b16 %v2403
    %v2443 = vunpack.c.l.b16 %v2404
    %v2444 = vunpack.c.l.b16 %v2405
    %v2445 = vunpack.c.l.b16 %v2406
    %v2446 = vunpack.c.l.b16 %v2407
    %v2447 = vunpack.c.l.b16 %v2408
    %v2448 = vunpack.c.l.b16 %v2409
    %v2449 = vunpack.c.l.b16 %v2410
    %v2450 = vunpack.c.l.b16 %v2411
    %v2451 = vunpack.c.l.b16 %v2412
    %v2452 = vunpack.c.l.b16 %v2413
    %v2453 = vunpack.c.l.b16 %v2414
    %v2454 = vpack.c.b16 %v2439, %v2438
    %v2455 = vpack.c.b16 %v2441, %v2440
    %v2456 = vpack.c.b16 %v2443, %v2442
    %v2457 = vpack.c.b16 %v2445, %v2444
    %v2458 = vpack.c.b16 %v2447, %v2446
    %v2459 = vpack.c.b16 %v2449, %v2448
    %v2460 = vpack.c.b16 %v2451, %v2450
    %v2461 = vpack.c.b16 %v2453, %v2452
    %2470 = vmatprep.subr.bf16.mxu0 0
    %2471 = vmatpush1.bf16.msra.mxu0 %v2454
    %2472 = vmatprep.subr.bf16.mxu0 0
    %2473 = vmatpush1.bf16.msra.mxu0 %v2455
    %2474 = vmatprep.subr.bf16.mxu0 0
    %2475 = vmatpush1.bf16.msra.mxu0 %v2456
    %2476 = vmatprep.subr.bf16.mxu0 0
    %2477 = vmatpush1.bf16.msra.mxu0 %v2457
    %2478 = vmatprep.subr.bf16.mxu0 0
    %2479 = vmatpush1.bf16.msra.mxu0 %v2458
    %2480 = vmatprep.subr.bf16.mxu0 0
    %2481 = vmatpush1.bf16.msra.mxu0 %v2459
    %2482 = vmatprep.subr.bf16.mxu0 0
    %2483 = vmatpush1.bf16.msra.mxu0 %v2460
    %2484 = vmatprep.subr.bf16.mxu0 0
    %2485 = vmatpush1.bf16.msra.mxu0 %v2461
    %2486 = vmatprep.subr.bf16.mxu0 0
    %2487 = vmatpush1.bf16.msra.mxu0 0
    %2488 = vmatprep.subr.bf16.mxu0 0
    %2489 = vmatpush1.bf16.msra.mxu0 0
    %2490 = vmatprep.subr.bf16.mxu0 0
    %2491 = vmatpush1.bf16.msra.mxu0 0
    %2492 = vmatprep.subr.bf16.mxu0 0
    %2493 = vmatpush1.bf16.msra.mxu0 0
    %2494 = vmatprep.subr.bf16.mxu0 0
    %2495 = vmatpush1.bf16.msra.mxu0 0
    %2496 = vmatprep.subr.bf16.mxu0 0
    %2497 = vmatpush1.bf16.msra.mxu0 0
    %2498 = vmatprep.subr.bf16.mxu0 0
    %2499 = vmatpush1.bf16.msra.mxu0 0
    %2500 = vmatprep.subr.bf16.mxu0 0
    %2501 = vmatpush1.bf16.msra.mxu0 0
    %2502 = vmatprep.mubr.bf16.mxu0 0
    %2503 = vmatmul.mubr.bf16.gmra.mrb[0].mxu0 %v2397
    %v2504 = vpop.f32.mrb[0].mxu0
    %v2505 = vadd.f32 %v2420, %v2504
    %v2506 = vpop.f32.mrb[0].mxu0
    %v2507 = vpop.f32.mrb[0].mxu0
    %v2508 = vadd.f32 %v2420, %v2507
    %v2509 = vpop.f32.mrb[0].mxu0
    %2510 = vmatprep.mubr.bf16.mxu0 0
    %2511 = vmatmul.mubr.bf16.gmra.mrb[0].mxu0 %v2398
    %v2512 = vpop.f32.mrb[0].mxu0
    %v2513 = vadd.f32 %v2420, %v2512
    %v2514 = vpop.f32.mrb[0].mxu0
    %v2515 = vpop.f32.mrb[0].mxu0
    %v2516 = vadd.f32 %v2420, %v2515
    %v2517 = vpop.f32.mrb[0].mxu0
    %2518 = vdwg.mxu0
    %v2519 = vmul.f32 %v2505, %v172
    %v2520 = vmul.f32 %v2508, %v173
    %v2521 = vmul.f32 %v2513, %v174
    %v2522 = vmul.f32 %v2516, %v175
    %2523 = vst [vmem:[#allocation13] sm:$0xff] %v2519
    %2524 = vst [vmem:[#allocation13 + $0x8] sm:$0xff] %v2520
    %2525 = vst [vmem:[#allocation13 + $0x10] sm:$0xff] %v2521
    %2526 = vst [vmem:[#allocation13 + $0x18] sm:$0xff] %v2522
    // Predicated region
    $region82: #{tpu_custom_call.1} parent=1 // pred_check
      _
    $region83: #{tpu_custom_call.1} parent=1 // pred_check_branch
      %2528 = sbr.rel (0) target = $region85
    $region84: #{tpu_custom_call.1} parent=1 // pred_region
      %s2530 = ssub.s32 512, 512
      %2531 = vsyncadd [#allocation4], %s2530
      %s2532 = sshll.u32 [#allocation13], 4
      %s2533 = int_to_ptr.vmem [resolvable:$true] %s2532
      %2538 = dma.vmem_to_hbm [thread:$0]  %s2533, 512, %s14, [#allocation4], 128, 128, 8
    $region85: #{tpu_custom_call.1} parent=1 // pred_fallthru
      _
    // Predicated region
    $region86: #{tpu_custom_call.1} parent=1 // pred_check
      _
    $region87: #{tpu_custom_call.1} parent=1 // pred_check_branch
      %2540 = sbr.rel (0) target = $region89
    $region88: #{tpu_custom_call.1} parent=1 // pred_region
      %2541 = dma.done [#allocation4], 512
    $region89: #{tpu_custom_call.1} parent=1 // pred_fallthru
      _
    %2542 = vsyncpa [#allocation3], 1
    %2543 = vsyncpa [#allocation8], 1
    %2544 = vsyncpa [#allocation11], 1
    %2545 = vsyncpa [#allocation4], 1
    %2546 = vsyncpa [#allocation5], 1

</llo_original>
